<compile_context>
chip_gen: v7x
topology: tpu7x:2x2x1
jax: 0.10.0
libtpu: 0.0.40
codegen_flags: <defaults>
</compile_context>

<pallas_src>
import math

import jax
import jax.numpy as jnp
from jax.experimental import pallas as pl
from jax.experimental.pallas import tpu as pltpu

# ---------------- config (scaled-down BERT) ----------------
BATCH = 2
SEQ = 16
TOKENS = BATCH * SEQ
HIDDEN = 128
NUM_HEADS = 4
HEAD_DIM = HIDDEN // NUM_HEADS
FFN = 512
VOCAB = 128
TYPE_VOCAB = 2
MAX_POS = 32
NUM_LAYERS = 2
LN_EPS = 1e-12
ATTN_SCALE = 1.0 / math.sqrt(HEAD_DIM)


# ---------------- fused Pallas kernel ----------------
def _layer_norm(x, gamma, beta):
    """Two-pass LayerNorm over the last dim (stable with eps=1e-12)."""
    mu = jnp.mean(x, axis=-1, keepdims=True)
    var = jnp.mean((x - mu) ** 2, axis=-1, keepdims=True)
    return (x - mu) * (jax.lax.rsqrt(var + LN_EPS) * gamma) + beta


def _bert_fused_kernel(
    emb_ref, bias_ref,
    emb_ln_g_ref, emb_ln_b_ref,
    wqkv_ref, bqkv_ref, wo_ref, bo_ref, ln1_g_ref, ln1_b_ref,
    w1_ref, b1_ref, w2_ref, b2_ref, ln2_g_ref, ln2_b_ref,
    pool_w_ref, pool_b_ref, out_w_ref, out_b_ref,
    o_ref,
    ctx_ref,
):
    """Whole BERT encoder stack + pooler + classifier head, everything VMEM-resident."""
    f32 = jnp.float32
    bf16 = jnp.bfloat16

    # Hoisted once: (T, T) block-diagonal additive attention bias, reused by every layer/head.
    attn_bias = bias_ref[...]

    # Embedding LayerNorm (no residual, no zeros array).
    h = _layer_norm(emb_ref[...], emb_ln_g_ref[...], emb_ln_b_ref[...])        # (T, H) f32

    for l in range(NUM_LAYERS):
        x = h                                                                   # (T, H) f32
        x_bf = x.astype(bf16)                                                   # full-tile cast

        # ---- fused QKV projection (attention scale pre-folded into Q weight columns) ----
        qkv = jnp.dot(x_bf, wqkv_ref[l],
                      preferred_element_type=f32) + bqkv_ref[l]                 # (T, 3H) f32
        qkv_bf = qkv.astype(bf16)                                               # full-tile cast

        # ---- multi-head attention over all B*S rows at once (block-diag mask) ----
        for hd in range(NUM_HEADS):
            c0 = hd * HEAD_DIM
            q = qkv_bf[:, c0:c0 + HEAD_DIM]                                     # (T, Dh) bf16
            k = qkv_bf[:, HIDDEN + c0:HIDDEN + c0 + HEAD_DIM]
            v = qkv_bf[:, 2 * HIDDEN + c0:2 * HIDDEN + c0 + HEAD_DIM]
            # scores = q @ k.T (contract last dims; no materialized transpose)
            s = jax.lax.dot_general(q, k, (((1,), (1,)), ((), ())),
                                    preferred_element_type=f32) + attn_bias     # (T, T) f32
            m = jnp.max(s, axis=-1, keepdims=True)
            p = jnp.exp(s - m)
            denom = jnp.sum(p, axis=-1, keepdims=True)
            p = p * pl.reciprocal(denom, approx=True)                            # EUP reciprocal
            # Write this head's context into its lane slot of the VMEM scratch (no concat).
            ctx_ref[:, c0:c0 + HEAD_DIM] = jnp.dot(p.astype(bf16), v,
                                                   preferred_element_type=f32)  # (T, Dh) f32

        ctx_bf = ctx_ref[...].astype(bf16)                                       # full-tile cast

        # ---- attention output projection + Add & LayerNorm ----
        attn_out = jnp.dot(ctx_bf, wo_ref[l],
                           preferred_element_type=f32) + bo_ref[l]
        h1 = _layer_norm(attn_out + x, ln1_g_ref[l], ln1_b_ref[l])

        # ---- GELU FFN + Add & LayerNorm ----
        ff = jnp.dot(h1.astype(bf16), w1_ref[l],
                     preferred_element_type=f32) + b1_ref[l]                     # (T, FFN) f32
        # TODO(synk): HF BERT uses exact erf-GELU; tanh approximation used (EUP-friendly).
        ff = jax.nn.gelu(ff, approximate=True)
        ff2 = jnp.dot(ff.astype(bf16), w2_ref[l],
                      preferred_element_type=f32) + b2_ref[l]
        h = _layer_norm(ff2 + h1, ln2_g_ref[l], ln2_b_ref[l])

    # ---- pooler (tanh on CLS) + Dropout(0.3) [identity at eval] + Linear(H, 1) ----
    cls = jnp.concatenate([h[b * SEQ:b * SEQ + 1, :] for b in range(BATCH)], axis=0)  # (B, H)
    pooled = jnp.tanh(jnp.dot(cls.astype(bf16), pool_w_ref[...],
                              preferred_element_type=f32) + pool_b_ref[...])          # (B, H)
    # Linear(H, 1): weight is (1, H) (PyTorch layout); VPU multiply + lane reduction.
    logits = jnp.sum(pooled * out_w_ref[...], axis=-1, keepdims=True) + out_b_ref[...]
    o_ref[...] = logits                                                                # (B, 1)


# ---------------- parameter init (deterministic, synthetic) ----------------
def _normal(key, shape, std=0.02):
    return std * jax.random.normal(key, shape, dtype=jnp.float32)


def init_params(key):
    keys = iter(jax.random.split(key, 8 + NUM_LAYERS * 8))

    def zeros(*s):
        return jnp.zeros(s, jnp.float32)

    wqkv, wo, w1, w2 = [], [], [], []
    for _ in range(NUM_LAYERS):
        wq = _normal(next(keys), (HIDDEN, HIDDEN)) * ATTN_SCALE   # fold 1/sqrt(Dh) into Q
        wk = _normal(next(keys), (HIDDEN, HIDDEN))
        wv = _normal(next(keys), (HIDDEN, HIDDEN))
        wqkv.append(jnp.concatenate([wq, wk, wv], axis=1))        # fused (H, 3H)
        wo.append(_normal(next(keys), (HIDDEN, HIDDEN)))
        w1.append(_normal(next(keys), (HIDDEN, FFN)))
        w2.append(_normal(next(keys), (FFN, HIDDEN)))

    # Q bias columns must also carry the folded scale (zeros here, scaled for generality).
    bqkv = zeros(NUM_LAYERS, 1, 3 * HIDDEN)
    bqkv = bqkv.at[:, :, :HIDDEN].multiply(ATTN_SCALE)

    return {
        "word_emb": _normal(next(keys), (VOCAB, HIDDEN)),
        "pos_emb": _normal(next(keys), (MAX_POS, HIDDEN)),
        "type_emb": _normal(next(keys), (TYPE_VOCAB, HIDDEN)),
        "emb_ln_g": jnp.ones((1, HIDDEN), jnp.float32),
        "emb_ln_b": zeros(1, HIDDEN),
        # Encoder stack: weights stacked over layers; MXU operands stored in bf16.
        "wqkv": jnp.stack(wqkv).astype(jnp.bfloat16),             # (L, H, 3H)
        "bqkv": bqkv,
        "wo": jnp.stack(wo).astype(jnp.bfloat16),                 # (L, H, H)
        "bo": zeros(NUM_LAYERS, 1, HIDDEN),
        "ln1_g": jnp.ones((NUM_LAYERS, 1, HIDDEN), jnp.float32),
        "ln1_b": zeros(NUM_LAYERS, 1, HIDDEN),
        "w1": jnp.stack(w1).astype(jnp.bfloat16),                 # (L, H, FFN)
        "b1": zeros(NUM_LAYERS, 1, FFN),
        "w2": jnp.stack(w2).astype(jnp.bfloat16),                 # (L, FFN, H)
        "b2": zeros(NUM_LAYERS, 1, HIDDEN),
        "ln2_g": jnp.ones((NUM_LAYERS, 1, HIDDEN), jnp.float32),
        "ln2_b": zeros(NUM_LAYERS, 1, HIDDEN),
        "pool_w": _normal(next(keys), (HIDDEN, HIDDEN)).astype(jnp.bfloat16),
        "pool_b": zeros(1, HIDDEN),
        # nn.Linear(HIDDEN, 1): PyTorch weight layout (out_features, in_features) = (1, H)
        "out_w": _normal(next(keys), (1, HIDDEN)),
        "out_b": zeros(1, 1),
    }


# ---------------- forward pass ----------------
@jax.jit
def bert_base_cased_forward(params, ids, mask, token_type_ids):
    B, S = ids.shape
    T = B * S

    # Embedding-table gathers are glue in plain JAX; everything downstream is one fused kernel.
    word = jnp.take(params["word_emb"], ids, axis=0)                  # (B, S, H)
    pos = params["pos_emb"][:S][None, :, :]                           # (1, S, H)
    typ = jnp.take(params["type_emb"], token_type_ids, axis=0)        # (B, S, H)
    emb = (word + pos + typ).reshape(T, HIDDEN)                       # (T, H) f32

    # Block-diagonal additive attention bias (T, T): -1e9 on cross-batch blocks and on
    # masked key positions; 0 on allowed same-batch keys. Built once, hoisted in the kernel.
    batch_ids = jnp.repeat(jnp.arange(B), S)                          # (T,)
    same_batch = batch_ids[:, None] == batch_ids[None, :]             # (T, T)
    key_bias = ((1.0 - mask.astype(jnp.float32)) * -1e9).reshape(T)   # (T,)
    bias = jnp.where(same_batch, key_bias[None, :], -1e9)             # (T, T) f32

    # Single fused pallas_call: whole arrays live in VMEM (no grid, <1 MiB total).
    return pl.pallas_call(
        _bert_fused_kernel,
        out_shape=jax.ShapeDtypeStruct((B, 1), jnp.float32),
        scratch_shapes=[pltpu.VMEM((T, HIDDEN), jnp.float32)],        # per-layer head contexts
    )(emb, bias,
      params["emb_ln_g"], params["emb_ln_b"],
      params["wqkv"], params["bqkv"], params["wo"], params["bo"],
      params["ln1_g"], params["ln1_b"],
      params["w1"], params["b1"], params["w2"], params["b2"],
      params["ln2_g"], params["ln2_b"],
      params["pool_w"], params["pool_b"],
      params["out_w"], params["out_b"])


if __name__ == "__main__":
    key = jax.random.PRNGKey(0)
    pkey, ikey = jax.random.split(key)
    params = init_params(pkey)

    ids = jax.random.randint(ikey, (BATCH, SEQ), 0, VOCAB, dtype=jnp.int32)
    mask = jnp.ones((BATCH, SEQ), dtype=jnp.int32)
    token_type_ids = jnp.zeros((BATCH, SEQ), dtype=jnp.int32)

    out = bert_base_cased_forward(params, ids, mask, token_type_ids)
    out = jax.block_until_ready(out)
    assert out.shape == (BATCH, 1) and out.dtype == jnp.float32
    print("KERNEL_OK")
</pallas_src>

<mosaic_0001>
module attributes {stable_mosaic.version = 11 : i64} {
  func.func @_bert_fused_kernel(%arg0: memref<32x128xf32, #tpu.memory_space<vmem>>, %arg1: memref<32x32xf32, #tpu.memory_space<vmem>>, %arg2: memref<1x128xf32, #tpu.memory_space<vmem>>, %arg3: memref<1x128xf32, #tpu.memory_space<vmem>>, %arg4: memref<2x128x384xbf16, #tpu.memory_space<vmem>>, %arg5: memref<2x1x384xf32, #tpu.memory_space<vmem>>, %arg6: memref<2x128x128xbf16, #tpu.memory_space<vmem>>, %arg7: memref<2x1x128xf32, #tpu.memory_space<vmem>>, %arg8: memref<2x1x128xf32, #tpu.memory_space<vmem>>, %arg9: memref<2x1x128xf32, #tpu.memory_space<vmem>>, %arg10: memref<2x128x512xbf16, #tpu.memory_space<vmem>>, %arg11: memref<2x1x512xf32, #tpu.memory_space<vmem>>, %arg12: memref<2x512x128xbf16, #tpu.memory_space<vmem>>, %arg13: memref<2x1x128xf32, #tpu.memory_space<vmem>>, %arg14: memref<2x1x128xf32, #tpu.memory_space<vmem>>, %arg15: memref<2x1x128xf32, #tpu.memory_space<vmem>>, %arg16: memref<128x128xbf16, #tpu.memory_space<vmem>>, %arg17: memref<1x128xf32, #tpu.memory_space<vmem>>, %arg18: memref<1x128xf32, #tpu.memory_space<vmem>>, %arg19: memref<1x1xf32, #tpu.memory_space<vmem>>, %arg20: memref<2x1xf32, #tpu.memory_space<vmem>>, %arg21: memref<32x128xf32, #tpu.memory_space<vmem>>) attributes {dimension_semantics = [], scalar_prefetch = 0 : i64, scratch_operands = 1 : i64, tpu.core_type = #tpu.core_type<tc>} {
    %c0 = arith.constant 0 : index
    %c0_0 = arith.constant 0 : index
    %0 = vector.load %arg1[%c0, %c0_0] : memref<32x32xf32, #tpu.memory_space<vmem>>, vector<32x32xf32>
    %c0_1 = arith.constant 0 : index
    %c0_2 = arith.constant 0 : index
    %1 = vector.load %arg0[%c0_1, %c0_2] : memref<32x128xf32, #tpu.memory_space<vmem>>, vector<32x128xf32>
    %c0_3 = arith.constant 0 : index
    %c0_4 = arith.constant 0 : index
    %2 = vector.load %arg2[%c0_3, %c0_4] : memref<1x128xf32, #tpu.memory_space<vmem>>, vector<1x128xf32>
    %c0_5 = arith.constant 0 : index
    %c0_6 = arith.constant 0 : index
    %3 = vector.load %arg3[%c0_5, %c0_6] : memref<1x128xf32, #tpu.memory_space<vmem>>, vector<1x128xf32>
    %cst = arith.constant dense<0.000000e+00> : vector<32xf32>
    %4 = vector.multi_reduction <add>, %1, %cst [1] : vector<32x128xf32> to vector<32xf32>
    %5 = vector.shape_cast %4 : vector<32xf32> to vector<32x1xf32>
    %cst_7 = arith.constant 1.280000e+02 : f32
    %6 = vector.broadcast %cst_7 : f32 to vector<32x1xf32>
    %7 = arith.divf %5, %6 : vector<32x1xf32>
    %8 = vector.broadcast %7 : vector<32x1xf32> to vector<32x128xf32>
    %9 = arith.subf %1, %8 : vector<32x128xf32>
    %10 = arith.mulf %9, %9 : vector<32x128xf32>
    %cst_8 = arith.constant dense<0.000000e+00> : vector<32xf32>
    %11 = vector.multi_reduction <add>, %10, %cst_8 [1] : vector<32x128xf32> to vector<32xf32>
    %12 = vector.shape_cast %11 : vector<32xf32> to vector<32x1xf32>
    %cst_9 = arith.constant 1.280000e+02 : f32
    %13 = vector.broadcast %cst_9 : f32 to vector<32x1xf32>
    %14 = arith.divf %12, %13 : vector<32x1xf32>
    %15 = vector.broadcast %7 : vector<32x1xf32> to vector<32x128xf32>
    %16 = arith.subf %1, %15 : vector<32x128xf32>
    %cst_10 = arith.constant 9.99999996E-13 : f32
    %17 = vector.broadcast %cst_10 : f32 to vector<32x1xf32>
    %18 = arith.addf %14, %17 : vector<32x1xf32>
    %19 = math.rsqrt %18 : vector<32x1xf32>
    %20 = vector.broadcast %19 : vector<32x1xf32> to vector<32x128xf32>
    %21 = vector.broadcast %2 : vector<1x128xf32> to vector<32x128xf32>
    %22 = arith.mulf %20, %21 : vector<32x128xf32>
    %23 = arith.mulf %16, %22 : vector<32x128xf32>
    %24 = vector.broadcast %3 : vector<1x128xf32> to vector<32x128xf32>
    %25 = arith.addf %23, %24 : vector<32x128xf32>
    %26 = arith.truncf %25 : vector<32x128xf32> to vector<32x128xbf16>
    %c0_11 = arith.constant 0 : index
    %c0_12 = arith.constant 0 : index
    %c0_13 = arith.constant 0 : index
    %27 = vector.load %arg4[%c0_11, %c0_12, %c0_13] : memref<2x128x384xbf16, #tpu.memory_space<vmem>>, vector<1x128x384xbf16>
    %28 = vector.shape_cast %27 : vector<1x128x384xbf16> to vector<128x384xbf16>
    %cst_14 = arith.constant dense<0.000000e+00> : vector<32x384xf32>
    %29 = tpu.matmul %26, %28, %cst_14 {dimension_numbers = #tpu.dot_dimension_numbers<[1], [0], [0], [1], [0, 0, 1, 1], [], []>} : vector<32x128xbf16>, vector<128x384xbf16>, vector<32x384xf32> -> vector<32x384xf32>
    %c0_15 = arith.constant 0 : index
    %c0_16 = arith.constant 0 : index
    %c0_17 = arith.constant 0 : index
    %30 = vector.load %arg5[%c0_15, %c0_16, %c0_17] : memref<2x1x384xf32, #tpu.memory_space<vmem>>, vector<1x1x384xf32>
    %31 = vector.shape_cast %30 : vector<1x1x384xf32> to vector<1x384xf32>
    %32 = vector.broadcast %31 : vector<1x384xf32> to vector<32x384xf32>
    %33 = arith.addf %29, %32 : vector<32x384xf32>
    %34 = arith.truncf %33 : vector<32x384xf32> to vector<32x384xbf16>
    %35 = vector.extract_strided_slice %34 {offsets = [0, 0], sizes = [32, 32], strides = [1, 1]} : vector<32x384xbf16> to vector<32x32xbf16>
    %36 = vector.extract_strided_slice %34 {offsets = [0, 128], sizes = [32, 32], strides = [1, 1]} : vector<32x384xbf16> to vector<32x32xbf16>
    %37 = vector.extract_strided_slice %34 {offsets = [0, 256], sizes = [32, 32], strides = [1, 1]} : vector<32x384xbf16> to vector<32x32xbf16>
    %cst_18 = arith.constant dense<0.000000e+00> : vector<32x32xf32>
    %38 = tpu.matmul %35, %36, %cst_18 {dimension_numbers = #tpu.dot_dimension_numbers<[1], [1], [0], [0], [0, 0, 1, 0], [], []>} : vector<32x32xbf16>, vector<32x32xbf16>, vector<32x32xf32> -> vector<32x32xf32>
    %39 = arith.addf %38, %0 : vector<32x32xf32>
    %cst_19 = arith.constant dense<0xFF800000> : vector<32xf32>
    %40 = vector.multi_reduction <maximumf>, %39, %cst_19 [1] : vector<32x32xf32> to vector<32xf32>
    %41 = vector.shape_cast %40 : vector<32xf32> to vector<32x1xf32>
    %42 = vector.broadcast %41 : vector<32x1xf32> to vector<32x32xf32>
    %43 = arith.subf %39, %42 : vector<32x32xf32>
    %44 = math.exp %43 : vector<32x32xf32>
    %cst_20 = arith.constant dense<0.000000e+00> : vector<32xf32>
    %45 = vector.multi_reduction <add>, %44, %cst_20 [1] : vector<32x32xf32> to vector<32xf32>
    %46 = vector.shape_cast %45 : vector<32xf32> to vector<32x1xf32>
    %47 = tpu.reciprocal %46 {approx = true} : vector<32x1xf32> -> vector<32x1xf32>
    %48 = vector.broadcast %47 : vector<32x1xf32> to vector<32x32xf32>
    %49 = arith.mulf %44, %48 : vector<32x32xf32>
    %50 = arith.truncf %49 : vector<32x32xf32> to vector<32x32xbf16>
    %cst_21 = arith.constant dense<0.000000e+00> : vector<32x32xf32>
    %51 = tpu.matmul %50, %37, %cst_21 {dimension_numbers = #tpu.dot_dimension_numbers<[1], [0], [0], [1], [0, 0, 1, 1], [], []>} : vector<32x32xbf16>, vector<32x32xbf16>, vector<32x32xf32> -> vector<32x32xf32>
    %c0_22 = arith.constant 0 : index
    %c0_23 = arith.constant 0 : index
    %52 = vector.load %arg21[%c0_22, %c0_23] : memref<32x128xf32, #tpu.memory_space<vmem>>, vector<32x32xf32>
    tpu.vector_store %arg21[%c0_22, %c0_23], %51 {strides = array<i32>} : memref<32x128xf32, #tpu.memory_space<vmem>>, vector<32x32xf32>,
    %53 = vector.extract_strided_slice %34 {offsets = [0, 32], sizes = [32, 32], strides = [1, 1]} : vector<32x384xbf16> to vector<32x32xbf16>
    %54 = vector.extract_strided_slice %34 {offsets = [0, 160], sizes = [32, 32], strides = [1, 1]} : vector<32x384xbf16> to vector<32x32xbf16>
    %55 = vector.extract_strided_slice %34 {offsets = [0, 288], sizes = [32, 32], strides = [1, 1]} : vector<32x384xbf16> to vector<32x32xbf16>
    %cst_24 = arith.constant dense<0.000000e+00> : vector<32x32xf32>
    %56 = tpu.matmul %53, %54, %cst_24 {dimension_numbers = #tpu.dot_dimension_numbers<[1], [1], [0], [0], [0, 0, 1, 0], [], []>} : vector<32x32xbf16>, vector<32x32xbf16>, vector<32x32xf32> -> vector<32x32xf32>
    %57 = arith.addf %56, %0 : vector<32x32xf32>
    %cst_25 = arith.constant dense<0xFF800000> : vector<32xf32>
    %58 = vector.multi_reduction <maximumf>, %57, %cst_25 [1] : vector<32x32xf32> to vector<32xf32>
    %59 = vector.shape_cast %58 : vector<32xf32> to vector<32x1xf32>
    %60 = vector.broadcast %59 : vector<32x1xf32> to vector<32x32xf32>
    %61 = arith.subf %57, %60 : vector<32x32xf32>
    %62 = math.exp %61 : vector<32x32xf32>
    %cst_26 = arith.constant dense<0.000000e+00> : vector<32xf32>
    %63 = vector.multi_reduction <add>, %62, %cst_26 [1] : vector<32x32xf32> to vector<32xf32>
    %64 = vector.shape_cast %63 : vector<32xf32> to vector<32x1xf32>
    %65 = tpu.reciprocal %64 {approx = true} : vector<32x1xf32> -> vector<32x1xf32>
    %66 = vector.broadcast %65 : vector<32x1xf32> to vector<32x32xf32>
    %67 = arith.mulf %62, %66 : vector<32x32xf32>
    %68 = arith.truncf %67 : vector<32x32xf32> to vector<32x32xbf16>
    %cst_27 = arith.constant dense<0.000000e+00> : vector<32x32xf32>
    %69 = tpu.matmul %68, %55, %cst_27 {dimension_numbers = #tpu.dot_dimension_numbers<[1], [0], [0], [1], [0, 0, 1, 1], [], []>} : vector<32x32xbf16>, vector<32x32xbf16>, vector<32x32xf32> -> vector<32x32xf32>
    %c0_28 = arith.constant 0 : index
    %c32 = arith.constant 32 : index
    %70 = vector.load %arg21[%c0_28, %c32] : memref<32x128xf32, #tpu.memory_space<vmem>>, vector<32x32xf32>
    tpu.vector_store %arg21[%c0_28, %c32], %69 {strides = array<i32>} : memref<32x128xf32, #tpu.memory_space<vmem>>, vector<32x32xf32>,
    %71 = vector.extract_strided_slice %34 {offsets = [0, 64], sizes = [32, 32], strides = [1, 1]} : vector<32x384xbf16> to vector<32x32xbf16>
    %72 = vector.extract_strided_slice %34 {offsets = [0, 192], sizes = [32, 32], strides = [1, 1]} : vector<32x384xbf16> to vector<32x32xbf16>
    %73 = vector.extract_strided_slice %34 {offsets = [0, 320], sizes = [32, 32], strides = [1, 1]} : vector<32x384xbf16> to vector<32x32xbf16>
    %cst_29 = arith.constant dense<0.000000e+00> : vector<32x32xf32>
    %74 = tpu.matmul %71, %72, %cst_29 {dimension_numbers = #tpu.dot_dimension_numbers<[1], [1], [0], [0], [0, 0, 1, 0], [], []>} : vector<32x32xbf16>, vector<32x32xbf16>, vector<32x32xf32> -> vector<32x32xf32>
    %75 = arith.addf %74, %0 : vector<32x32xf32>
    %cst_30 = arith.constant dense<0xFF800000> : vector<32xf32>
    %76 = vector.multi_reduction <maximumf>, %75, %cst_30 [1] : vector<32x32xf32> to vector<32xf32>
    %77 = vector.shape_cast %76 : vector<32xf32> to vector<32x1xf32>
    %78 = vector.broadcast %77 : vector<32x1xf32> to vector<32x32xf32>
    %79 = arith.subf %75, %78 : vector<32x32xf32>
    %80 = math.exp %79 : vector<32x32xf32>
    %cst_31 = arith.constant dense<0.000000e+00> : vector<32xf32>
    %81 = vector.multi_reduction <add>, %80, %cst_31 [1] : vector<32x32xf32> to vector<32xf32>
    %82 = vector.shape_cast %81 : vector<32xf32> to vector<32x1xf32>
    %83 = tpu.reciprocal %82 {approx = true} : vector<32x1xf32> -> vector<32x1xf32>
    %84 = vector.broadcast %83 : vector<32x1xf32> to vector<32x32xf32>
    %85 = arith.mulf %80, %84 : vector<32x32xf32>
    %86 = arith.truncf %85 : vector<32x32xf32> to vector<32x32xbf16>
    %cst_32 = arith.constant dense<0.000000e+00> : vector<32x32xf32>
    %87 = tpu.matmul %86, %73, %cst_32 {dimension_numbers = #tpu.dot_dimension_numbers<[1], [0], [0], [1], [0, 0, 1, 1], [], []>} : vector<32x32xbf16>, vector<32x32xbf16>, vector<32x32xf32> -> vector<32x32xf32>
    %c0_33 = arith.constant 0 : index
    %c64 = arith.constant 64 : index
    %88 = vector.load %arg21[%c0_33, %c64] : memref<32x128xf32, #tpu.memory_space<vmem>>, vector<32x32xf32>
    tpu.vector_store %arg21[%c0_33, %c64], %87 {strides = array<i32>} : memref<32x128xf32, #tpu.memory_space<vmem>>, vector<32x32xf32>,
    %89 = vector.extract_strided_slice %34 {offsets = [0, 96], sizes = [32, 32], strides = [1, 1]} : vector<32x384xbf16> to vector<32x32xbf16>
    %90 = vector.extract_strided_slice %34 {offsets = [0, 224], sizes = [32, 32], strides = [1, 1]} : vector<32x384xbf16> to vector<32x32xbf16>
    %91 = vector.extract_strided_slice %34 {offsets = [0, 352], sizes = [32, 32], strides = [1, 1]} : vector<32x384xbf16> to vector<32x32xbf16>
    %cst_34 = arith.constant dense<0.000000e+00> : vector<32x32xf32>
    %92 = tpu.matmul %89, %90, %cst_34 {dimension_numbers = #tpu.dot_dimension_numbers<[1], [1], [0], [0], [0, 0, 1, 0], [], []>} : vector<32x32xbf16>, vector<32x32xbf16>, vector<32x32xf32> -> vector<32x32xf32>
    %93 = arith.addf %92, %0 : vector<32x32xf32>
    %cst_35 = arith.constant dense<0xFF800000> : vector<32xf32>
    %94 = vector.multi_reduction <maximumf>, %93, %cst_35 [1] : vector<32x32xf32> to vector<32xf32>
    %95 = vector.shape_cast %94 : vector<32xf32> to vector<32x1xf32>
    %96 = vector.broadcast %95 : vector<32x1xf32> to vector<32x32xf32>
    %97 = arith.subf %93, %96 : vector<32x32xf32>
    %98 = math.exp %97 : vector<32x32xf32>
    %cst_36 = arith.constant dense<0.000000e+00> : vector<32xf32>
    %99 = vector.multi_reduction <add>, %98, %cst_36 [1] : vector<32x32xf32> to vector<32xf32>
    %100 = vector.shape_cast %99 : vector<32xf32> to vector<32x1xf32>
    %101 = tpu.reciprocal %100 {approx = true} : vector<32x1xf32> -> vector<32x1xf32>
    %102 = vector.broadcast %101 : vector<32x1xf32> to vector<32x32xf32>
    %103 = arith.mulf %98, %102 : vector<32x32xf32>
    %104 = arith.truncf %103 : vector<32x32xf32> to vector<32x32xbf16>
    %cst_37 = arith.constant dense<0.000000e+00> : vector<32x32xf32>
    %105 = tpu.matmul %104, %91, %cst_37 {dimension_numbers = #tpu.dot_dimension_numbers<[1], [0], [0], [1], [0, 0, 1, 1], [], []>} : vector<32x32xbf16>, vector<32x32xbf16>, vector<32x32xf32> -> vector<32x32xf32>
    %c0_38 = arith.constant 0 : index
    %c96 = arith.constant 96 : index
    %106 = vector.load %arg21[%c0_38, %c96] : memref<32x128xf32, #tpu.memory_space<vmem>>, vector<32x32xf32>
    tpu.vector_store %arg21[%c0_38, %c96], %105 {strides = array<i32>} : memref<32x128xf32, #tpu.memory_space<vmem>>, vector<32x32xf32>,
    %c0_39 = arith.constant 0 : index
    %c0_40 = arith.constant 0 : index
    %107 = vector.load %arg21[%c0_39, %c0_40] : memref<32x128xf32, #tpu.memory_space<vmem>>, vector<32x128xf32>
    %108 = arith.truncf %107 : vector<32x128xf32> to vector<32x128xbf16>
    %c0_41 = arith.constant 0 : index
    %c0_42 = arith.constant 0 : index
    %c0_43 = arith.constant 0 : index
    %109 = vector.load %arg6[%c0_41, %c0_42, %c0_43] : memref<2x128x128xbf16, #tpu.memory_space<vmem>>, vector<1x128x128xbf16>
    %110 = vector.shape_cast %109 : vector<1x128x128xbf16> to vector<128x128xbf16>
    %cst_44 = arith.constant dense<0.000000e+00> : vector<32x128xf32>
    %111 = tpu.matmul %108, %110, %cst_44 {dimension_numbers = #tpu.dot_dimension_numbers<[1], [0], [0], [1], [0, 0, 1, 1], [], []>} : vector<32x128xbf16>, vector<128x128xbf16>, vector<32x128xf32> -> vector<32x128xf32>
    %c0_45 = arith.constant 0 : index
    %c0_46 = arith.constant 0 : index
    %c0_47 = arith.constant 0 : index
    %112 = vector.load %arg7[%c0_45, %c0_46, %c0_47] : memref<2x1x128xf32, #tpu.memory_space<vmem>>, vector<1x1x128xf32>
    %113 = vector.shape_cast %112 : vector<1x1x128xf32> to vector<1x128xf32>
    %114 = vector.broadcast %113 : vector<1x128xf32> to vector<32x128xf32>
    %115 = arith.addf %111, %114 : vector<32x128xf32>
    %116 = arith.addf %115, %25 : vector<32x128xf32>
    %c0_48 = arith.constant 0 : index
    %c0_49 = arith.constant 0 : index
    %c0_50 = arith.constant 0 : index
    %117 = vector.load %arg8[%c0_48, %c0_49, %c0_50] : memref<2x1x128xf32, #tpu.memory_space<vmem>>, vector<1x1x128xf32>
    %118 = vector.shape_cast %117 : vector<1x1x128xf32> to vector<1x128xf32>
    %c0_51 = arith.constant 0 : index
    %c0_52 = arith.constant 0 : index
    %c0_53 = arith.constant 0 : index
    %119 = vector.load %arg9[%c0_51, %c0_52, %c0_53] : memref<2x1x128xf32, #tpu.memory_space<vmem>>, vector<1x1x128xf32>
    %120 = vector.shape_cast %119 : vector<1x1x128xf32> to vector<1x128xf32>
    %cst_54 = arith.constant dense<0.000000e+00> : vector<32xf32>
    %121 = vector.multi_reduction <add>, %116, %cst_54 [1] : vector<32x128xf32> to vector<32xf32>
    %122 = vector.shape_cast %121 : vector<32xf32> to vector<32x1xf32>
    %cst_55 = arith.constant 1.280000e+02 : f32
    %123 = vector.broadcast %cst_55 : f32 to vector<32x1xf32>
    %124 = arith.divf %122, %123 : vector<32x1xf32>
    %125 = vector.broadcast %124 : vector<32x1xf32> to vector<32x128xf32>
    %126 = arith.subf %116, %125 : vector<32x128xf32>
    %127 = arith.mulf %126, %126 : vector<32x128xf32>
    %cst_56 = arith.constant dense<0.000000e+00> : vector<32xf32>
    %128 = vector.multi_reduction <add>, %127, %cst_56 [1] : vector<32x128xf32> to vector<32xf32>
    %129 = vector.shape_cast %128 : vector<32xf32> to vector<32x1xf32>
    %cst_57 = arith.constant 1.280000e+02 : f32
    %130 = vector.broadcast %cst_57 : f32 to vector<32x1xf32>
    %131 = arith.divf %129, %130 : vector<32x1xf32>
    %132 = vector.broadcast %124 : vector<32x1xf32> to vector<32x128xf32>
    %133 = arith.subf %116, %132 : vector<32x128xf32>
    %cst_58 = arith.constant 9.99999996E-13 : f32
    %134 = vector.broadcast %cst_58 : f32 to vector<32x1xf32>
    %135 = arith.addf %131, %134 : vector<32x1xf32>
    %136 = math.rsqrt %135 : vector<32x1xf32>
    %137 = vector.broadcast %136 : vector<32x1xf32> to vector<32x128xf32>
    %138 = vector.broadcast %118 : vector<1x128xf32> to vector<32x128xf32>
    %139 = arith.mulf %137, %138 : vector<32x128xf32>
    %140 = arith.mulf %133, %139 : vector<32x128xf32>
    %141 = vector.broadcast %120 : vector<1x128xf32> to vector<32x128xf32>
    %142 = arith.addf %140, %141 : vector<32x128xf32>
    %143 = arith.truncf %142 : vector<32x128xf32> to vector<32x128xbf16>
    %c0_59 = arith.constant 0 : index
    %c0_60 = arith.constant 0 : index
    %c0_61 = arith.constant 0 : index
    %144 = vector.load %arg10[%c0_59, %c0_60, %c0_61] : memref<2x128x512xbf16, #tpu.memory_space<vmem>>, vector<1x128x512xbf16>
    %145 = vector.shape_cast %144 : vector<1x128x512xbf16> to vector<128x512xbf16>
    %cst_62 = arith.constant dense<0.000000e+00> : vector<32x512xf32>
    %146 = tpu.matmul %143, %145, %cst_62 {dimension_numbers = #tpu.dot_dimension_numbers<[1], [0], [0], [1], [0, 0, 1, 1], [], []>} : vector<32x128xbf16>, vector<128x512xbf16>, vector<32x512xf32> -> vector<32x512xf32>
    %c0_63 = arith.constant 0 : index
    %c0_64 = arith.constant 0 : index
    %c0_65 = arith.constant 0 : index
    %147 = vector.load %arg11[%c0_63, %c0_64, %c0_65] : memref<2x1x512xf32, #tpu.memory_space<vmem>>, vector<1x1x512xf32>
    %148 = vector.shape_cast %147 : vector<1x1x512xf32> to vector<1x512xf32>
    %149 = vector.broadcast %148 : vector<1x512xf32> to vector<32x512xf32>
    %150 = arith.addf %146, %149 : vector<32x512xf32>
    %151 = arith.mulf %150, %150 : vector<32x512xf32>
    %152 = arith.mulf %150, %151 : vector<32x512xf32>
    %cst_66 = arith.constant 4.471500e-02 : f32
    %153 = vector.broadcast %cst_66 : f32 to vector<32x512xf32>
    %154 = arith.mulf %153, %152 : vector<32x512xf32>
    %155 = arith.addf %150, %154 : vector<32x512xf32>
    %cst_67 = arith.constant 0.797884583 : f32
    %156 = vector.broadcast %cst_67 : f32 to vector<32x512xf32>
    %157 = arith.mulf %156, %155 : vector<32x512xf32>
    %158 = math.tanh %157 : vector<32x512xf32>
    %cst_68 = arith.constant 1.000000e+00 : f32
    %159 = vector.broadcast %cst_68 : f32 to vector<32x512xf32>
    %160 = arith.addf %159, %158 : vector<32x512xf32>
    %cst_69 = arith.constant 5.000000e-01 : f32
    %161 = vector.broadcast %cst_69 : f32 to vector<32x512xf32>
    %162 = arith.mulf %161, %160 : vector<32x512xf32>
    %163 = arith.mulf %150, %162 : vector<32x512xf32>
    %164 = arith.truncf %163 : vector<32x512xf32> to vector<32x512xbf16>
    %c0_70 = arith.constant 0 : index
    %c0_71 = arith.constant 0 : index
    %c0_72 = arith.constant 0 : index
    %165 = vector.load %arg12[%c0_70, %c0_71, %c0_72] : memref<2x512x128xbf16, #tpu.memory_space<vmem>>, vector<1x512x128xbf16>
    %166 = vector.shape_cast %165 : vector<1x512x128xbf16> to vector<512x128xbf16>
    %cst_73 = arith.constant dense<0.000000e+00> : vector<32x128xf32>
    %167 = tpu.matmul %164, %166, %cst_73 {dimension_numbers = #tpu.dot_dimension_numbers<[1], [0], [0], [1], [0, 0, 1, 1], [], []>} : vector<32x512xbf16>, vector<512x128xbf16>, vector<32x128xf32> -> vector<32x128xf32>
    %c0_74 = arith.constant 0 : index
    %c0_75 = arith.constant 0 : index
    %c0_76 = arith.constant 0 : index
    %168 = vector.load %arg13[%c0_74, %c0_75, %c0_76] : memref<2x1x128xf32, #tpu.memory_space<vmem>>, vector<1x1x128xf32>
    %169 = vector.shape_cast %168 : vector<1x1x128xf32> to vector<1x128xf32>
    %170 = vector.broadcast %169 : vector<1x128xf32> to vector<32x128xf32>
    %171 = arith.addf %167, %170 : vector<32x128xf32>
    %172 = arith.addf %171, %142 : vector<32x128xf32>
    %c0_77 = arith.constant 0 : index
    %c0_78 = arith.constant 0 : index
    %c0_79 = arith.constant 0 : index
    %173 = vector.load %arg14[%c0_77, %c0_78, %c0_79] : memref<2x1x128xf32, #tpu.memory_space<vmem>>, vector<1x1x128xf32>
    %174 = vector.shape_cast %173 : vector<1x1x128xf32> to vector<1x128xf32>
    %c0_80 = arith.constant 0 : index
    %c0_81 = arith.constant 0 : index
    %c0_82 = arith.constant 0 : index
    %175 = vector.load %arg15[%c0_80, %c0_81, %c0_82] : memref<2x1x128xf32, #tpu.memory_space<vmem>>, vector<1x1x128xf32>
    %176 = vector.shape_cast %175 : vector<1x1x128xf32> to vector<1x128xf32>
    %cst_83 = arith.constant dense<0.000000e+00> : vector<32xf32>
    %177 = vector.multi_reduction <add>, %172, %cst_83 [1] : vector<32x128xf32> to vector<32xf32>
    %178 = vector.shape_cast %177 : vector<32xf32> to vector<32x1xf32>
    %cst_84 = arith.constant 1.280000e+02 : f32
    %179 = vector.broadcast %cst_84 : f32 to vector<32x1xf32>
    %180 = arith.divf %178, %179 : vector<32x1xf32>
    %181 = vector.broadcast %180 : vector<32x1xf32> to vector<32x128xf32>
    %182 = arith.subf %172, %181 : vector<32x128xf32>
    %183 = arith.mulf %182, %182 : vector<32x128xf32>
    %cst_85 = arith.constant dense<0.000000e+00> : vector<32xf32>
    %184 = vector.multi_reduction <add>, %183, %cst_85 [1] : vector<32x128xf32> to vector<32xf32>
    %185 = vector.shape_cast %184 : vector<32xf32> to vector<32x1xf32>
    %cst_86 = arith.constant 1.280000e+02 : f32
    %186 = vector.broadcast %cst_86 : f32 to vector<32x1xf32>
    %187 = arith.divf %185, %186 : vector<32x1xf32>
    %188 = vector.broadcast %180 : vector<32x1xf32> to vector<32x128xf32>
    %189 = arith.subf %172, %188 : vector<32x128xf32>
    %cst_87 = arith.constant 9.99999996E-13 : f32
    %190 = vector.broadcast %cst_87 : f32 to vector<32x1xf32>
    %191 = arith.addf %187, %190 : vector<32x1xf32>
    %192 = math.rsqrt %191 : vector<32x1xf32>
    %193 = vector.broadcast %192 : vector<32x1xf32> to vector<32x128xf32>
    %194 = vector.broadcast %174 : vector<1x128xf32> to vector<32x128xf32>
    %195 = arith.mulf %193, %194 : vector<32x128xf32>
    %196 = arith.mulf %189, %195 : vector<32x128xf32>
    %197 = vector.broadcast %176 : vector<1x128xf32> to vector<32x128xf32>
    %198 = arith.addf %196, %197 : vector<32x128xf32>
    %199 = arith.truncf %198 : vector<32x128xf32> to vector<32x128xbf16>
    %c1 = arith.constant 1 : index
    %c0_88 = arith.constant 0 : index
    %c0_89 = arith.constant 0 : index
    %200 = vector.load %arg4[%c1, %c0_88, %c0_89] : memref<2x128x384xbf16, #tpu.memory_space<vmem>>, vector<1x128x384xbf16>
    %201 = vector.shape_cast %200 : vector<1x128x384xbf16> to vector<128x384xbf16>
    %cst_90 = arith.constant dense<0.000000e+00> : vector<32x384xf32>
    %202 = tpu.matmul %199, %201, %cst_90 {dimension_numbers = #tpu.dot_dimension_numbers<[1], [0], [0], [1], [0, 0, 1, 1], [], []>} : vector<32x128xbf16>, vector<128x384xbf16>, vector<32x384xf32> -> vector<32x384xf32>
    %c1_91 = arith.constant 1 : index
    %c0_92 = arith.constant 0 : index
    %c0_93 = arith.constant 0 : index
    %203 = vector.load %arg5[%c1_91, %c0_92, %c0_93] : memref<2x1x384xf32, #tpu.memory_space<vmem>>, vector<1x1x384xf32>
    %204 = vector.shape_cast %203 : vector<1x1x384xf32> to vector<1x384xf32>
    %205 = vector.broadcast %204 : vector<1x384xf32> to vector<32x384xf32>
    %206 = arith.addf %202, %205 : vector<32x384xf32>
    %207 = arith.truncf %206 : vector<32x384xf32> to vector<32x384xbf16>
    %208 = vector.extract_strided_slice %207 {offsets = [0, 0], sizes = [32, 32], strides = [1, 1]} : vector<32x384xbf16> to vector<32x32xbf16>
    %209 = vector.extract_strided_slice %207 {offsets = [0, 128], sizes = [32, 32], strides = [1, 1]} : vector<32x384xbf16> to vector<32x32xbf16>
    %210 = vector.extract_strided_slice %207 {offsets = [0, 256], sizes = [32, 32], strides = [1, 1]} : vector<32x384xbf16> to vector<32x32xbf16>
    %cst_94 = arith.constant dense<0.000000e+00> : vector<32x32xf32>
    %211 = tpu.matmul %208, %209, %cst_94 {dimension_numbers = #tpu.dot_dimension_numbers<[1], [1], [0], [0], [0, 0, 1, 0], [], []>} : vector<32x32xbf16>, vector<32x32xbf16>, vector<32x32xf32> -> vector<32x32xf32>
    %212 = arith.addf %211, %0 : vector<32x32xf32>
    %cst_95 = arith.constant dense<0xFF800000> : vector<32xf32>
    %213 = vector.multi_reduction <maximumf>, %212, %cst_95 [1] : vector<32x32xf32> to vector<32xf32>
    %214 = vector.shape_cast %213 : vector<32xf32> to vector<32x1xf32>
    %215 = vector.broadcast %214 : vector<32x1xf32> to vector<32x32xf32>
    %216 = arith.subf %212, %215 : vector<32x32xf32>
    %217 = math.exp %216 : vector<32x32xf32>
    %cst_96 = arith.constant dense<0.000000e+00> : vector<32xf32>
    %218 = vector.multi_reduction <add>, %217, %cst_96 [1] : vector<32x32xf32> to vector<32xf32>
    %219 = vector.shape_cast %218 : vector<32xf32> to vector<32x1xf32>
    %220 = tpu.reciprocal %219 {approx = true} : vector<32x1xf32> -> vector<32x1xf32>
    %221 = vector.broadcast %220 : vector<32x1xf32> to vector<32x32xf32>
    %222 = arith.mulf %217, %221 : vector<32x32xf32>
    %223 = arith.truncf %222 : vector<32x32xf32> to vector<32x32xbf16>
    %cst_97 = arith.constant dense<0.000000e+00> : vector<32x32xf32>
    %224 = tpu.matmul %223, %210, %cst_97 {dimension_numbers = #tpu.dot_dimension_numbers<[1], [0], [0], [1], [0, 0, 1, 1], [], []>} : vector<32x32xbf16>, vector<32x32xbf16>, vector<32x32xf32> -> vector<32x32xf32>
    %c0_98 = arith.constant 0 : index
    %c0_99 = arith.constant 0 : index
    %225 = vector.load %arg21[%c0_98, %c0_99] : memref<32x128xf32, #tpu.memory_space<vmem>>, vector<32x32xf32>
    tpu.vector_store %arg21[%c0_98, %c0_99], %224 {strides = array<i32>} : memref<32x128xf32, #tpu.memory_space<vmem>>, vector<32x32xf32>,
    %226 = vector.extract_strided_slice %207 {offsets = [0, 32], sizes = [32, 32], strides = [1, 1]} : vector<32x384xbf16> to vector<32x32xbf16>
    %227 = vector.extract_strided_slice %207 {offsets = [0, 160], sizes = [32, 32], strides = [1, 1]} : vector<32x384xbf16> to vector<32x32xbf16>
    %228 = vector.extract_strided_slice %207 {offsets = [0, 288], sizes = [32, 32], strides = [1, 1]} : vector<32x384xbf16> to vector<32x32xbf16>
    %cst_100 = arith.constant dense<0.000000e+00> : vector<32x32xf32>
    %229 = tpu.matmul %226, %227, %cst_100 {dimension_numbers = #tpu.dot_dimension_numbers<[1], [1], [0], [0], [0, 0, 1, 0], [], []>} : vector<32x32xbf16>, vector<32x32xbf16>, vector<32x32xf32> -> vector<32x32xf32>
    %230 = arith.addf %229, %0 : vector<32x32xf32>
    %cst_101 = arith.constant dense<0xFF800000> : vector<32xf32>
    %231 = vector.multi_reduction <maximumf>, %230, %cst_101 [1] : vector<32x32xf32> to vector<32xf32>
    %232 = vector.shape_cast %231 : vector<32xf32> to vector<32x1xf32>
    %233 = vector.broadcast %232 : vector<32x1xf32> to vector<32x32xf32>
    %234 = arith.subf %230, %233 : vector<32x32xf32>
    %235 = math.exp %234 : vector<32x32xf32>
    %cst_102 = arith.constant dense<0.000000e+00> : vector<32xf32>
    %236 = vector.multi_reduction <add>, %235, %cst_102 [1] : vector<32x32xf32> to vector<32xf32>
    %237 = vector.shape_cast %236 : vector<32xf32> to vector<32x1xf32>
    %238 = tpu.reciprocal %237 {approx = true} : vector<32x1xf32> -> vector<32x1xf32>
    %239 = vector.broadcast %238 : vector<32x1xf32> to vector<32x32xf32>
    %240 = arith.mulf %235, %239 : vector<32x32xf32>
    %241 = arith.truncf %240 : vector<32x32xf32> to vector<32x32xbf16>
    %cst_103 = arith.constant dense<0.000000e+00> : vector<32x32xf32>
    %242 = tpu.matmul %241, %228, %cst_103 {dimension_numbers = #tpu.dot_dimension_numbers<[1], [0], [0], [1], [0, 0, 1, 1], [], []>} : vector<32x32xbf16>, vector<32x32xbf16>, vector<32x32xf32> -> vector<32x32xf32>
    %c0_104 = arith.constant 0 : index
    %c32_105 = arith.constant 32 : index
    %243 = vector.load %arg21[%c0_104, %c32_105] : memref<32x128xf32, #tpu.memory_space<vmem>>, vector<32x32xf32>
    tpu.vector_store %arg21[%c0_104, %c32_105], %242 {strides = array<i32>} : memref<32x128xf32, #tpu.memory_space<vmem>>, vector<32x32xf32>,
    %244 = vector.extract_strided_slice %207 {offsets = [0, 64], sizes = [32, 32], strides = [1, 1]} : vector<32x384xbf16> to vector<32x32xbf16>
    %245 = vector.extract_strided_slice %207 {offsets = [0, 192], sizes = [32, 32], strides = [1, 1]} : vector<32x384xbf16> to vector<32x32xbf16>
    %246 = vector.extract_strided_slice %207 {offsets = [0, 320], sizes = [32, 32], strides = [1, 1]} : vector<32x384xbf16> to vector<32x32xbf16>
    %cst_106 = arith.constant dense<0.000000e+00> : vector<32x32xf32>
    %247 = tpu.matmul %244, %245, %cst_106 {dimension_numbers = #tpu.dot_dimension_numbers<[1], [1], [0], [0], [0, 0, 1, 0], [], []>} : vector<32x32xbf16>, vector<32x32xbf16>, vector<32x32xf32> -> vector<32x32xf32>
    %248 = arith.addf %247, %0 : vector<32x32xf32>
    %cst_107 = arith.constant dense<0xFF800000> : vector<32xf32>
    %249 = vector.multi_reduction <maximumf>, %248, %cst_107 [1] : vector<32x32xf32> to vector<32xf32>
    %250 = vector.shape_cast %249 : vector<32xf32> to vector<32x1xf32>
    %251 = vector.broadcast %250 : vector<32x1xf32> to vector<32x32xf32>
    %252 = arith.subf %248, %251 : vector<32x32xf32>
    %253 = math.exp %252 : vector<32x32xf32>
    %cst_108 = arith.constant dense<0.000000e+00> : vector<32xf32>
    %254 = vector.multi_reduction <add>, %253, %cst_108 [1] : vector<32x32xf32> to vector<32xf32>
    %255 = vector.shape_cast %254 : vector<32xf32> to vector<32x1xf32>
    %256 = tpu.reciprocal %255 {approx = true} : vector<32x1xf32> -> vector<32x1xf32>
    %257 = vector.broadcast %256 : vector<32x1xf32> to vector<32x32xf32>
    %258 = arith.mulf %253, %257 : vector<32x32xf32>
    %259 = arith.truncf %258 : vector<32x32xf32> to vector<32x32xbf16>
    %cst_109 = arith.constant dense<0.000000e+00> : vector<32x32xf32>
    %260 = tpu.matmul %259, %246, %cst_109 {dimension_numbers = #tpu.dot_dimension_numbers<[1], [0], [0], [1], [0, 0, 1, 1], [], []>} : vector<32x32xbf16>, vector<32x32xbf16>, vector<32x32xf32> -> vector<32x32xf32>
    %c0_110 = arith.constant 0 : index
    %c64_111 = arith.constant 64 : index
    %261 = vector.load %arg21[%c0_110, %c64_111] : memref<32x128xf32, #tpu.memory_space<vmem>>, vector<32x32xf32>
    tpu.vector_store %arg21[%c0_110, %c64_111], %260 {strides = array<i32>} : memref<32x128xf32, #tpu.memory_space<vmem>>, vector<32x32xf32>,
    %262 = vector.extract_strided_slice %207 {offsets = [0, 96], sizes = [32, 32], strides = [1, 1]} : vector<32x384xbf16> to vector<32x32xbf16>
    %263 = vector.extract_strided_slice %207 {offsets = [0, 224], sizes = [32, 32], strides = [1, 1]} : vector<32x384xbf16> to vector<32x32xbf16>
    %264 = vector.extract_strided_slice %207 {offsets = [0, 352], sizes = [32, 32], strides = [1, 1]} : vector<32x384xbf16> to vector<32x32xbf16>
    %cst_112 = arith.constant dense<0.000000e+00> : vector<32x32xf32>
    %265 = tpu.matmul %262, %263, %cst_112 {dimension_numbers = #tpu.dot_dimension_numbers<[1], [1], [0], [0], [0, 0, 1, 0], [], []>} : vector<32x32xbf16>, vector<32x32xbf16>, vector<32x32xf32> -> vector<32x32xf32>
    %266 = arith.addf %265, %0 : vector<32x32xf32>
    %cst_113 = arith.constant dense<0xFF800000> : vector<32xf32>
    %267 = vector.multi_reduction <maximumf>, %266, %cst_113 [1] : vector<32x32xf32> to vector<32xf32>
    %268 = vector.shape_cast %267 : vector<32xf32> to vector<32x1xf32>
    %269 = vector.broadcast %268 : vector<32x1xf32> to vector<32x32xf32>
    %270 = arith.subf %266, %269 : vector<32x32xf32>
    %271 = math.exp %270 : vector<32x32xf32>
    %cst_114 = arith.constant dense<0.000000e+00> : vector<32xf32>
    %272 = vector.multi_reduction <add>, %271, %cst_114 [1] : vector<32x32xf32> to vector<32xf32>
    %273 = vector.shape_cast %272 : vector<32xf32> to vector<32x1xf32>
    %274 = tpu.reciprocal %273 {approx = true} : vector<32x1xf32> -> vector<32x1xf32>
    %275 = vector.broadcast %274 : vector<32x1xf32> to vector<32x32xf32>
    %276 = arith.mulf %271, %275 : vector<32x32xf32>
    %277 = arith.truncf %276 : vector<32x32xf32> to vector<32x32xbf16>
    %cst_115 = arith.constant dense<0.000000e+00> : vector<32x32xf32>
    %278 = tpu.matmul %277, %264, %cst_115 {dimension_numbers = #tpu.dot_dimension_numbers<[1], [0], [0], [1], [0, 0, 1, 1], [], []>} : vector<32x32xbf16>, vector<32x32xbf16>, vector<32x32xf32> -> vector<32x32xf32>
    %c0_116 = arith.constant 0 : index
    %c96_117 = arith.constant 96 : index
    %279 = vector.load %arg21[%c0_116, %c96_117] : memref<32x128xf32, #tpu.memory_space<vmem>>, vector<32x32xf32>
    tpu.vector_store %arg21[%c0_116, %c96_117], %278 {strides = array<i32>} : memref<32x128xf32, #tpu.memory_space<vmem>>, vector<32x32xf32>,
    %c0_118 = arith.constant 0 : index
    %c0_119 = arith.constant 0 : index
    %280 = vector.load %arg21[%c0_118, %c0_119] : memref<32x128xf32, #tpu.memory_space<vmem>>, vector<32x128xf32>
    %281 = arith.truncf %280 : vector<32x128xf32> to vector<32x128xbf16>
    %c1_120 = arith.constant 1 : index
    %c0_121 = arith.constant 0 : index
    %c0_122 = arith.constant 0 : index
    %282 = vector.load %arg6[%c1_120, %c0_121, %c0_122] : memref<2x128x128xbf16, #tpu.memory_space<vmem>>, vector<1x128x128xbf16>
    %283 = vector.shape_cast %282 : vector<1x128x128xbf16> to vector<128x128xbf16>
    %cst_123 = arith.constant dense<0.000000e+00> : vector<32x128xf32>
    %284 = tpu.matmul %281, %283, %cst_123 {dimension_numbers = #tpu.dot_dimension_numbers<[1], [0], [0], [1], [0, 0, 1, 1], [], []>} : vector<32x128xbf16>, vector<128x128xbf16>, vector<32x128xf32> -> vector<32x128xf32>
    %c1_124 = arith.constant 1 : index
    %c0_125 = arith.constant 0 : index
    %c0_126 = arith.constant 0 : index
    %285 = vector.load %arg7[%c1_124, %c0_125, %c0_126] : memref<2x1x128xf32, #tpu.memory_space<vmem>>, vector<1x1x128xf32>
    %286 = vector.shape_cast %285 : vector<1x1x128xf32> to vector<1x128xf32>
    %287 = vector.broadcast %286 : vector<1x128xf32> to vector<32x128xf32>
    %288 = arith.addf %284, %287 : vector<32x128xf32>
    %289 = arith.addf %288, %198 : vector<32x128xf32>
    %c1_127 = arith.constant 1 : index
    %c0_128 = arith.constant 0 : index
    %c0_129 = arith.constant 0 : index
    %290 = vector.load %arg8[%c1_127, %c0_128, %c0_129] : memref<2x1x128xf32, #tpu.memory_space<vmem>>, vector<1x1x128xf32>
    %291 = vector.shape_cast %290 : vector<1x1x128xf32> to vector<1x128xf32>
    %c1_130 = arith.constant 1 : index
    %c0_131 = arith.constant 0 : index
    %c0_132 = arith.constant 0 : index
    %292 = vector.load %arg9[%c1_130, %c0_131, %c0_132] : memref<2x1x128xf32, #tpu.memory_space<vmem>>, vector<1x1x128xf32>
    %293 = vector.shape_cast %292 : vector<1x1x128xf32> to vector<1x128xf32>
    %cst_133 = arith.constant dense<0.000000e+00> : vector<32xf32>
    %294 = vector.multi_reduction <add>, %289, %cst_133 [1] : vector<32x128xf32> to vector<32xf32>
    %295 = vector.shape_cast %294 : vector<32xf32> to vector<32x1xf32>
    %cst_134 = arith.constant 1.280000e+02 : f32
    %296 = vector.broadcast %cst_134 : f32 to vector<32x1xf32>
    %297 = arith.divf %295, %296 : vector<32x1xf32>
    %298 = vector.broadcast %297 : vector<32x1xf32> to vector<32x128xf32>
    %299 = arith.subf %289, %298 : vector<32x128xf32>
    %300 = arith.mulf %299, %299 : vector<32x128xf32>
    %cst_135 = arith.constant dense<0.000000e+00> : vector<32xf32>
    %301 = vector.multi_reduction <add>, %300, %cst_135 [1] : vector<32x128xf32> to vector<32xf32>
    %302 = vector.shape_cast %301 : vector<32xf32> to vector<32x1xf32>
    %cst_136 = arith.constant 1.280000e+02 : f32
    %303 = vector.broadcast %cst_136 : f32 to vector<32x1xf32>
    %304 = arith.divf %302, %303 : vector<32x1xf32>
    %305 = vector.broadcast %297 : vector<32x1xf32> to vector<32x128xf32>
    %306 = arith.subf %289, %305 : vector<32x128xf32>
    %cst_137 = arith.constant 9.99999996E-13 : f32
    %307 = vector.broadcast %cst_137 : f32 to vector<32x1xf32>
    %308 = arith.addf %304, %307 : vector<32x1xf32>
    %309 = math.rsqrt %308 : vector<32x1xf32>
    %310 = vector.broadcast %309 : vector<32x1xf32> to vector<32x128xf32>
    %311 = vector.broadcast %291 : vector<1x128xf32> to vector<32x128xf32>
    %312 = arith.mulf %310, %311 : vector<32x128xf32>
    %313 = arith.mulf %306, %312 : vector<32x128xf32>
    %314 = vector.broadcast %293 : vector<1x128xf32> to vector<32x128xf32>
    %315 = arith.addf %313, %314 : vector<32x128xf32>
    %316 = arith.truncf %315 : vector<32x128xf32> to vector<32x128xbf16>
    %c1_138 = arith.constant 1 : index
    %c0_139 = arith.constant 0 : index
    %c0_140 = arith.constant 0 : index
    %317 = vector.load %arg10[%c1_138, %c0_139, %c0_140] : memref<2x128x512xbf16, #tpu.memory_space<vmem>>, vector<1x128x512xbf16>
    %318 = vector.shape_cast %317 : vector<1x128x512xbf16> to vector<128x512xbf16>
    %cst_141 = arith.constant dense<0.000000e+00> : vector<32x512xf32>
    %319 = tpu.matmul %316, %318, %cst_141 {dimension_numbers = #tpu.dot_dimension_numbers<[1], [0], [0], [1], [0, 0, 1, 1], [], []>} : vector<32x128xbf16>, vector<128x512xbf16>, vector<32x512xf32> -> vector<32x512xf32>
    %c1_142 = arith.constant 1 : index
    %c0_143 = arith.constant 0 : index
    %c0_144 = arith.constant 0 : index
    %320 = vector.load %arg11[%c1_142, %c0_143, %c0_144] : memref<2x1x512xf32, #tpu.memory_space<vmem>>, vector<1x1x512xf32>
    %321 = vector.shape_cast %320 : vector<1x1x512xf32> to vector<1x512xf32>
    %322 = vector.broadcast %321 : vector<1x512xf32> to vector<32x512xf32>
    %323 = arith.addf %319, %322 : vector<32x512xf32>
    %324 = arith.mulf %323, %323 : vector<32x512xf32>
    %325 = arith.mulf %323, %324 : vector<32x512xf32>
    %cst_145 = arith.constant 4.471500e-02 : f32
    %326 = vector.broadcast %cst_145 : f32 to vector<32x512xf32>
    %327 = arith.mulf %326, %325 : vector<32x512xf32>
    %328 = arith.addf %323, %327 : vector<32x512xf32>
    %cst_146 = arith.constant 0.797884583 : f32
    %329 = vector.broadcast %cst_146 : f32 to vector<32x512xf32>
    %330 = arith.mulf %329, %328 : vector<32x512xf32>
    %331 = math.tanh %330 : vector<32x512xf32>
    %cst_147 = arith.constant 1.000000e+00 : f32
    %332 = vector.broadcast %cst_147 : f32 to vector<32x512xf32>
    %333 = arith.addf %332, %331 : vector<32x512xf32>
    %cst_148 = arith.constant 5.000000e-01 : f32
    %334 = vector.broadcast %cst_148 : f32 to vector<32x512xf32>
    %335 = arith.mulf %334, %333 : vector<32x512xf32>
    %336 = arith.mulf %323, %335 : vector<32x512xf32>
    %337 = arith.truncf %336 : vector<32x512xf32> to vector<32x512xbf16>
    %c1_149 = arith.constant 1 : index
    %c0_150 = arith.constant 0 : index
    %c0_151 = arith.constant 0 : index
    %338 = vector.load %arg12[%c1_149, %c0_150, %c0_151] : memref<2x512x128xbf16, #tpu.memory_space<vmem>>, vector<1x512x128xbf16>
    %339 = vector.shape_cast %338 : vector<1x512x128xbf16> to vector<512x128xbf16>
    %cst_152 = arith.constant dense<0.000000e+00> : vector<32x128xf32>
    %340 = tpu.matmul %337, %339, %cst_152 {dimension_numbers = #tpu.dot_dimension_numbers<[1], [0], [0], [1], [0, 0, 1, 1], [], []>} : vector<32x512xbf16>, vector<512x128xbf16>, vector<32x128xf32> -> vector<32x128xf32>
    %c1_153 = arith.constant 1 : index
    %c0_154 = arith.constant 0 : index
    %c0_155 = arith.constant 0 : index
    %341 = vector.load %arg13[%c1_153, %c0_154, %c0_155] : memref<2x1x128xf32, #tpu.memory_space<vmem>>, vector<1x1x128xf32>
    %342 = vector.shape_cast %341 : vector<1x1x128xf32> to vector<1x128xf32>
    %343 = vector.broadcast %342 : vector<1x128xf32> to vector<32x128xf32>
    %344 = arith.addf %340, %343 : vector<32x128xf32>
    %345 = arith.addf %344, %315 : vector<32x128xf32>
    %c1_156 = arith.constant 1 : index
    %c0_157 = arith.constant 0 : index
    %c0_158 = arith.constant 0 : index
    %346 = vector.load %arg14[%c1_156, %c0_157, %c0_158] : memref<2x1x128xf32, #tpu.memory_space<vmem>>, vector<1x1x128xf32>
    %347 = vector.shape_cast %346 : vector<1x1x128xf32> to vector<1x128xf32>
    %c1_159 = arith.constant 1 : index
    %c0_160 = arith.constant 0 : index
    %c0_161 = arith.constant 0 : index
    %348 = vector.load %arg15[%c1_159, %c0_160, %c0_161] : memref<2x1x128xf32, #tpu.memory_space<vmem>>, vector<1x1x128xf32>
    %349 = vector.shape_cast %348 : vector<1x1x128xf32> to vector<1x128xf32>
    %cst_162 = arith.constant dense<0.000000e+00> : vector<32xf32>
    %350 = vector.multi_reduction <add>, %345, %cst_162 [1] : vector<32x128xf32> to vector<32xf32>
    %351 = vector.shape_cast %350 : vector<32xf32> to vector<32x1xf32>
    %cst_163 = arith.constant 1.280000e+02 : f32
    %352 = vector.broadcast %cst_163 : f32 to vector<32x1xf32>
    %353 = arith.divf %351, %352 : vector<32x1xf32>
    %354 = vector.broadcast %353 : vector<32x1xf32> to vector<32x128xf32>
    %355 = arith.subf %345, %354 : vector<32x128xf32>
    %356 = arith.mulf %355, %355 : vector<32x128xf32>
    %cst_164 = arith.constant dense<0.000000e+00> : vector<32xf32>
    %357 = vector.multi_reduction <add>, %356, %cst_164 [1] : vector<32x128xf32> to vector<32xf32>
    %358 = vector.shape_cast %357 : vector<32xf32> to vector<32x1xf32>
    %cst_165 = arith.constant 1.280000e+02 : f32
    %359 = vector.broadcast %cst_165 : f32 to vector<32x1xf32>
    %360 = arith.divf %358, %359 : vector<32x1xf32>
    %361 = vector.broadcast %353 : vector<32x1xf32> to vector<32x128xf32>
    %362 = arith.subf %345, %361 : vector<32x128xf32>
    %cst_166 = arith.constant 9.99999996E-13 : f32
    %363 = vector.broadcast %cst_166 : f32 to vector<32x1xf32>
    %364 = arith.addf %360, %363 : vector<32x1xf32>
    %365 = math.rsqrt %364 : vector<32x1xf32>
    %366 = vector.broadcast %365 : vector<32x1xf32> to vector<32x128xf32>
    %367 = vector.broadcast %347 : vector<1x128xf32> to vector<32x128xf32>
    %368 = arith.mulf %366, %367 : vector<32x128xf32>
    %369 = arith.mulf %362, %368 : vector<32x128xf32>
    %370 = vector.broadcast %349 : vector<1x128xf32> to vector<32x128xf32>
    %371 = arith.addf %369, %370 : vector<32x128xf32>
    %372 = vector.extract_strided_slice %371 {offsets = [0, 0], sizes = [1, 128], strides = [1, 1]} : vector<32x128xf32> to vector<1x128xf32>
    %373 = vector.extract_strided_slice %371 {offsets = [16, 0], sizes = [1, 128], strides = [1, 1]} : vector<32x128xf32> to vector<1x128xf32>
    %374 = tpu.concatenate %372, %373 in 0 : vector<1x128xf32>, vector<1x128xf32> -> vector<2x128xf32>
    %375 = arith.truncf %374 : vector<2x128xf32> to vector<2x128xbf16>
    %c0_167 = arith.constant 0 : index
    %c0_168 = arith.constant 0 : index
    %376 = vector.load %arg16[%c0_167, %c0_168] : memref<128x128xbf16, #tpu.memory_space<vmem>>, vector<128x128xbf16>
    %cst_169 = arith.constant dense<0.000000e+00> : vector<2x128xf32>
    %377 = tpu.matmul %375, %376, %cst_169 {dimension_numbers = #tpu.dot_dimension_numbers<[1], [0], [0], [1], [0, 0, 1, 1], [], []>} : vector<2x128xbf16>, vector<128x128xbf16>, vector<2x128xf32> -> vector<2x128xf32>
    %c0_170 = arith.constant 0 : index
    %c0_171 = arith.constant 0 : index
    %378 = vector.load %arg17[%c0_170, %c0_171] : memref<1x128xf32, #tpu.memory_space<vmem>>, vector<1x128xf32>
    %379 = vector.broadcast %378 : vector<1x128xf32> to vector<2x128xf32>
    %380 = arith.addf %377, %379 : vector<2x128xf32>
    %381 = math.tanh %380 : vector<2x128xf32>
    %c0_172 = arith.constant 0 : index
    %c0_173 = arith.constant 0 : index
    %382 = vector.load %arg18[%c0_172, %c0_173] : memref<1x128xf32, #tpu.memory_space<vmem>>, vector<1x128xf32>
    %383 = vector.broadcast %382 : vector<1x128xf32> to vector<2x128xf32>
    %384 = arith.mulf %381, %383 : vector<2x128xf32>
    %cst_174 = arith.constant dense<0.000000e+00> : vector<2xf32>
    %385 = vector.multi_reduction <add>, %384, %cst_174 [1] : vector<2x128xf32> to vector<2xf32>
    %386 = vector.shape_cast %385 : vector<2xf32> to vector<2x1xf32>
    %c0_175 = arith.constant 0 : index
    %c0_176 = arith.constant 0 : index
    %387 = vector.load %arg19[%c0_175, %c0_176] : memref<1x1xf32, #tpu.memory_space<vmem>>, vector<1x1xf32>
    %388 = vector.broadcast %387 : vector<1x1xf32> to vector<2x1xf32>
    %389 = arith.addf %386, %388 : vector<2x1xf32>
    %c0_177 = arith.constant 0 : index
    %c0_178 = arith.constant 0 : index
    %390 = vector.load %arg20[%c0_177, %c0_178] : memref<2x1xf32, #tpu.memory_space<vmem>>, vector<2x1xf32>
    tpu.vector_store %arg20[%c0_177, %c0_178], %389 {strides = array<i32>} : memref<2x1xf32, #tpu.memory_space<vmem>>, vector<2x1xf32>,
    return
  }
}

</mosaic_0001>

<llo_original>
// kernel: bert_base_cased_forward.1
$region0: #{bert_base_cased_forward.1}
  #allocation0 [shape = 'u32[]', space=smem, size = 0x4, offset = 0x4, fixed_abs, tag = 'smem constant byte address 0x4 - core index']
  #allocation1 [shape = 'u32[144,128]{1,0:T(1,128)}', space=vmem, size = 0x12000, scoped, tag = 'internal scratch']
  #allocation2 [shape = 'f32[32,128]{1,0:T(8,128)}', space=vmem, size = 0x4000, scoped, tag = 'scratch operand']
  #allocation3 [shape = 'f32[1,1]{1,0:T(1,128)S(1)}', space=vmem, size = 0x200, scoped, tag = 'scoped memory for bert_base_cased_forward.1']
  %s0 = inlined_call_operand.vmem [shape: f32[32,128], index: 0, kind: input, shape index: {}]
  %s1 = inlined_call_operand.vmem [shape: f32[32,32], index: 1, kind: input, shape index: {}]
  %s2 = inlined_call_operand.vmem [shape: f32[1,128], index: 2, kind: input, shape index: {}]
  %s3 = inlined_call_operand.vmem [shape: f32[1,128], index: 3, kind: input, shape index: {}]
  %s4 = inlined_call_operand.vmem [shape: bf16[2,128,384], index: 4, kind: input, shape index: {}]
  %s5 = inlined_call_operand.vmem [shape: f32[2,1,384], index: 5, kind: input, shape index: {}]
  %s6 = inlined_call_operand.vmem [shape: bf16[2,128,128], index: 6, kind: input, shape index: {}]
  %s7 = inlined_call_operand.vmem [shape: f32[2,1,128], index: 7, kind: input, shape index: {}]
  %s8 = inlined_call_operand.vmem [shape: f32[2,1,128], index: 8, kind: input, shape index: {}]
  %s9 = inlined_call_operand.vmem [shape: f32[2,1,128], index: 9, kind: input, shape index: {}]
  %s10 = inlined_call_operand.hbm [shape: bf16[2,128,512], index: 10, kind: input, shape index: {}]
  %s11 = inlined_call_operand.vmem [shape: f32[2,1,512], index: 11, kind: input, shape index: {}]
  %s12 = inlined_call_operand.hbm [shape: bf16[2,512,128], index: 12, kind: input, shape index: {}]
  %s13 = inlined_call_operand.vmem [shape: f32[2,1,128], index: 13, kind: input, shape index: {}]
  %s14 = inlined_call_operand.vmem [shape: f32[2,1,128], index: 14, kind: input, shape index: {}]
  %s15 = inlined_call_operand.vmem [shape: f32[2,1,128], index: 15, kind: input, shape index: {}]
  %s16 = inlined_call_operand.vmem [shape: bf16[128,128], index: 16, kind: input, shape index: {}]
  %s17 = inlined_call_operand.vmem [shape: f32[1,128], index: 17, kind: input, shape index: {}]
  %s18 = inlined_call_operand.vmem [shape: f32[1,128], index: 18, kind: input, shape index: {}]
  %s19 = inlined_call_operand.<no memory space> [shape: f32[1,1], index: 19, kind: input, shape index: {}]
  %s20 = inlined_call_operand.vmem [shape: f32[2,1], index: 20, kind: output, shape index: {}]
  %s21 = sld [smem:[#allocation0]]
  $region98: #{bert_base_cased_forward.1} parent=0
    _
  %s23 = ssub.s32 1, %s21
  %s24 = scalar_select 0, %s23, %s21
  %v25 = vstv %s19
  %26 = vst [vmem:[#allocation3] sm:$0x1] %v25
  $region1: #{bert_base_cased_forward.1} parent=0
    #allocation4 [shape = 'u8[262144]{0}', space=vmem, size = 0x40000, scoped, tag = 'input window, operand 10, single buffered']
    #allocation5 [shape = 's32[1]{0}', space=sflag, size = 0x4, scoped, tag = 'scoped memory for bert_base_cased_forward.1']
    #allocation6 [shape = 'u8[262144]{0}', space=vmem, size = 0x40000, scoped, tag = 'input window, operand 12, single buffered']
    #allocation7 [shape = 's32[1]{0}', space=sflag, size = 0x4, scoped, tag = 'scoped memory for bert_base_cased_forward.1']
    %27 = vsyncpa [#allocation5], 0
    %28 = vsyncpa [#allocation7], 0
    // Predicated region
    $region2: #{bert_base_cased_forward.1} parent=1 // pred_check
      _
    $region3: #{bert_base_cased_forward.1} parent=1 // pred_check_branch
      %30 = sbr.rel (0) target = $region5
    $region4: #{bert_base_cased_forward.1} parent=1 // pred_region
      _
    $region5: #{bert_base_cased_forward.1} parent=1 // pred_fallthru
      _
    // Predicated region
    $region6: #{bert_base_cased_forward.1} parent=1 // pred_check
      _
    $region7: #{bert_base_cased_forward.1} parent=1 // pred_check_branch
      %32 = sbr.rel (0) target = $region9
    $region8: #{bert_base_cased_forward.1} parent=1 // pred_region
      _
    $region9: #{bert_base_cased_forward.1} parent=1 // pred_fallthru
      _
    // Predicated region
    $region10: #{bert_base_cased_forward.1} parent=1 // pred_check
      _
    $region11: #{bert_base_cased_forward.1} parent=1 // pred_check_branch
      %34 = sbr.rel (0) target = $region13
    $region12: #{bert_base_cased_forward.1} parent=1 // pred_region
      _
    $region13: #{bert_base_cased_forward.1} parent=1 // pred_fallthru
      _
    // Predicated region
    $region14: #{bert_base_cased_forward.1} parent=1 // pred_check
      _
    $region15: #{bert_base_cased_forward.1} parent=1 // pred_check_branch
      %36 = sbr.rel (0) target = $region17
    $region16: #{bert_base_cased_forward.1} parent=1 // pred_region
      _
    $region17: #{bert_base_cased_forward.1} parent=1 // pred_fallthru
      _
    // Predicated region
    $region18: #{bert_base_cased_forward.1} parent=1 // pred_check
      _
    $region19: #{bert_base_cased_forward.1} parent=1 // pred_check_branch
      %38 = sbr.rel (0) target = $region21
    $region20: #{bert_base_cased_forward.1} parent=1 // pred_region
      _
    $region21: #{bert_base_cased_forward.1} parent=1 // pred_fallthru
      _
    // Predicated region
    $region22: #{bert_base_cased_forward.1} parent=1 // pred_check
      _
    $region23: #{bert_base_cased_forward.1} parent=1 // pred_check_branch
      %40 = sbr.rel (0) target = $region25
    $region24: #{bert_base_cased_forward.1} parent=1 // pred_region
      _
    $region25: #{bert_base_cased_forward.1} parent=1 // pred_fallthru
      _
    // Predicated region
    $region26: #{bert_base_cased_forward.1} parent=1 // pred_check
      _
    $region27: #{bert_base_cased_forward.1} parent=1 // pred_check_branch
      %42 = sbr.rel (0) target = $region29
    $region28: #{bert_base_cased_forward.1} parent=1 // pred_region
      _
    $region29: #{bert_base_cased_forward.1} parent=1 // pred_fallthru
      _
    // Predicated region
    $region30: #{bert_base_cased_forward.1} parent=1 // pred_check
      _
    $region31: #{bert_base_cased_forward.1} parent=1 // pred_check_branch
      %44 = sbr.rel (0) target = $region33
    $region32: #{bert_base_cased_forward.1} parent=1 // pred_region
      _
    $region33: #{bert_base_cased_forward.1} parent=1 // pred_fallthru
      _
    // Predicated region
    $region34: #{bert_base_cased_forward.1} parent=1 // pred_check
      _
    $region35: #{bert_base_cased_forward.1} parent=1 // pred_check_branch
      %46 = sbr.rel (0) target = $region37
    $region36: #{bert_base_cased_forward.1} parent=1 // pred_region
      _
    $region37: #{bert_base_cased_forward.1} parent=1 // pred_fallthru
      _
    // Predicated region
    $region38: #{bert_base_cased_forward.1} parent=1 // pred_check
      _
    $region39: #{bert_base_cased_forward.1} parent=1 // pred_check_branch
      %48 = sbr.rel (0) target = $region41
    $region40: #{bert_base_cased_forward.1} parent=1 // pred_region
      _
    $region41: #{bert_base_cased_forward.1} parent=1 // pred_fallthru
      _
    // Predicated region
    $region42: #{bert_base_cased_forward.1} parent=1 // pred_check
      _
    $region43: #{bert_base_cased_forward.1} parent=1 // pred_check_branch
      %50 = sbr.rel (0) target = $region45
    $region44: #{bert_base_cased_forward.1} parent=1 // pred_region
      %s52 = ssub.s32 8192, 8192
      %53 = vsyncadd [#allocation5], %s52
      %s54 = sshll.u32 [#allocation4], 4
      %s55 = int_to_ptr.vmem [resolvable:$true] %s54
      %60 = dma.hbm_to_vmem [thread:$0]  %s10, 8192, %s55, [#allocation5], 256, 256, 16
    $region45: #{bert_base_cased_forward.1} parent=1 // pred_fallthru
      _
    // Predicated region
    $region46: #{bert_base_cased_forward.1} parent=1 // pred_check
      _
    $region47: #{bert_base_cased_forward.1} parent=1 // pred_check_branch
      %62 = sbr.rel (0) target = $region49
    $region48: #{bert_base_cased_forward.1} parent=1 // pred_region
      _
    $region49: #{bert_base_cased_forward.1} parent=1 // pred_fallthru
      _
    // Predicated region
    $region50: #{bert_base_cased_forward.1} parent=1 // pred_check
      _
    $region51: #{bert_base_cased_forward.1} parent=1 // pred_check_branch
      %64 = sbr.rel (0) target = $region53
    $region52: #{bert_base_cased_forward.1} parent=1 // pred_region
      %s66 = ssub.s32 8192, 8192
      %67 = vsyncadd [#allocation7], %s66
      %s68 = sshll.u32 [#allocation6], 4
      %s69 = int_to_ptr.vmem [resolvable:$true] %s68
      %74 = dma.hbm_to_vmem [thread:$0]  %s12, 8192, %s69, [#allocation7], 64, 64, 4
    $region53: #{bert_base_cased_forward.1} parent=1 // pred_fallthru
      _
    // Predicated region
    $region54: #{bert_base_cased_forward.1} parent=1 // pred_check
      _
    $region55: #{bert_base_cased_forward.1} parent=1 // pred_check_branch
      %76 = sbr.rel (0) target = $region57
    $region56: #{bert_base_cased_forward.1} parent=1 // pred_region
      _
    $region57: #{bert_base_cased_forward.1} parent=1 // pred_fallthru
      _
    // Predicated region
    $region58: #{bert_base_cased_forward.1} parent=1 // pred_check
      _
    $region59: #{bert_base_cased_forward.1} parent=1 // pred_check_branch
      %78 = sbr.rel (0) target = $region61
    $region60: #{bert_base_cased_forward.1} parent=1 // pred_region
      _
    $region61: #{bert_base_cased_forward.1} parent=1 // pred_fallthru
      _
    // Predicated region
    $region62: #{bert_base_cased_forward.1} parent=1 // pred_check
      _
    $region63: #{bert_base_cased_forward.1} parent=1 // pred_check_branch
      %80 = sbr.rel (0) target = $region65
    $region64: #{bert_base_cased_forward.1} parent=1 // pred_region
      _
    $region65: #{bert_base_cased_forward.1} parent=1 // pred_fallthru
      _
    // Predicated region
    $region66: #{bert_base_cased_forward.1} parent=1 // pred_check
      _
    $region67: #{bert_base_cased_forward.1} parent=1 // pred_check_branch
      %82 = sbr.rel (0) target = $region69
    $region68: #{bert_base_cased_forward.1} parent=1 // pred_region
      _
    $region69: #{bert_base_cased_forward.1} parent=1 // pred_fallthru
      _
    // Predicated region
    $region70: #{bert_base_cased_forward.1} parent=1 // pred_check
      _
    $region71: #{bert_base_cased_forward.1} parent=1 // pred_check_branch
      %84 = sbr.rel (0) target = $region73
    $region72: #{bert_base_cased_forward.1} parent=1 // pred_region
      _
    $region73: #{bert_base_cased_forward.1} parent=1 // pred_fallthru
      _
    // Predicated region
    $region74: #{bert_base_cased_forward.1} parent=1 // pred_check
      _
    $region75: #{bert_base_cased_forward.1} parent=1 // pred_check_branch
      %86 = sbr.rel (0) target = $region77
    $region76: #{bert_base_cased_forward.1} parent=1 // pred_region
      _
    $region77: #{bert_base_cased_forward.1} parent=1 // pred_fallthru
      _
    // Predicated region
    $region78: #{bert_base_cased_forward.1} parent=1 // pred_check
      _
    $region79: #{bert_base_cased_forward.1} parent=1 // pred_check_branch
      %88 = sbr.rel (0) target = $region81
    $region80: #{bert_base_cased_forward.1} parent=1 // pred_region
      _
    $region81: #{bert_base_cased_forward.1} parent=1 // pred_fallthru
      _
    // Predicated region
    $region82: #{bert_base_cased_forward.1} parent=1 // pred_check
      _
    $region83: #{bert_base_cased_forward.1} parent=1 // pred_check_branch
      %90 = sbr.rel (0) target = $region85
    $region84: #{bert_base_cased_forward.1} parent=1 // pred_region
      %91 = dma.done [#allocation5], 8192
    $region85: #{bert_base_cased_forward.1} parent=1 // pred_fallthru
      _
    // Predicated region
    $region86: #{bert_base_cased_forward.1} parent=1 // pred_check
      _
    $region87: #{bert_base_cased_forward.1} parent=1 // pred_check_branch
      %93 = sbr.rel (0) target = $region89
    $region88: #{bert_base_cased_forward.1} parent=1 // pred_region
      %94 = dma.done [#allocation7], 8192
    $region89: #{bert_base_cased_forward.1} parent=1 // pred_fallthru
      _
    %v96 = vld [vmem:[%s1] sm:$0xff]
    %v97 = vld [vmem:[%s1 + $0x8] sm:$0xff]
    %v98 = vld [vmem:[%s1 + $0x10] sm:$0xff]
    %v99 = vld [vmem:[%s1 + $0x18] sm:$0xff]
    %v100 = vld [vmem:[%s0] sm:$0xff]
    %v101 = vld [vmem:[%s0 + $0x8] sm:$0xff]
    %v102 = vld [vmem:[%s0 + $0x10] sm:$0xff]
    %v103 = vld [vmem:[%s0 + $0x18] sm:$0xff]
    %v104 = vld [vmem:[%s2] sm:$0x1]
    %v105 = vld [vmem:[%s3] sm:$0x1]
    %106 = vadd.xlane.f32.xlu0 %v100
    %v107 = vpop.xlane.xlu0 %106
    %108 = vadd.xlane.f32.xlu0 %v101
    %v109 = vpop.xlane.xlu0 %108
    %110 = vadd.xlane.f32.xlu0 %v102
    %v111 = vpop.xlane.xlu0 %110
    %112 = vadd.xlane.f32.xlu0 %v103
    %v113 = vpop.xlane.xlu0 %112
    %v114 = vrcp.pop 128.0
    %v115 = vmul.f32 %v107, %v114
    %v116 = vmul.f32 %v109, %v114
    %v117 = vmul.f32 %v111, %v114
    %v118 = vmul.f32 %v113, %v114
    %v119 = vsub.f32 %v100, %v115
    %v120 = vsub.f32 %v101, %v116
    %v121 = vsub.f32 %v102, %v117
    %v122 = vsub.f32 %v103, %v118
    %v123 = vmul.f32 %v119, %v119
    %v124 = vmul.f32 %v120, %v120
    %v125 = vmul.f32 %v121, %v121
    %v126 = vmul.f32 %v122, %v122
    %127 = vadd.xlane.f32.xlu0 %v123
    %v128 = vpop.xlane.xlu0 %127
    %129 = vadd.xlane.f32.xlu0 %v124
    %v130 = vpop.xlane.xlu0 %129
    %131 = vadd.xlane.f32.xlu0 %v125
    %v132 = vpop.xlane.xlu0 %131
    %133 = vadd.xlane.f32.xlu0 %v126
    %v134 = vpop.xlane.xlu0 %133
    %v135 = vmul.f32 %v128, %v114
    %v136 = vmul.f32 %v130, %v114
    %v137 = vmul.f32 %v132, %v114
    %v138 = vmul.f32 %v134, %v114
    %v139 = vadd.f32 %v135, 1e-12
    %v140 = vadd.f32 %v136, 1e-12
    %v141 = vadd.f32 %v137, 1e-12
    %v142 = vadd.f32 %v138, 1e-12
    %v143 = vrsqrt.pop %v139
    %v144 = vrsqrt.pop %v140
    %v145 = vrsqrt.pop %v141
    %v146 = vrsqrt.pop %v142
    %v148 = vlaneseq
    %v149 = vshrl.u32 %v148, 7
    %v150 = vsub.s32 0, %v149
    %v151 = vrot.slane %v104, %v150
    %v153 = vmul.f32 %v143, %v151
    %v154 = vmul.f32 %v144, %v151
    %v155 = vmul.f32 %v145, %v151
    %v156 = vmul.f32 %v146, %v151
    %v157 = vmul.f32 %v119, %v153
    %v158 = vmul.f32 %v120, %v154
    %v159 = vmul.f32 %v121, %v155
    %v160 = vmul.f32 %v122, %v156
    %v162 = vlaneseq
    %v163 = vshrl.u32 %v162, 7
    %v164 = vsub.s32 0, %v163
    %v165 = vrot.slane %v105, %v164
    %v167 = vadd.f32 %v157, %v165
    %v168 = vadd.f32 %v158, %v165
    %v169 = vadd.f32 %v159, %v165
    %v170 = vadd.f32 %v160, %v165
    %v171 = vpack.c.bf16 %v168, %v167
    %v172 = vpack.c.bf16 %v170, %v169
    %v173 = vld [vmem:[%s4] sm:$0xff]
    %v174 = vld [vmem:[%s4 + $0x8] sm:$0xf]
    %v175 = vld [vmem:[%s4 + $0xc] sm:$0xff]
    %v176 = vld [vmem:[%s4 + $0x14] sm:$0xf]
    %v177 = vld [vmem:[%s4 + $0x18] sm:$0xff]
    %v178 = vld [vmem:[%s4 + $0x20] sm:$0xf]
    %v179 = vld [vmem:[%s4 + $0x24] sm:$0xff]
    %v180 = vld [vmem:[%s4 + $0x2c] sm:$0xf]
    %v181 = vld [vmem:[%s4 + $0x30] sm:$0xff]
    %v182 = vld [vmem:[%s4 + $0x38] sm:$0xf]
    %v183 = vld [vmem:[%s4 + $0x3c] sm:$0xff]
    %v184 = vld [vmem:[%s4 + $0x44] sm:$0xf]
    %v185 = vld [vmem:[%s4 + $0x48] sm:$0xff]
    %v186 = vld [vmem:[%s4 + $0x50] sm:$0xf]
    %v187 = vld [vmem:[%s4 + $0x54] sm:$0xff]
    %v188 = vld [vmem:[%s4 + $0x5c] sm:$0xf]
    %v189 = vld [vmem:[%s4 + $0x60] sm:$0xff]
    %v190 = vld [vmem:[%s4 + $0x68] sm:$0xf]
    %v191 = vld [vmem:[%s4 + $0x6c] sm:$0xff]
    %v192 = vld [vmem:[%s4 + $0x74] sm:$0xf]
    %v193 = vld [vmem:[%s4 + $0x78] sm:$0xff]
    %v194 = vld [vmem:[%s4 + $0x80] sm:$0xf]
    %v195 = vld [vmem:[%s4 + $0x84] sm:$0xff]
    %v196 = vld [vmem:[%s4 + $0x8c] sm:$0xf]
    %v197 = vld [vmem:[%s4 + $0x90] sm:$0xff]
    %v198 = vld [vmem:[%s4 + $0x98] sm:$0xf]
    %v199 = vld [vmem:[%s4 + $0x9c] sm:$0xff]
    %v200 = vld [vmem:[%s4 + $0xa4] sm:$0xf]
    %v201 = vld [vmem:[%s4 + $0xa8] sm:$0xff]
    %v202 = vld [vmem:[%s4 + $0xb0] sm:$0xf]
    %v203 = vld [vmem:[%s4 + $0xb4] sm:$0xff]
    %v204 = vld [vmem:[%s4 + $0xbc] sm:$0xf]
    %v205 = vld [vmem:[%s5] sm:$0x7]
    %v207 = vlaneseq
    %v208 = vshrl.u32 %v207, 7
    %v209 = vsub.s32 0, %v208
    %v210 = vrot.slane %v205, %v209
    %v211 = vlaneseq
    %v212 = vshrl.u32 %v211, 7
    %v213 = vsub.s32 1, %v212
    %v214 = vrot.slane %v205, %v213
    %v215 = vlaneseq
    %v216 = vshrl.u32 %v215, 7
    %v217 = vsub.s32 2, %v216
    %v218 = vrot.slane %v205, %v217
    %v254 = vunpack.c.l.b16 %v173
    %v255 = vunpack.c.h.b16 %v173
    %v256 = vunpack.c.l.b16 %v174
    %v257 = vunpack.c.l.b16 %v175
    %v258 = vunpack.c.h.b16 %v175
    %v259 = vunpack.c.l.b16 %v176
    %v260 = vunpack.c.l.b16 %v177
    %v261 = vunpack.c.h.b16 %v177
    %v262 = vunpack.c.l.b16 %v178
    %v263 = vunpack.c.l.b16 %v179
    %v264 = vunpack.c.h.b16 %v179
    %v265 = vunpack.c.l.b16 %v180
    %v266 = vunpack.c.l.b16 %v181
    %v267 = vunpack.c.h.b16 %v181
    %v268 = vunpack.c.l.b16 %v182
    %v269 = vunpack.c.l.b16 %v183
    %v270 = vunpack.c.h.b16 %v183
    %v271 = vunpack.c.l.b16 %v184
    %v272 = vunpack.c.l.b16 %v185
    %v273 = vunpack.c.h.b16 %v185
    %v274 = vunpack.c.l.b16 %v186
    %v275 = vunpack.c.l.b16 %v187
    %v276 = vunpack.c.h.b16 %v187
    %v277 = vunpack.c.l.b16 %v188
    %v278 = vunpack.c.l.b16 %v189
    %v279 = vunpack.c.h.b16 %v189
    %v280 = vunpack.c.l.b16 %v190
    %v281 = vunpack.c.l.b16 %v191
    %v282 = vunpack.c.h.b16 %v191
    %v283 = vunpack.c.l.b16 %v192
    %v284 = vunpack.c.l.b16 %v193
    %v285 = vunpack.c.h.b16 %v193
    %v286 = vunpack.c.l.b16 %v194
    %v287 = vunpack.c.l.b16 %v195
    %v288 = vunpack.c.h.b16 %v195
    %v289 = vunpack.c.l.b16 %v196
    %v290 = vunpack.c.l.b16 %v197
    %v291 = vunpack.c.h.b16 %v197
    %v292 = vunpack.c.l.b16 %v198
    %v293 = vunpack.c.l.b16 %v199
    %v294 = vunpack.c.h.b16 %v199
    %v295 = vunpack.c.l.b16 %v200
    %v296 = vunpack.c.l.b16 %v201
    %v297 = vunpack.c.h.b16 %v201
    %v298 = vunpack.c.l.b16 %v202
    %v299 = vunpack.c.l.b16 %v203
    %v300 = vunpack.c.h.b16 %v203
    %v301 = vunpack.c.l.b16 %v204
    %v302 = vpack.c.b16 %v257, %v254
    %v303 = vpack.c.b16 %v258, %v255
    %v304 = vpack.c.b16 %v259, %v256
    %v305 = vpack.c.b16 %v263, %v260
    %v306 = vpack.c.b16 %v264, %v261
    %v307 = vpack.c.b16 %v265, %v262
    %v308 = vpack.c.b16 %v269, %v266
    %v309 = vpack.c.b16 %v270, %v267
    %v310 = vpack.c.b16 %v271, %v268
    %v311 = vpack.c.b16 %v275, %v272
    %v312 = vpack.c.b16 %v276, %v273
    %v313 = vpack.c.b16 %v277, %v274
    %v314 = vpack.c.b16 %v281, %v278
    %v315 = vpack.c.b16 %v282, %v279
    %v316 = vpack.c.b16 %v283, %v280
    %v317 = vpack.c.b16 %v287, %v284
    %v318 = vpack.c.b16 %v288, %v285
    %v319 = vpack.c.b16 %v289, %v286
    %v320 = vpack.c.b16 %v293, %v290
    %v321 = vpack.c.b16 %v294, %v291
    %v322 = vpack.c.b16 %v295, %v292
    %v323 = vpack.c.b16 %v299, %v296
    %v324 = vpack.c.b16 %v300, %v297
    %v325 = vpack.c.b16 %v301, %v298
    %350 = vmatprep.subr.bf16.mxu0 %v303
    %351 = vmatpush1.bf16.msra.mxu0 %v302
    %352 = vmatprep.subr.bf16.mxu0 %v306
    %353 = vmatpush1.bf16.msra.mxu0 %v305
    %354 = vmatprep.subr.bf16.mxu0 %v309
    %355 = vmatpush1.bf16.msra.mxu0 %v308
    %356 = vmatprep.subr.bf16.mxu0 %v312
    %357 = vmatpush1.bf16.msra.mxu0 %v311
    %358 = vmatprep.subr.bf16.mxu0 %v315
    %359 = vmatpush1.bf16.msra.mxu0 %v314
    %360 = vmatprep.subr.bf16.mxu0 %v318
    %361 = vmatpush1.bf16.msra.mxu0 %v317
    %362 = vmatprep.subr.bf16.mxu0 %v321
    %363 = vmatpush1.bf16.msra.mxu0 %v320
    %364 = vmatprep.subr.bf16.mxu0 %v324
    %365 = vmatpush1.bf16.msra.mxu0 %v323
    %366 = vmatprep.subr.bf16.mxu0 0
    %367 = vmatpush1.bf16.msra.mxu0 0
    %368 = vmatprep.subr.bf16.mxu0 0
    %369 = vmatpush1.bf16.msra.mxu0 0
    %370 = vmatprep.subr.bf16.mxu0 0
    %371 = vmatpush1.bf16.msra.mxu0 0
    %372 = vmatprep.subr.bf16.mxu0 0
    %373 = vmatpush1.bf16.msra.mxu0 0
    %374 = vmatprep.subr.bf16.mxu0 0
    %375 = vmatpush1.bf16.msra.mxu0 0
    %376 = vmatprep.subr.bf16.mxu0 0
    %377 = vmatpush1.bf16.msra.mxu0 0
    %378 = vmatprep.subr.bf16.mxu0 0
    %379 = vmatpush1.bf16.msra.mxu0 0
    %380 = vmatprep.subr.bf16.mxu0 0
    %381 = vmatpush1.bf16.msra.mxu0 0
    %382 = vmatprep.mubr.bf16.mxu0 0
    %383 = vmatmul.mubr.bf16.gmra.mrb[0].mxu0 %v171
    %v384 = vpop.f32.mrb[0].mxu0
    %v385 = vadd.f32 %v210, %v384
    %v386 = vpop.f32.mrb[0].mxu0
    %v387 = vadd.f32 %v214, %v386
    %v388 = vpop.f32.mrb[0].mxu0
    %v389 = vadd.f32 %v210, %v388
    %v390 = vpop.f32.mrb[0].mxu0
    %v391 = vadd.f32 %v214, %v390
    %392 = vmatprep.mubr.bf16.mxu0 0
    %393 = vmatmul.mubr.bf16.gmra.mrb[0].mxu0 %v172
    %v394 = vpop.f32.mrb[0].mxu0
    %v395 = vadd.f32 %v210, %v394
    %v396 = vpop.f32.mrb[0].mxu0
    %v397 = vadd.f32 %v214, %v396
    %v398 = vpop.f32.mrb[0].mxu0
    %v399 = vadd.f32 %v210, %v398
    %v400 = vpop.f32.mrb[0].mxu0
    %v401 = vadd.f32 %v214, %v400
    %402 = vdwg.mxu0
    %403 = vmatprep.subr.bf16.mxu0 0
    %404 = vmatpush1.bf16.msra.mxu0 %v304
    %405 = vmatprep.subr.bf16.mxu0 0
    %406 = vmatpush1.bf16.msra.mxu0 %v307
    %407 = vmatprep.subr.bf16.mxu0 0
    %408 = vmatpush1.bf16.msra.mxu0 %v310
    %409 = vmatprep.subr.bf16.mxu0 0
    %410 = vmatpush1.bf16.msra.mxu0 %v313
    %411 = vmatprep.subr.bf16.mxu0 0
    %412 = vmatpush1.bf16.msra.mxu0 %v316
    %413 = vmatprep.subr.bf16.mxu0 0
    %414 = vmatpush1.bf16.msra.mxu0 %v319
    %415 = vmatprep.subr.bf16.mxu0 0
    %416 = vmatpush1.bf16.msra.mxu0 %v322
    %417 = vmatprep.subr.bf16.mxu0 0
    %418 = vmatpush1.bf16.msra.mxu0 %v325
    %419 = vmatprep.subr.bf16.mxu0 0
    %420 = vmatpush1.bf16.msra.mxu0 0
    %421 = vmatprep.subr.bf16.mxu0 0
    %422 = vmatpush1.bf16.msra.mxu0 0
    %423 = vmatprep.subr.bf16.mxu0 0
    %424 = vmatpush1.bf16.msra.mxu0 0
    %425 = vmatprep.subr.bf16.mxu0 0
    %426 = vmatpush1.bf16.msra.mxu0 0
    %427 = vmatprep.subr.bf16.mxu0 0
    %428 = vmatpush1.bf16.msra.mxu0 0
    %429 = vmatprep.subr.bf16.mxu0 0
    %430 = vmatpush1.bf16.msra.mxu0 0
    %431 = vmatprep.subr.bf16.mxu0 0
    %432 = vmatpush1.bf16.msra.mxu0 0
    %433 = vmatprep.subr.bf16.mxu0 0
    %434 = vmatpush1.bf16.msra.mxu0 0
    %435 = vmatprep.mubr.bf16.mxu0 0
    %436 = vmatmul.mubr.bf16.gmra.mrb[0].mxu0 %v171
    %v437 = vpop.f32.mrb[0].mxu0
    %v438 = vadd.f32 %v218, %v437
    %v439 = vpop.f32.mrb[0].mxu0
    %v440 = vpop.f32.mrb[0].mxu0
    %v441 = vadd.f32 %v218, %v440
    %v442 = vpop.f32.mrb[0].mxu0
    %443 = vmatprep.mubr.bf16.mxu0 0
    %444 = vmatmul.mubr.bf16.gmra.mrb[0].mxu0 %v172
    %v445 = vpop.f32.mrb[0].mxu0
    %v446 = vadd.f32 %v218, %v445
    %v447 = vpop.f32.mrb[0].mxu0
    %v448 = vpop.f32.mrb[0].mxu0
    %v449 = vadd.f32 %v218, %v448
    %v450 = vpop.f32.mrb[0].mxu0
    %451 = vdwg.mxu0
    %v452 = vpack.c.bf16 %v389, %v385
    %v453 = vpack.c.bf16 %v391, %v387
    %v454 = vpack.c.bf16 %v441, %v438
    %v455 = vpack.c.bf16 %v399, %v395
    %v456 = vpack.c.bf16 %v401, %v397
    %v457 = vpack.c.bf16 %v449, %v446
    %vm458 = vcmask 261120
    %v460 = vsel %vm458, %v452, 0
    %v463 = vsel %vm458, %v455, 0
    %v466 = vsel %vm458, %v453, 0
    %v469 = vsel %vm458, %v456, 0
    %471 = vmatprep.subr.bf16.mxu0 0
    %472 = vmatpush1.bf16.xpose.msra.mxu0 %v466
    %473 = vmatprep.subr.bf16.mxu0 0
    %474 = vmatpush1.bf16.xpose.msra.mxu0 %v469
    %475 = vmatprep.subr.bf16.mxu0 0
    %476 = vmatpush1.bf16.xpose.msra.mxu0 0
    %477 = vmatprep.subr.bf16.mxu0 0
    %478 = vmatpush1.bf16.xpose.msra.mxu0 0
    %479 = vmatprep.subr.bf16.mxu0 0
    %480 = vmatpush1.bf16.xpose.msra.mxu0 0
    %481 = vmatprep.subr.bf16.mxu0 0
    %482 = vmatpush1.bf16.xpose.msra.mxu0 0
    %483 = vmatprep.subr.bf16.mxu0 0
    %484 = vmatpush1.bf16.xpose.msra.mxu0 0
    %485 = vmatprep.subr.bf16.mxu0 0
    %486 = vmatpush1.bf16.xpose.msra.mxu0 0
    %487 = vmatprep.subr.bf16.mxu0 0
    %488 = vmatpush1.bf16.xpose.msra.mxu0 0
    %489 = vmatprep.subr.bf16.mxu0 0
    %490 = vmatpush1.bf16.xpose.msra.mxu0 0
    %491 = vmatprep.subr.bf16.mxu0 0
    %492 = vmatpush1.bf16.xpose.msra.mxu0 0
    %493 = vmatprep.subr.bf16.mxu0 0
    %494 = vmatpush1.bf16.xpose.msra.mxu0 0
    %495 = vmatprep.subr.bf16.mxu0 0
    %496 = vmatpush1.bf16.xpose.msra.mxu0 0
    %497 = vmatprep.subr.bf16.mxu0 0
    %498 = vmatpush1.bf16.xpose.msra.mxu0 0
    %499 = vmatprep.subr.bf16.mxu0 0
    %500 = vmatpush1.bf16.xpose.msra.mxu0 0
    %501 = vmatprep.subr.bf16.mxu0 0
    %502 = vmatpush1.bf16.xpose.msra.mxu0 0
    %503 = vmatprep.mubr.bf16.mxu0 0
    %504 = vmatmul.mubr.bf16.gmra.mrb[0].mxu0 %v460
    %v505 = vpop.f32.mrb[0].mxu0
    %v506 = vadd.f32 %v96, %v505
    %v507 = vpop.f32.mrb[0].mxu0
    %v508 = vpop.f32.mrb[0].mxu0
    %v509 = vadd.f32 %v97, %v508
    %v510 = vpop.f32.mrb[0].mxu0
    %511 = vmatprep.mubr.bf16.mxu0 0
    %512 = vmatmul.mubr.bf16.gmra.mrb[0].mxu0 %v463
    %v513 = vpop.f32.mrb[0].mxu0
    %v514 = vadd.f32 %v98, %v513
    %v515 = vpop.f32.mrb[0].mxu0
    %v516 = vpop.f32.mrb[0].mxu0
    %v517 = vadd.f32 %v99, %v516
    %v518 = vpop.f32.mrb[0].mxu0
    %519 = vdwg.mxu0
    %v520 = vsel %vm458, %v506, -inf
    %521 = vmax.xlane.f32.xlu0 %v520
    %v522 = vpop.xlane.xlu0 %521
    %v523 = vsel %vm458, %v509, -inf
    %524 = vmax.xlane.f32.xlu0 %v523
    %v525 = vpop.xlane.xlu0 %524
    %v526 = vsel %vm458, %v514, -inf
    %527 = vmax.xlane.f32.xlu0 %v526
    %v528 = vpop.xlane.xlu0 %527
    %v529 = vsel %vm458, %v517, -inf
    %530 = vmax.xlane.f32.xlu0 %v529
    %v531 = vpop.xlane.xlu0 %530
    %v532 = vsub.f32 %v506, %v522
    %v533 = vsub.f32 %v509, %v525
    %v534 = vsub.f32 %v514, %v528
    %v535 = vsub.f32 %v517, %v531
    %v536 = vmul.f32 %v532, 1.442695
    %v537 = vpow.pop %v536
    %v538 = vmul.f32 %v533, 1.442695
    %v539 = vpow.pop %v538
    %v540 = vmul.f32 %v534, 1.442695
    %v541 = vpow.pop %v540
    %v542 = vmul.f32 %v535, 1.442695
    %v543 = vpow.pop %v542
    %v544 = vsel %vm458, %v537, 0.0
    %545 = vadd.xlane.f32.xlu0 %v544
    %v546 = vpop.xlane.xlu0 %545
    %v547 = vsel %vm458, %v539, 0.0
    %548 = vadd.xlane.f32.xlu0 %v547
    %v549 = vpop.xlane.xlu0 %548
    %v550 = vsel %vm458, %v541, 0.0
    %551 = vadd.xlane.f32.xlu0 %v550
    %v552 = vpop.xlane.xlu0 %551
    %v553 = vsel %vm458, %v543, 0.0
    %554 = vadd.xlane.f32.xlu0 %v553
    %v555 = vpop.xlane.xlu0 %554
    %v556 = vrcp.pop %v546
    %v557 = vrcp.pop %v549
    %v558 = vrcp.pop %v552
    %v559 = vrcp.pop %v555
    %v560 = vmul.f32 %v537, %v556
    %v561 = vmul.f32 %v539, %v557
    %v562 = vmul.f32 %v541, %v558
    %v563 = vmul.f32 %v543, %v559
    %v564 = vpack.c.bf16 %v561, %v560
    %v565 = vpack.c.bf16 %v563, %v562
    %v567 = vsel %vm458, %v564, 0
    %v570 = vsel %vm458, %v565, 0
    %572 = vmatprep.subr.bf16.mxu0 0
    %573 = vmatpush1.bf16.msra.mxu0 %v454
    %574 = vmatprep.subr.bf16.mxu0 0
    %575 = vmatpush1.bf16.msra.mxu0 %v457
    %576 = vmatprep.subr.bf16.mxu0 0
    %577 = vmatpush1.bf16.msra.mxu0 0
    %578 = vmatprep.subr.bf16.mxu0 0
    %579 = vmatpush1.bf16.msra.mxu0 0
    %580 = vmatprep.subr.bf16.mxu0 0
    %581 = vmatpush1.bf16.msra.mxu0 0
    %582 = vmatprep.subr.bf16.mxu0 0
    %583 = vmatpush1.bf16.msra.mxu0 0
    %584 = vmatprep.subr.bf16.mxu0 0
    %585 = vmatpush1.bf16.msra.mxu0 0
    %586 = vmatprep.subr.bf16.mxu0 0
    %587 = vmatpush1.bf16.msra.mxu0 0
    %588 = vmatprep.subr.bf16.mxu0 0
    %589 = vmatpush1.bf16.msra.mxu0 0
    %590 = vmatprep.subr.bf16.mxu0 0
    %591 = vmatpush1.bf16.msra.mxu0 0
    %592 = vmatprep.subr.bf16.mxu0 0
    %593 = vmatpush1.bf16.msra.mxu0 0
    %594 = vmatprep.subr.bf16.mxu0 0
    %595 = vmatpush1.bf16.msra.mxu0 0
    %596 = vmatprep.subr.bf16.mxu0 0
    %597 = vmatpush1.bf16.msra.mxu0 0
    %598 = vmatprep.subr.bf16.mxu0 0
    %599 = vmatpush1.bf16.msra.mxu0 0
    %600 = vmatprep.subr.bf16.mxu0 0
    %601 = vmatpush1.bf16.msra.mxu0 0
    %602 = vmatprep.subr.bf16.mxu0 0
    %603 = vmatpush1.bf16.msra.mxu0 0
    %604 = vmatprep.mubr.bf16.mxu0 0
    %605 = vmatmul.mubr.bf16.gmra.mrb[0].mxu0 %v567
    %v606 = vpop.f32.mrb[0].mxu0
    %v607 = vadd.f32 0.0, %v606
    %v608 = vpop.f32.mrb[0].mxu0
    %v609 = vpop.f32.mrb[0].mxu0
    %v610 = vadd.f32 0.0, %v609
    %v611 = vpop.f32.mrb[0].mxu0
    %612 = vmatprep.mubr.bf16.mxu0 0
    %613 = vmatmul.mubr.bf16.gmra.mrb[0].mxu0 %v570
    %v614 = vpop.f32.mrb[0].mxu0
    %v615 = vadd.f32 0.0, %v614
    %v616 = vpop.f32.mrb[0].mxu0
    %v617 = vpop.f32.mrb[0].mxu0
    %v618 = vadd.f32 0.0, %v617
    %v619 = vpop.f32.mrb[0].mxu0
    %620 = vdwg.mxu0
    %621 = vst.msk [vmem:[#allocation2] sm:$0xff] %vm458, %v607
    %622 = vst.msk [vmem:[#allocation2 + $0x8] sm:$0xff] %vm458, %v610
    %623 = vst.msk [vmem:[#allocation2 + $0x10] sm:$0xff] %vm458, %v615
    %624 = vst.msk [vmem:[#allocation2 + $0x18] sm:$0xff] %vm458, %v618
    %627 = vrot.lane.b32.xlu0 %v452, 96
    %v628 = vpop.permute.xlu0 %627
    %629 = vrot.lane.b32.xlu0 %v455, 96
    %v630 = vpop.permute.xlu0 %629
    %633 = vrot.lane.b32.xlu0 %v453, 96
    %v634 = vpop.permute.xlu0 %633
    %635 = vrot.lane.b32.xlu0 %v456, 96
    %v636 = vpop.permute.xlu0 %635
    %v638 = vsel %vm458, %v628, 0
    %v641 = vsel %vm458, %v630, 0
    %v644 = vsel %vm458, %v634, 0
    %v647 = vsel %vm458, %v636, 0
    %649 = vmatprep.subr.bf16.mxu0 0
    %650 = vmatpush1.bf16.xpose.msra.mxu0 %v644
    %651 = vmatprep.subr.bf16.mxu0 0
    %652 = vmatpush1.bf16.xpose.msra.mxu0 %v647
    %653 = vmatprep.subr.bf16.mxu0 0
    %654 = vmatpush1.bf16.xpose.msra.mxu0 0
    %655 = vmatprep.subr.bf16.mxu0 0
    %656 = vmatpush1.bf16.xpose.msra.mxu0 0
    %657 = vmatprep.subr.bf16.mxu0 0
    %658 = vmatpush1.bf16.xpose.msra.mxu0 0
    %659 = vmatprep.subr.bf16.mxu0 0
    %660 = vmatpush1.bf16.xpose.msra.mxu0 0
    %661 = vmatprep.subr.bf16.mxu0 0
    %662 = vmatpush1.bf16.xpose.msra.mxu0 0
    %663 = vmatprep.subr.bf16.mxu0 0
    %664 = vmatpush1.bf16.xpose.msra.mxu0 0
    %665 = vmatprep.subr.bf16.mxu0 0
    %666 = vmatpush1.bf16.xpose.msra.mxu0 0
    %667 = vmatprep.subr.bf16.mxu0 0
    %668 = vmatpush1.bf16.xpose.msra.mxu0 0
    %669 = vmatprep.subr.bf16.mxu0 0
    %670 = vmatpush1.bf16.xpose.msra.mxu0 0
    %671 = vmatprep.subr.bf16.mxu0 0
    %672 = vmatpush1.bf16.xpose.msra.mxu0 0
    %673 = vmatprep.subr.bf16.mxu0 0
    %674 = vmatpush1.bf16.xpose.msra.mxu0 0
    %675 = vmatprep.subr.bf16.mxu0 0
    %676 = vmatpush1.bf16.xpose.msra.mxu0 0
    %677 = vmatprep.subr.bf16.mxu0 0
    %678 = vmatpush1.bf16.xpose.msra.mxu0 0
    %679 = vmatprep.subr.bf16.mxu0 0
    %680 = vmatpush1.bf16.xpose.msra.mxu0 0
    %681 = vmatprep.mubr.bf16.mxu0 0
    %682 = vmatmul.mubr.bf16.gmra.mrb[0].mxu0 %v638
    %v683 = vpop.f32.mrb[0].mxu0
    %v684 = vadd.f32 %v96, %v683
    %v685 = vpop.f32.mrb[0].mxu0
    %v686 = vpop.f32.mrb[0].mxu0
    %v687 = vadd.f32 %v97, %v686
    %v688 = vpop.f32.mrb[0].mxu0
    %689 = vmatprep.mubr.bf16.mxu0 0
    %690 = vmatmul.mubr.bf16.gmra.mrb[0].mxu0 %v641
    %v691 = vpop.f32.mrb[0].mxu0
    %v692 = vadd.f32 %v98, %v691
    %v693 = vpop.f32.mrb[0].mxu0
    %v694 = vpop.f32.mrb[0].mxu0
    %v695 = vadd.f32 %v99, %v694
    %v696 = vpop.f32.mrb[0].mxu0
    %697 = vdwg.mxu0
    %v698 = vsel %vm458, %v684, -inf
    %699 = vmax.xlane.f32.xlu0 %v698
    %v700 = vpop.xlane.xlu0 %699
    %v701 = vsel %vm458, %v687, -inf
    %702 = vmax.xlane.f32.xlu0 %v701
    %v703 = vpop.xlane.xlu0 %702
    %v704 = vsel %vm458, %v692, -inf
    %705 = vmax.xlane.f32.xlu0 %v704
    %v706 = vpop.xlane.xlu0 %705
    %v707 = vsel %vm458, %v695, -inf
    %708 = vmax.xlane.f32.xlu0 %v707
    %v709 = vpop.xlane.xlu0 %708
    %v710 = vsub.f32 %v684, %v700
    %v711 = vsub.f32 %v687, %v703
    %v712 = vsub.f32 %v692, %v706
    %v713 = vsub.f32 %v695, %v709
    %v714 = vmul.f32 %v710, 1.442695
    %v715 = vpow.pop %v714
    %v716 = vmul.f32 %v711, 1.442695
    %v717 = vpow.pop %v716
    %v718 = vmul.f32 %v712, 1.442695
    %v719 = vpow.pop %v718
    %v720 = vmul.f32 %v713, 1.442695
    %v721 = vpow.pop %v720
    %v722 = vsel %vm458, %v715, 0.0
    %723 = vadd.xlane.f32.xlu0 %v722
    %v724 = vpop.xlane.xlu0 %723
    %v725 = vsel %vm458, %v717, 0.0
    %726 = vadd.xlane.f32.xlu0 %v725
    %v727 = vpop.xlane.xlu0 %726
    %v728 = vsel %vm458, %v719, 0.0
    %729 = vadd.xlane.f32.xlu0 %v728
    %v730 = vpop.xlane.xlu0 %729
    %v731 = vsel %vm458, %v721, 0.0
    %732 = vadd.xlane.f32.xlu0 %v731
    %v733 = vpop.xlane.xlu0 %732
    %v734 = vrcp.pop %v724
    %v735 = vrcp.pop %v727
    %v736 = vrcp.pop %v730
    %v737 = vrcp.pop %v733
    %v738 = vmul.f32 %v715, %v734
    %v739 = vmul.f32 %v717, %v735
    %v740 = vmul.f32 %v719, %v736
    %v741 = vmul.f32 %v721, %v737
    %v742 = vpack.c.bf16 %v739, %v738
    %v743 = vpack.c.bf16 %v741, %v740
    %746 = vrot.lane.b32.xlu0 %v454, 96
    %v747 = vpop.permute.xlu0 %746
    %748 = vrot.lane.b32.xlu0 %v457, 96
    %v749 = vpop.permute.xlu0 %748
    %v753 = vsel %vm458, %v742, 0
    %v756 = vsel %vm458, %v743, 0
    %758 = vmatprep.subr.bf16.mxu0 0
    %759 = vmatpush1.bf16.msra.mxu0 %v747
    %760 = vmatprep.subr.bf16.mxu0 0
    %761 = vmatpush1.bf16.msra.mxu0 %v749
    %762 = vmatprep.subr.bf16.mxu0 0
    %763 = vmatpush1.bf16.msra.mxu0 0
    %764 = vmatprep.subr.bf16.mxu0 0
    %765 = vmatpush1.bf16.msra.mxu0 0
    %766 = vmatprep.subr.bf16.mxu0 0
    %767 = vmatpush1.bf16.msra.mxu0 0
    %768 = vmatprep.subr.bf16.mxu0 0
    %769 = vmatpush1.bf16.msra.mxu0 0
    %770 = vmatprep.subr.bf16.mxu0 0
    %771 = vmatpush1.bf16.msra.mxu0 0
    %772 = vmatprep.subr.bf16.mxu0 0
    %773 = vmatpush1.bf16.msra.mxu0 0
    %774 = vmatprep.subr.bf16.mxu0 0
    %775 = vmatpush1.bf16.msra.mxu0 0
    %776 = vmatprep.subr.bf16.mxu0 0
    %777 = vmatpush1.bf16.msra.mxu0 0
    %778 = vmatprep.subr.bf16.mxu0 0
    %779 = vmatpush1.bf16.msra.mxu0 0
    %780 = vmatprep.subr.bf16.mxu0 0
    %781 = vmatpush1.bf16.msra.mxu0 0
    %782 = vmatprep.subr.bf16.mxu0 0
    %783 = vmatpush1.bf16.msra.mxu0 0
    %784 = vmatprep.subr.bf16.mxu0 0
    %785 = vmatpush1.bf16.msra.mxu0 0
    %786 = vmatprep.subr.bf16.mxu0 0
    %787 = vmatpush1.bf16.msra.mxu0 0
    %788 = vmatprep.subr.bf16.mxu0 0
    %789 = vmatpush1.bf16.msra.mxu0 0
    %790 = vmatprep.mubr.bf16.mxu0 0
    %791 = vmatmul.mubr.bf16.gmra.mrb[0].mxu0 %v753
    %v792 = vpop.f32.mrb[0].mxu0
    %v793 = vadd.f32 0.0, %v792
    %v794 = vpop.f32.mrb[0].mxu0
    %v795 = vpop.f32.mrb[0].mxu0
    %v796 = vadd.f32 0.0, %v795
    %v797 = vpop.f32.mrb[0].mxu0
    %798 = vmatprep.mubr.bf16.mxu0 0
    %799 = vmatmul.mubr.bf16.gmra.mrb[0].mxu0 %v756
    %v800 = vpop.f32.mrb[0].mxu0
    %v801 = vadd.f32 0.0, %v800
    %v802 = vpop.f32.mrb[0].mxu0
    %v803 = vpop.f32.mrb[0].mxu0
    %v804 = vadd.f32 0.0, %v803
    %v805 = vpop.f32.mrb[0].mxu0
    %806 = vdwg.mxu0
    %811 = vrot.lane.b32.xlu0 %v793, 32
    %v812 = vpop.permute.xlu0 %811
    %813 = vrot.lane.b32.xlu0 %v796, 32
    %v814 = vpop.permute.xlu0 %813
    %815 = vrot.lane.b32.xlu0 %v801, 32
    %v816 = vpop.permute.xlu0 %815
    %817 = vrot.lane.b32.xlu0 %v804, 32
    %v818 = vpop.permute.xlu0 %817
    %vm823 = vcmask 523520
    %824 = vst.msk [vmem:[#allocation2] sm:$0xff] %vm823, %v812
    %825 = vst.msk [vmem:[#allocation2 + $0x8] sm:$0xff] %vm823, %v814
    %826 = vst.msk [vmem:[#allocation2 + $0x10] sm:$0xff] %vm823, %v816
    %827 = vst.msk [vmem:[#allocation2 + $0x18] sm:$0xff] %vm823, %v818
    %828 = vrot.lane.b32.xlu0 %v452, 64
    %v829 = vpop.permute.xlu0 %828
    %830 = vrot.lane.b32.xlu0 %v455, 64
    %v831 = vpop.permute.xlu0 %830
    %832 = vrot.lane.b32.xlu0 %v453, 64
    %v833 = vpop.permute.xlu0 %832
    %834 = vrot.lane.b32.xlu0 %v456, 64
    %v835 = vpop.permute.xlu0 %834
    %v837 = vsel %vm458, %v829, 0
    %v840 = vsel %vm458, %v831, 0
    %v843 = vsel %vm458, %v833, 0
    %v846 = vsel %vm458, %v835, 0
    %848 = vmatprep.subr.bf16.mxu0 0
    %849 = vmatpush1.bf16.xpose.msra.mxu0 %v843
    %850 = vmatprep.subr.bf16.mxu0 0
    %851 = vmatpush1.bf16.xpose.msra.mxu0 %v846
    %852 = vmatprep.subr.bf16.mxu0 0
    %853 = vmatpush1.bf16.xpose.msra.mxu0 0
    %854 = vmatprep.subr.bf16.mxu0 0
    %855 = vmatpush1.bf16.xpose.msra.mxu0 0
    %856 = vmatprep.subr.bf16.mxu0 0
    %857 = vmatpush1.bf16.xpose.msra.mxu0 0
    %858 = vmatprep.subr.bf16.mxu0 0
    %859 = vmatpush1.bf16.xpose.msra.mxu0 0
    %860 = vmatprep.subr.bf16.mxu0 0
    %861 = vmatpush1.bf16.xpose.msra.mxu0 0
    %862 = vmatprep.subr.bf16.mxu0 0
    %863 = vmatpush1.bf16.xpose.msra.mxu0 0
    %864 = vmatprep.subr.bf16.mxu0 0
    %865 = vmatpush1.bf16.xpose.msra.mxu0 0
    %866 = vmatprep.subr.bf16.mxu0 0
    %867 = vmatpush1.bf16.xpose.msra.mxu0 0
    %868 = vmatprep.subr.bf16.mxu0 0
    %869 = vmatpush1.bf16.xpose.msra.mxu0 0
    %870 = vmatprep.subr.bf16.mxu0 0
    %871 = vmatpush1.bf16.xpose.msra.mxu0 0
    %872 = vmatprep.subr.bf16.mxu0 0
    %873 = vmatpush1.bf16.xpose.msra.mxu0 0
    %874 = vmatprep.subr.bf16.mxu0 0
    %875 = vmatpush1.bf16.xpose.msra.mxu0 0
    %876 = vmatprep.subr.bf16.mxu0 0
    %877 = vmatpush1.bf16.xpose.msra.mxu0 0
    %878 = vmatprep.subr.bf16.mxu0 0
    %879 = vmatpush1.bf16.xpose.msra.mxu0 0
    %880 = vmatprep.mubr.bf16.mxu0 0
    %881 = vmatmul.mubr.bf16.gmra.mrb[0].mxu0 %v837
    %v882 = vpop.f32.mrb[0].mxu0
    %v883 = vadd.f32 %v96, %v882
    %v884 = vpop.f32.mrb[0].mxu0
    %v885 = vpop.f32.mrb[0].mxu0
    %v886 = vadd.f32 %v97, %v885
    %v887 = vpop.f32.mrb[0].mxu0
    %888 = vmatprep.mubr.bf16.mxu0 0
    %889 = vmatmul.mubr.bf16.gmra.mrb[0].mxu0 %v840
    %v890 = vpop.f32.mrb[0].mxu0
    %v891 = vadd.f32 %v98, %v890
    %v892 = vpop.f32.mrb[0].mxu0
    %v893 = vpop.f32.mrb[0].mxu0
    %v894 = vadd.f32 %v99, %v893
    %v895 = vpop.f32.mrb[0].mxu0
    %896 = vdwg.mxu0
    %v897 = vsel %vm458, %v883, -inf
    %898 = vmax.xlane.f32.xlu0 %v897
    %v899 = vpop.xlane.xlu0 %898
    %v900 = vsel %vm458, %v886, -inf
    %901 = vmax.xlane.f32.xlu0 %v900
    %v902 = vpop.xlane.xlu0 %901
    %v903 = vsel %vm458, %v891, -inf
    %904 = vmax.xlane.f32.xlu0 %v903
    %v905 = vpop.xlane.xlu0 %904
    %v906 = vsel %vm458, %v894, -inf
    %907 = vmax.xlane.f32.xlu0 %v906
    %v908 = vpop.xlane.xlu0 %907
    %v909 = vsub.f32 %v883, %v899
    %v910 = vsub.f32 %v886, %v902
    %v911 = vsub.f32 %v891, %v905
    %v912 = vsub.f32 %v894, %v908
    %v913 = vmul.f32 %v909, 1.442695
    %v914 = vpow.pop %v913
    %v915 = vmul.f32 %v910, 1.442695
    %v916 = vpow.pop %v915
    %v917 = vmul.f32 %v911, 1.442695
    %v918 = vpow.pop %v917
    %v919 = vmul.f32 %v912, 1.442695
    %v920 = vpow.pop %v919
    %v921 = vsel %vm458, %v914, 0.0
    %922 = vadd.xlane.f32.xlu0 %v921
    %v923 = vpop.xlane.xlu0 %922
    %v924 = vsel %vm458, %v916, 0.0
    %925 = vadd.xlane.f32.xlu0 %v924
    %v926 = vpop.xlane.xlu0 %925
    %v927 = vsel %vm458, %v918, 0.0
    %928 = vadd.xlane.f32.xlu0 %v927
    %v929 = vpop.xlane.xlu0 %928
    %v930 = vsel %vm458, %v920, 0.0
    %931 = vadd.xlane.f32.xlu0 %v930
    %v932 = vpop.xlane.xlu0 %931
    %v933 = vrcp.pop %v923
    %v934 = vrcp.pop %v926
    %v935 = vrcp.pop %v929
    %v936 = vrcp.pop %v932
    %v937 = vmul.f32 %v914, %v933
    %v938 = vmul.f32 %v916, %v934
    %v939 = vmul.f32 %v918, %v935
    %v940 = vmul.f32 %v920, %v936
    %v941 = vpack.c.bf16 %v938, %v937
    %v942 = vpack.c.bf16 %v940, %v939
    %943 = vrot.lane.b32.xlu0 %v454, 64
    %v944 = vpop.permute.xlu0 %943
    %945 = vrot.lane.b32.xlu0 %v457, 64
    %v946 = vpop.permute.xlu0 %945
    %v950 = vsel %vm458, %v941, 0
    %v953 = vsel %vm458, %v942, 0
    %955 = vmatprep.subr.bf16.mxu0 0
    %956 = vmatpush1.bf16.msra.mxu0 %v944
    %957 = vmatprep.subr.bf16.mxu0 0
    %958 = vmatpush1.bf16.msra.mxu0 %v946
    %959 = vmatprep.subr.bf16.mxu0 0
    %960 = vmatpush1.bf16.msra.mxu0 0
    %961 = vmatprep.subr.bf16.mxu0 0
    %962 = vmatpush1.bf16.msra.mxu0 0
    %963 = vmatprep.subr.bf16.mxu0 0
    %964 = vmatpush1.bf16.msra.mxu0 0
    %965 = vmatprep.subr.bf16.mxu0 0
    %966 = vmatpush1.bf16.msra.mxu0 0
    %967 = vmatprep.subr.bf16.mxu0 0
    %968 = vmatpush1.bf16.msra.mxu0 0
    %969 = vmatprep.subr.bf16.mxu0 0
    %970 = vmatpush1.bf16.msra.mxu0 0
    %971 = vmatprep.subr.bf16.mxu0 0
    %972 = vmatpush1.bf16.msra.mxu0 0
    %973 = vmatprep.subr.bf16.mxu0 0
    %974 = vmatpush1.bf16.msra.mxu0 0
    %975 = vmatprep.subr.bf16.mxu0 0
    %976 = vmatpush1.bf16.msra.mxu0 0
    %977 = vmatprep.subr.bf16.mxu0 0
    %978 = vmatpush1.bf16.msra.mxu0 0
    %979 = vmatprep.subr.bf16.mxu0 0
    %980 = vmatpush1.bf16.msra.mxu0 0
    %981 = vmatprep.subr.bf16.mxu0 0
    %982 = vmatpush1.bf16.msra.mxu0 0
    %983 = vmatprep.subr.bf16.mxu0 0
    %984 = vmatpush1.bf16.msra.mxu0 0
    %985 = vmatprep.subr.bf16.mxu0 0
    %986 = vmatpush1.bf16.msra.mxu0 0
    %987 = vmatprep.mubr.bf16.mxu0 0
    %988 = vmatmul.mubr.bf16.gmra.mrb[0].mxu0 %v950
    %v989 = vpop.f32.mrb[0].mxu0
    %v990 = vadd.f32 0.0, %v989
    %v991 = vpop.f32.mrb[0].mxu0
    %v992 = vpop.f32.mrb[0].mxu0
    %v993 = vadd.f32 0.0, %v992
    %v994 = vpop.f32.mrb[0].mxu0
    %995 = vmatprep.mubr.bf16.mxu0 0
    %996 = vmatmul.mubr.bf16.gmra.mrb[0].mxu0 %v953
    %v997 = vpop.f32.mrb[0].mxu0
    %v998 = vadd.f32 0.0, %v997
    %v999 = vpop.f32.mrb[0].mxu0
    %v1000 = vpop.f32.mrb[0].mxu0
    %v1001 = vadd.f32 0.0, %v1000
    %v1002 = vpop.f32.mrb[0].mxu0
    %1003 = vdwg.mxu0
    %1008 = vrot.lane.b32.xlu0 %v990, 64
    %v1009 = vpop.permute.xlu0 %1008
    %1010 = vrot.lane.b32.xlu0 %v993, 64
    %v1011 = vpop.permute.xlu0 %1010
    %1012 = vrot.lane.b32.xlu0 %v998, 64
    %v1013 = vpop.permute.xlu0 %1012
    %1014 = vrot.lane.b32.xlu0 %v1001, 64
    %v1015 = vpop.permute.xlu0 %1014
    %vm1020 = vcmask 785920
    %1021 = vst.msk [vmem:[#allocation2] sm:$0xff] %vm1020, %v1009
    %1022 = vst.msk [vmem:[#allocation2 + $0x8] sm:$0xff] %vm1020, %v1011
    %1023 = vst.msk [vmem:[#allocation2 + $0x10] sm:$0xff] %vm1020, %v1013
    %1024 = vst.msk [vmem:[#allocation2 + $0x18] sm:$0xff] %vm1020, %v1015
    %1025 = vrot.lane.b32.xlu0 %v452, 32
    %v1026 = vpop.permute.xlu0 %1025
    %1027 = vrot.lane.b32.xlu0 %v455, 32
    %v1028 = vpop.permute.xlu0 %1027
    %1029 = vrot.lane.b32.xlu0 %v453, 32
    %v1030 = vpop.permute.xlu0 %1029
    %1031 = vrot.lane.b32.xlu0 %v456, 32
    %v1032 = vpop.permute.xlu0 %1031
    %v1034 = vsel %vm458, %v1026, 0
    %v1037 = vsel %vm458, %v1028, 0
    %v1040 = vsel %vm458, %v1030, 0
    %v1043 = vsel %vm458, %v1032, 0
    %1045 = vmatprep.subr.bf16.mxu0 0
    %1046 = vmatpush1.bf16.xpose.msra.mxu0 %v1040
    %1047 = vmatprep.subr.bf16.mxu0 0
    %1048 = vmatpush1.bf16.xpose.msra.mxu0 %v1043
    %1049 = vmatprep.subr.bf16.mxu0 0
    %1050 = vmatpush1.bf16.xpose.msra.mxu0 0
    %1051 = vmatprep.subr.bf16.mxu0 0
    %1052 = vmatpush1.bf16.xpose.msra.mxu0 0
    %1053 = vmatprep.subr.bf16.mxu0 0
    %1054 = vmatpush1.bf16.xpose.msra.mxu0 0
    %1055 = vmatprep.subr.bf16.mxu0 0
    %1056 = vmatpush1.bf16.xpose.msra.mxu0 0
    %1057 = vmatprep.subr.bf16.mxu0 0
    %1058 = vmatpush1.bf16.xpose.msra.mxu0 0
    %1059 = vmatprep.subr.bf16.mxu0 0
    %1060 = vmatpush1.bf16.xpose.msra.mxu0 0
    %1061 = vmatprep.subr.bf16.mxu0 0
    %1062 = vmatpush1.bf16.xpose.msra.mxu0 0
    %1063 = vmatprep.subr.bf16.mxu0 0
    %1064 = vmatpush1.bf16.xpose.msra.mxu0 0
    %1065 = vmatprep.subr.bf16.mxu0 0
    %1066 = vmatpush1.bf16.xpose.msra.mxu0 0
    %1067 = vmatprep.subr.bf16.mxu0 0
    %1068 = vmatpush1.bf16.xpose.msra.mxu0 0
    %1069 = vmatprep.subr.bf16.mxu0 0
    %1070 = vmatpush1.bf16.xpose.msra.mxu0 0
    %1071 = vmatprep.subr.bf16.mxu0 0
    %1072 = vmatpush1.bf16.xpose.msra.mxu0 0
    %1073 = vmatprep.subr.bf16.mxu0 0
    %1074 = vmatpush1.bf16.xpose.msra.mxu0 0
    %1075 = vmatprep.subr.bf16.mxu0 0
    %1076 = vmatpush1.bf16.xpose.msra.mxu0 0
    %1077 = vmatprep.mubr.bf16.mxu0 0
    %1078 = vmatmul.mubr.bf16.gmra.mrb[0].mxu0 %v1034
    %v1079 = vpop.f32.mrb[0].mxu0
    %v1080 = vadd.f32 %v96, %v1079
    %v1081 = vpop.f32.mrb[0].mxu0
    %v1082 = vpop.f32.mrb[0].mxu0
    %v1083 = vadd.f32 %v97, %v1082
    %v1084 = vpop.f32.mrb[0].mxu0
    %1085 = vmatprep.mubr.bf16.mxu0 0
    %1086 = vmatmul.mubr.bf16.gmra.mrb[0].mxu0 %v1037
    %v1087 = vpop.f32.mrb[0].mxu0
    %v1088 = vadd.f32 %v98, %v1087
    %v1089 = vpop.f32.mrb[0].mxu0
    %v1090 = vpop.f32.mrb[0].mxu0
    %v1091 = vadd.f32 %v99, %v1090
    %v1092 = vpop.f32.mrb[0].mxu0
    %1093 = vdwg.mxu0
    %v1094 = vsel %vm458, %v1080, -inf
    %1095 = vmax.xlane.f32.xlu0 %v1094
    %v1096 = vpop.xlane.xlu0 %1095
    %v1097 = vsel %vm458, %v1083, -inf
    %1098 = vmax.xlane.f32.xlu0 %v1097
    %v1099 = vpop.xlane.xlu0 %1098
    %v1100 = vsel %vm458, %v1088, -inf
    %1101 = vmax.xlane.f32.xlu0 %v1100
    %v1102 = vpop.xlane.xlu0 %1101
    %v1103 = vsel %vm458, %v1091, -inf
    %1104 = vmax.xlane.f32.xlu0 %v1103
    %v1105 = vpop.xlane.xlu0 %1104
    %v1106 = vsub.f32 %v1080, %v1096
    %v1107 = vsub.f32 %v1083, %v1099
    %v1108 = vsub.f32 %v1088, %v1102
    %v1109 = vsub.f32 %v1091, %v1105
    %v1110 = vmul.f32 %v1106, 1.442695
    %v1111 = vpow.pop %v1110
    %v1112 = vmul.f32 %v1107, 1.442695
    %v1113 = vpow.pop %v1112
    %v1114 = vmul.f32 %v1108, 1.442695
    %v1115 = vpow.pop %v1114
    %v1116 = vmul.f32 %v1109, 1.442695
    %v1117 = vpow.pop %v1116
    %v1118 = vsel %vm458, %v1111, 0.0
    %1119 = vadd.xlane.f32.xlu0 %v1118
    %v1120 = vpop.xlane.xlu0 %1119
    %v1121 = vsel %vm458, %v1113, 0.0
    %1122 = vadd.xlane.f32.xlu0 %v1121
    %v1123 = vpop.xlane.xlu0 %1122
    %v1124 = vsel %vm458, %v1115, 0.0
    %1125 = vadd.xlane.f32.xlu0 %v1124
    %v1126 = vpop.xlane.xlu0 %1125
    %v1127 = vsel %vm458, %v1117, 0.0
    %1128 = vadd.xlane.f32.xlu0 %v1127
    %v1129 = vpop.xlane.xlu0 %1128
    %v1130 = vrcp.pop %v1120
    %v1131 = vrcp.pop %v1123
    %v1132 = vrcp.pop %v1126
    %v1133 = vrcp.pop %v1129
    %v1134 = vmul.f32 %v1111, %v1130
    %v1135 = vmul.f32 %v1113, %v1131
    %v1136 = vmul.f32 %v1115, %v1132
    %v1137 = vmul.f32 %v1117, %v1133
    %v1138 = vpack.c.bf16 %v1135, %v1134
    %v1139 = vpack.c.bf16 %v1137, %v1136
    %1140 = vrot.lane.b32.xlu0 %v454, 32
    %v1141 = vpop.permute.xlu0 %1140
    %1142 = vrot.lane.b32.xlu0 %v457, 32
    %v1143 = vpop.permute.xlu0 %1142
    %v1147 = vsel %vm458, %v1138, 0
    %v1150 = vsel %vm458, %v1139, 0
    %1152 = vmatprep.subr.bf16.mxu0 0
    %1153 = vmatpush1.bf16.msra.mxu0 %v1141
    %1154 = vmatprep.subr.bf16.mxu0 0
    %1155 = vmatpush1.bf16.msra.mxu0 %v1143
    %1156 = vmatprep.subr.bf16.mxu0 0
    %1157 = vmatpush1.bf16.msra.mxu0 0
    %1158 = vmatprep.subr.bf16.mxu0 0
    %1159 = vmatpush1.bf16.msra.mxu0 0
    %1160 = vmatprep.subr.bf16.mxu0 0
    %1161 = vmatpush1.bf16.msra.mxu0 0
    %1162 = vmatprep.subr.bf16.mxu0 0
    %1163 = vmatpush1.bf16.msra.mxu0 0
    %1164 = vmatprep.subr.bf16.mxu0 0
    %1165 = vmatpush1.bf16.msra.mxu0 0
    %1166 = vmatprep.subr.bf16.mxu0 0
    %1167 = vmatpush1.bf16.msra.mxu0 0
    %1168 = vmatprep.subr.bf16.mxu0 0
    %1169 = vmatpush1.bf16.msra.mxu0 0
    %1170 = vmatprep.subr.bf16.mxu0 0
    %1171 = vmatpush1.bf16.msra.mxu0 0
    %1172 = vmatprep.subr.bf16.mxu0 0
    %1173 = vmatpush1.bf16.msra.mxu0 0
    %1174 = vmatprep.subr.bf16.mxu0 0
    %1175 = vmatpush1.bf16.msra.mxu0 0
    %1176 = vmatprep.subr.bf16.mxu0 0
    %1177 = vmatpush1.bf16.msra.mxu0 0
    %1178 = vmatprep.subr.bf16.mxu0 0
    %1179 = vmatpush1.bf16.msra.mxu0 0
    %1180 = vmatprep.subr.bf16.mxu0 0
    %1181 = vmatpush1.bf16.msra.mxu0 0
    %1182 = vmatprep.subr.bf16.mxu0 0
    %1183 = vmatpush1.bf16.msra.mxu0 0
    %1184 = vmatprep.mubr.bf16.mxu0 0
    %1185 = vmatmul.mubr.bf16.gmra.mrb[0].mxu0 %v1147
    %v1186 = vpop.f32.mrb[0].mxu0
    %v1187 = vadd.f32 0.0, %v1186
    %v1188 = vpop.f32.mrb[0].mxu0
    %v1189 = vpop.f32.mrb[0].mxu0
    %v1190 = vadd.f32 0.0, %v1189
    %v1191 = vpop.f32.mrb[0].mxu0
    %1192 = vmatprep.mubr.bf16.mxu0 0
    %1193 = vmatmul.mubr.bf16.gmra.mrb[0].mxu0 %v1150
    %v1194 = vpop.f32.mrb[0].mxu0
    %v1195 = vadd.f32 0.0, %v1194
    %v1196 = vpop.f32.mrb[0].mxu0
    %v1197 = vpop.f32.mrb[0].mxu0
    %v1198 = vadd.f32 0.0, %v1197
    %v1199 = vpop.f32.mrb[0].mxu0
    %1200 = vdwg.mxu0
    %1205 = vrot.lane.b32.xlu0 %v1187, 96
    %v1206 = vpop.permute.xlu0 %1205
    %1207 = vrot.lane.b32.xlu0 %v1190, 96
    %v1208 = vpop.permute.xlu0 %1207
    %1209 = vrot.lane.b32.xlu0 %v1195, 96
    %v1210 = vpop.permute.xlu0 %1209
    %1211 = vrot.lane.b32.xlu0 %v1198, 96
    %v1212 = vpop.permute.xlu0 %1211
    %vm1217 = vcmask 1048320
    %1218 = vst.msk [vmem:[#allocation2] sm:$0xff] %vm1217, %v1206
    %1219 = vst.msk [vmem:[#allocation2 + $0x8] sm:$0xff] %vm1217, %v1208
    %1220 = vst.msk [vmem:[#allocation2 + $0x10] sm:$0xff] %vm1217, %v1210
    %1221 = vst.msk [vmem:[#allocation2 + $0x18] sm:$0xff] %vm1217, %v1212
    %v1222 = vld [vmem:[#allocation2] sm:$0xff]
    %v1223 = vld [vmem:[#allocation2 + $0x8] sm:$0xff]
    %v1224 = vld [vmem:[#allocation2 + $0x10] sm:$0xff]
    %v1225 = vld [vmem:[#allocation2 + $0x18] sm:$0xff]
    %v1226 = vpack.c.bf16 %v1223, %v1222
    %v1227 = vpack.c.bf16 %v1225, %v1224
    %v1228 = vld [vmem:[%s6] sm:$0xf]
    %v1229 = vld [vmem:[%s6 + $0x4] sm:$0xf]
    %v1230 = vld [vmem:[%s6 + $0x8] sm:$0xf]
    %v1231 = vld [vmem:[%s6 + $0xc] sm:$0xf]
    %v1232 = vld [vmem:[%s6 + $0x10] sm:$0xf]
    %v1233 = vld [vmem:[%s6 + $0x14] sm:$0xf]
    %v1234 = vld [vmem:[%s6 + $0x18] sm:$0xf]
    %v1235 = vld [vmem:[%s6 + $0x1c] sm:$0xf]
    %v1236 = vld [vmem:[%s6 + $0x20] sm:$0xf]
    %v1237 = vld [vmem:[%s6 + $0x24] sm:$0xf]
    %v1238 = vld [vmem:[%s6 + $0x28] sm:$0xf]
    %v1239 = vld [vmem:[%s6 + $0x2c] sm:$0xf]
    %v1240 = vld [vmem:[%s6 + $0x30] sm:$0xf]
    %v1241 = vld [vmem:[%s6 + $0x34] sm:$0xf]
    %v1242 = vld [vmem:[%s6 + $0x38] sm:$0xf]
    %v1243 = vld [vmem:[%s6 + $0x3c] sm:$0xf]
    %v1244 = vld [vmem:[%s7] sm:$0x1]
    %v1246 = vlaneseq
    %v1247 = vshrl.u32 %v1246, 7
    %v1248 = vsub.s32 0, %v1247
    %v1249 = vrot.slane %v1244, %v1248
    %v1267 = vunpack.c.l.b16 %v1228
    %v1268 = vunpack.c.l.b16 %v1229
    %v1269 = vunpack.c.l.b16 %v1230
    %v1270 = vunpack.c.l.b16 %v1231
    %v1271 = vunpack.c.l.b16 %v1232
    %v1272 = vunpack.c.l.b16 %v1233
    %v1273 = vunpack.c.l.b16 %v1234
    %v1274 = vunpack.c.l.b16 %v1235
    %v1275 = vunpack.c.l.b16 %v1236
    %v1276 = vunpack.c.l.b16 %v1237
    %v1277 = vunpack.c.l.b16 %v1238
    %v1278 = vunpack.c.l.b16 %v1239
    %v1279 = vunpack.c.l.b16 %v1240
    %v1280 = vunpack.c.l.b16 %v1241
    %v1281 = vunpack.c.l.b16 %v1242
    %v1282 = vunpack.c.l.b16 %v1243
    %v1283 = vpack.c.b16 %v1268, %v1267
    %v1284 = vpack.c.b16 %v1270, %v1269
    %v1285 = vpack.c.b16 %v1272, %v1271
    %v1286 = vpack.c.b16 %v1274, %v1273
    %v1287 = vpack.c.b16 %v1276, %v1275
    %v1288 = vpack.c.b16 %v1278, %v1277
    %v1289 = vpack.c.b16 %v1280, %v1279
    %v1290 = vpack.c.b16 %v1282, %v1281
    %1299 = vmatprep.subr.bf16.mxu0 0
    %1300 = vmatpush1.bf16.msra.mxu0 %v1283
    %1301 = vmatprep.subr.bf16.mxu0 0
    %1302 = vmatpush1.bf16.msra.mxu0 %v1284
    %1303 = vmatprep.subr.bf16.mxu0 0
    %1304 = vmatpush1.bf16.msra.mxu0 %v1285
    %1305 = vmatprep.subr.bf16.mxu0 0
    %1306 = vmatpush1.bf16.msra.mxu0 %v1286
    %1307 = vmatprep.subr.bf16.mxu0 0
    %1308 = vmatpush1.bf16.msra.mxu0 %v1287
    %1309 = vmatprep.subr.bf16.mxu0 0
    %1310 = vmatpush1.bf16.msra.mxu0 %v1288
    %1311 = vmatprep.subr.bf16.mxu0 0
    %1312 = vmatpush1.bf16.msra.mxu0 %v1289
    %1313 = vmatprep.subr.bf16.mxu0 0
    %1314 = vmatpush1.bf16.msra.mxu0 %v1290
    %1315 = vmatprep.subr.bf16.mxu0 0
    %1316 = vmatpush1.bf16.msra.mxu0 0
    %1317 = vmatprep.subr.bf16.mxu0 0
    %1318 = vmatpush1.bf16.msra.mxu0 0
    %1319 = vmatprep.subr.bf16.mxu0 0
    %1320 = vmatpush1.bf16.msra.mxu0 0
    %1321 = vmatprep.subr.bf16.mxu0 0
    %1322 = vmatpush1.bf16.msra.mxu0 0
    %1323 = vmatprep.subr.bf16.mxu0 0
    %1324 = vmatpush1.bf16.msra.mxu0 0
    %1325 = vmatprep.subr.bf16.mxu0 0
    %1326 = vmatpush1.bf16.msra.mxu0 0
    %1327 = vmatprep.subr.bf16.mxu0 0
    %1328 = vmatpush1.bf16.msra.mxu0 0
    %1329 = vmatprep.subr.bf16.mxu0 0
    %1330 = vmatpush1.bf16.msra.mxu0 0
    %1331 = vmatprep.mubr.bf16.mxu0 0
    %1332 = vmatmul.mubr.bf16.gmra.mrb[0].mxu0 %v1226
    %v1333 = vpop.f32.mrb[0].mxu0
    %v1334 = vadd.f32 %v1249, %v1333
    %v1335 = vpop.f32.mrb[0].mxu0
    %v1336 = vpop.f32.mrb[0].mxu0
    %v1337 = vadd.f32 %v1249, %v1336
    %v1338 = vpop.f32.mrb[0].mxu0
    %1339 = vmatprep.mubr.bf16.mxu0 0
    %1340 = vmatmul.mubr.bf16.gmra.mrb[0].mxu0 %v1227
    %v1341 = vpop.f32.mrb[0].mxu0
    %v1342 = vadd.f32 %v1249, %v1341
    %v1343 = vpop.f32.mrb[0].mxu0
    %v1344 = vpop.f32.mrb[0].mxu0
    %v1345 = vadd.f32 %v1249, %v1344
    %v1346 = vpop.f32.mrb[0].mxu0
    %1347 = vdwg.mxu0
    %v1348 = vadd.f32 %v1334, %v167
    %v1349 = vadd.f32 %v1337, %v168
    %v1350 = vadd.f32 %v1342, %v169
    %v1351 = vadd.f32 %v1345, %v170
    %v1352 = vld [vmem:[%s8] sm:$0x1]
    %v1353 = vld [vmem:[%s9] sm:$0x1]
    %1354 = vadd.xlane.f32.xlu0 %v1348
    %v1355 = vpop.xlane.xlu0 %1354
    %1356 = vadd.xlane.f32.xlu0 %v1349
    %v1357 = vpop.xlane.xlu0 %1356
    %1358 = vadd.xlane.f32.xlu0 %v1350
    %v1359 = vpop.xlane.xlu0 %1358
    %1360 = vadd.xlane.f32.xlu0 %v1351
    %v1361 = vpop.xlane.xlu0 %1360
    %v1362 = vmul.f32 %v1355, %v114
    %v1363 = vmul.f32 %v1357, %v114
    %v1364 = vmul.f32 %v1359, %v114
    %v1365 = vmul.f32 %v1361, %v114
    %v1366 = vsub.f32 %v1348, %v1362
    %v1367 = vsub.f32 %v1349, %v1363
    %v1368 = vsub.f32 %v1350, %v1364
    %v1369 = vsub.f32 %v1351, %v1365
    %v1370 = vmul.f32 %v1366, %v1366
    %v1371 = vmul.f32 %v1367, %v1367
    %v1372 = vmul.f32 %v1368, %v1368
    %v1373 = vmul.f32 %v1369, %v1369
    %1374 = vadd.xlane.f32.xlu0 %v1370
    %v1375 = vpop.xlane.xlu0 %1374
    %1376 = vadd.xlane.f32.xlu0 %v1371
    %v1377 = vpop.xlane.xlu0 %1376
    %1378 = vadd.xlane.f32.xlu0 %v1372
    %v1379 = vpop.xlane.xlu0 %1378
    %1380 = vadd.xlane.f32.xlu0 %v1373
    %v1381 = vpop.xlane.xlu0 %1380
    %v1382 = vmul.f32 %v1375, %v114
    %v1383 = vmul.f32 %v1377, %v114
    %v1384 = vmul.f32 %v1379, %v114
    %v1385 = vmul.f32 %v1381, %v114
    %v1386 = vadd.f32 %v1382, 1e-12
    %v1387 = vadd.f32 %v1383, 1e-12
    %v1388 = vadd.f32 %v1384, 1e-12
    %v1389 = vadd.f32 %v1385, 1e-12
    %v1390 = vrsqrt.pop %v1386
    %v1391 = vrsqrt.pop %v1387
    %v1392 = vrsqrt.pop %v1388
    %v1393 = vrsqrt.pop %v1389
    %v1395 = vlaneseq
    %v1396 = vshrl.u32 %v1395, 7
    %v1397 = vsub.s32 0, %v1396
    %v1398 = vrot.slane %v1352, %v1397
    %v1400 = vmul.f32 %v1390, %v1398
    %v1401 = vmul.f32 %v1391, %v1398
    %v1402 = vmul.f32 %v1392, %v1398
    %v1403 = vmul.f32 %v1393, %v1398
    %v1404 = vmul.f32 %v1366, %v1400
    %v1405 = vmul.f32 %v1367, %v1401
    %v1406 = vmul.f32 %v1368, %v1402
    %v1407 = vmul.f32 %v1369, %v1403
    %v1409 = vlaneseq
    %v1410 = vshrl.u32 %v1409, 7
    %v1411 = vsub.s32 0, %v1410
    %v1412 = vrot.slane %v1353, %v1411
    %v1414 = vadd.f32 %v1404, %v1412
    %v1415 = vadd.f32 %v1405, %v1412
    %v1416 = vadd.f32 %v1406, %v1412
    %v1417 = vadd.f32 %v1407, %v1412
    %v1418 = vpack.c.bf16 %v1415, %v1414
    %v1419 = vpack.c.bf16 %v1417, %v1416
    %v1420 = vld [vmem:[#allocation4] sm:$0xff]
    %v1421 = vld [vmem:[#allocation4 + $0x8] sm:$0xff]
    %v1422 = vld [vmem:[#allocation4 + $0x10] sm:$0xff]
    %v1423 = vld [vmem:[#allocation4 + $0x18] sm:$0xff]
    %v1424 = vld [vmem:[#allocation4 + $0x20] sm:$0xff]
    %v1425 = vld [vmem:[#allocation4 + $0x28] sm:$0xff]
    %v1426 = vld [vmem:[#allocation4 + $0x30] sm:$0xff]
    %v1427 = vld [vmem:[#allocation4 + $0x38] sm:$0xff]
    %v1428 = vld [vmem:[#allocation4 + $0x40] sm:$0xff]
    %v1429 = vld [vmem:[#allocation4 + $0x48] sm:$0xff]
    %v1430 = vld [vmem:[#allocation4 + $0x50] sm:$0xff]
    %v1431 = vld [vmem:[#allocation4 + $0x58] sm:$0xff]
    %v1432 = vld [vmem:[#allocation4 + $0x60] sm:$0xff]
    %v1433 = vld [vmem:[#allocation4 + $0x68] sm:$0xff]
    %v1434 = vld [vmem:[#allocation4 + $0x70] sm:$0xff]
    %v1435 = vld [vmem:[#allocation4 + $0x78] sm:$0xff]
    %v1436 = vld [vmem:[#allocation4 + $0x80] sm:$0xff]
    %v1437 = vld [vmem:[#allocation4 + $0x88] sm:$0xff]
    %v1438 = vld [vmem:[#allocation4 + $0x90] sm:$0xff]
    %v1439 = vld [vmem:[#allocation4 + $0x98] sm:$0xff]
    %v1440 = vld [vmem:[#allocation4 + $0xa0] sm:$0xff]
    %v1441 = vld [vmem:[#allocation4 + $0xa8] sm:$0xff]
    %v1442 = vld [vmem:[#allocation4 + $0xb0] sm:$0xff]
    %v1443 = vld [vmem:[#allocation4 + $0xb8] sm:$0xff]
    %v1444 = vld [vmem:[#allocation4 + $0xc0] sm:$0xff]
    %v1445 = vld [vmem:[#allocation4 + $0xc8] sm:$0xff]
    %v1446 = vld [vmem:[#allocation4 + $0xd0] sm:$0xff]
    %v1447 = vld [vmem:[#allocation4 + $0xd8] sm:$0xff]
    %v1448 = vld [vmem:[#allocation4 + $0xe0] sm:$0xff]
    %v1449 = vld [vmem:[#allocation4 + $0xe8] sm:$0xff]
    %v1450 = vld [vmem:[#allocation4 + $0xf0] sm:$0xff]
    %v1451 = vld [vmem:[#allocation4 + $0xf8] sm:$0xff]
    %v1452 = vld [vmem:[%s11] sm:$0xf]
    %v1454 = vlaneseq
    %v1455 = vshrl.u32 %v1454, 7
    %v1456 = vsub.s32 0, %v1455
    %v1457 = vrot.slane %v1452, %v1456
    %v1458 = vlaneseq
    %v1459 = vshrl.u32 %v1458, 7
    %v1460 = vsub.s32 1, %v1459
    %v1461 = vrot.slane %v1452, %v1460
    %v1462 = vlaneseq
    %v1463 = vshrl.u32 %v1462, 7
    %v1464 = vsub.s32 2, %v1463
    %v1465 = vrot.slane %v1452, %v1464
    %v1466 = vlaneseq
    %v1467 = vshrl.u32 %v1466, 7
    %v1468 = vsub.s32 3, %v1467
    %v1469 = vrot.slane %v1452, %v1468
    %v1506 = vunpack.c.l.b16 %v1420
    %v1507 = vunpack.c.h.b16 %v1420
    %v1508 = vunpack.c.l.b16 %v1421
    %v1509 = vunpack.c.h.b16 %v1421
    %v1510 = vunpack.c.l.b16 %v1422
    %v1511 = vunpack.c.h.b16 %v1422
    %v1512 = vunpack.c.l.b16 %v1423
    %v1513 = vunpack.c.h.b16 %v1423
    %v1514 = vunpack.c.l.b16 %v1424
    %v1515 = vunpack.c.h.b16 %v1424
    %v1516 = vunpack.c.l.b16 %v1425
    %v1517 = vunpack.c.h.b16 %v1425
    %v1518 = vunpack.c.l.b16 %v1426
    %v1519 = vunpack.c.h.b16 %v1426
    %v1520 = vunpack.c.l.b16 %v1427
    %v1521 = vunpack.c.h.b16 %v1427
    %v1522 = vunpack.c.l.b16 %v1428
    %v1523 = vunpack.c.h.b16 %v1428
    %v1524 = vunpack.c.l.b16 %v1429
    %v1525 = vunpack.c.h.b16 %v1429
    %v1526 = vunpack.c.l.b16 %v1430
    %v1527 = vunpack.c.h.b16 %v1430
    %v1528 = vunpack.c.l.b16 %v1431
    %v1529 = vunpack.c.h.b16 %v1431
    %v1530 = vunpack.c.l.b16 %v1432
    %v1531 = vunpack.c.h.b16 %v1432
    %v1532 = vunpack.c.l.b16 %v1433
    %v1533 = vunpack.c.h.b16 %v1433
    %v1534 = vunpack.c.l.b16 %v1434
    %v1535 = vunpack.c.h.b16 %v1434
    %v1536 = vunpack.c.l.b16 %v1435
    %v1537 = vunpack.c.h.b16 %v1435
    %v1538 = vunpack.c.l.b16 %v1436
    %v1539 = vunpack.c.h.b16 %v1436
    %v1540 = vunpack.c.l.b16 %v1437
    %v1541 = vunpack.c.h.b16 %v1437
    %v1542 = vunpack.c.l.b16 %v1438
    %v1543 = vunpack.c.h.b16 %v1438
    %v1544 = vunpack.c.l.b16 %v1439
    %v1545 = vunpack.c.h.b16 %v1439
    %v1546 = vunpack.c.l.b16 %v1440
    %v1547 = vunpack.c.h.b16 %v1440
    %v1548 = vunpack.c.l.b16 %v1441
    %v1549 = vunpack.c.h.b16 %v1441
    %v1550 = vunpack.c.l.b16 %v1442
    %v1551 = vunpack.c.h.b16 %v1442
    %v1552 = vunpack.c.l.b16 %v1443
    %v1553 = vunpack.c.h.b16 %v1443
    %v1554 = vunpack.c.l.b16 %v1444
    %v1555 = vunpack.c.h.b16 %v1444
    %v1556 = vunpack.c.l.b16 %v1445
    %v1557 = vunpack.c.h.b16 %v1445
    %v1558 = vunpack.c.l.b16 %v1446
    %v1559 = vunpack.c.h.b16 %v1446
    %v1560 = vunpack.c.l.b16 %v1447
    %v1561 = vunpack.c.h.b16 %v1447
    %v1562 = vunpack.c.l.b16 %v1448
    %v1563 = vunpack.c.h.b16 %v1448
    %v1564 = vunpack.c.l.b16 %v1449
    %v1565 = vunpack.c.h.b16 %v1449
    %v1566 = vunpack.c.l.b16 %v1450
    %v1567 = vunpack.c.h.b16 %v1450
    %v1568 = vunpack.c.l.b16 %v1451
    %v1569 = vunpack.c.h.b16 %v1451
    %v1570 = vpack.c.b16 %v1510, %v1506
    %v1571 = vpack.c.b16 %v1511, %v1507
    %v1572 = vpack.c.b16 %v1512, %v1508
    %v1573 = vpack.c.b16 %v1513, %v1509
    %v1574 = vpack.c.b16 %v1518, %v1514
    %v1575 = vpack.c.b16 %v1519, %v1515
    %v1576 = vpack.c.b16 %v1520, %v1516
    %v1577 = vpack.c.b16 %v1521, %v1517
    %v1578 = vpack.c.b16 %v1526, %v1522
    %v1579 = vpack.c.b16 %v1527, %v1523
    %v1580 = vpack.c.b16 %v1528, %v1524
    %v1581 = vpack.c.b16 %v1529, %v1525
    %v1582 = vpack.c.b16 %v1534, %v1530
    %v1583 = vpack.c.b16 %v1535, %v1531
    %v1584 = vpack.c.b16 %v1536, %v1532
    %v1585 = vpack.c.b16 %v1537, %v1533
    %v1586 = vpack.c.b16 %v1542, %v1538
    %v1587 = vpack.c.b16 %v1543, %v1539
    %v1588 = vpack.c.b16 %v1544, %v1540
    %v1589 = vpack.c.b16 %v1545, %v1541
    %v1590 = vpack.c.b16 %v1550, %v1546
    %v1591 = vpack.c.b16 %v1551, %v1547
    %v1592 = vpack.c.b16 %v1552, %v1548
    %v1593 = vpack.c.b16 %v1553, %v1549
    %v1594 = vpack.c.b16 %v1558, %v1554
    %v1595 = vpack.c.b16 %v1559, %v1555
    %v1596 = vpack.c.b16 %v1560, %v1556
    %v1597 = vpack.c.b16 %v1561, %v1557
    %v1598 = vpack.c.b16 %v1566, %v1562
    %v1599 = vpack.c.b16 %v1567, %v1563
    %v1600 = vpack.c.b16 %v1568, %v1564
    %v1601 = vpack.c.b16 %v1569, %v1565
    %1634 = vmatprep.subr.bf16.mxu0 %v1571
    %1635 = vmatpush1.bf16.msra.mxu0 %v1570
    %1636 = vmatprep.subr.bf16.mxu0 %v1575
    %1637 = vmatpush1.bf16.msra.mxu0 %v1574
    %1638 = vmatprep.subr.bf16.mxu0 %v1579
    %1639 = vmatpush1.bf16.msra.mxu0 %v1578
    %1640 = vmatprep.subr.bf16.mxu0 %v1583
    %1641 = vmatpush1.bf16.msra.mxu0 %v1582
    %1642 = vmatprep.subr.bf16.mxu0 %v1587
    %1643 = vmatpush1.bf16.msra.mxu0 %v1586
    %1644 = vmatprep.subr.bf16.mxu0 %v1591
    %1645 = vmatpush1.bf16.msra.mxu0 %v1590
    %1646 = vmatprep.subr.bf16.mxu0 %v1595
    %1647 = vmatpush1.bf16.msra.mxu0 %v1594
    %1648 = vmatprep.subr.bf16.mxu0 %v1599
    %1649 = vmatpush1.bf16.msra.mxu0 %v1598
    %1650 = vmatprep.subr.bf16.mxu0 0
    %1651 = vmatpush1.bf16.msra.mxu0 0
    %1652 = vmatprep.subr.bf16.mxu0 0
    %1653 = vmatpush1.bf16.msra.mxu0 0
    %1654 = vmatprep.subr.bf16.mxu0 0
    %1655 = vmatpush1.bf16.msra.mxu0 0
    %1656 = vmatprep.subr.bf16.mxu0 0
    %1657 = vmatpush1.bf16.msra.mxu0 0
    %1658 = vmatprep.subr.bf16.mxu0 0
    %1659 = vmatpush1.bf16.msra.mxu0 0
    %1660 = vmatprep.subr.bf16.mxu0 0
    %1661 = vmatpush1.bf16.msra.mxu0 0
    %1662 = vmatprep.subr.bf16.mxu0 0
    %1663 = vmatpush1.bf16.msra.mxu0 0
    %1664 = vmatprep.subr.bf16.mxu0 0
    %1665 = vmatpush1.bf16.msra.mxu0 0
    %1666 = vmatprep.mubr.bf16.mxu0 0
    %1667 = vmatmul.mubr.bf16.gmra.mrb[0].mxu0 %v1418
    %v1668 = vpop.f32.mrb[0].mxu0
    %v1669 = vadd.f32 %v1457, %v1668
    %v1670 = vpop.f32.mrb[0].mxu0
    %v1671 = vadd.f32 %v1461, %v1670
    %v1672 = vpop.f32.mrb[0].mxu0
    %v1673 = vadd.f32 %v1457, %v1672
    %v1674 = vpop.f32.mrb[0].mxu0
    %v1675 = vadd.f32 %v1461, %v1674
    %1676 = vmatprep.mubr.bf16.mxu0 0
    %1677 = vmatmul.mubr.bf16.gmra.mrb[0].mxu0 %v1419
    %v1678 = vpop.f32.mrb[0].mxu0
    %v1679 = vadd.f32 %v1457, %v1678
    %v1680 = vpop.f32.mrb[0].mxu0
    %v1681 = vadd.f32 %v1461, %v1680
    %v1682 = vpop.f32.mrb[0].mxu0
    %v1683 = vadd.f32 %v1457, %v1682
    %v1684 = vpop.f32.mrb[0].mxu0
    %v1685 = vadd.f32 %v1461, %v1684
    %1686 = vdwg.mxu0
    %1687 = vmatprep.subr.bf16.mxu0 %v1573
    %1688 = vmatpush1.bf16.msra.mxu0 %v1572
    %1689 = vmatprep.subr.bf16.mxu0 %v1577
    %1690 = vmatpush1.bf16.msra.mxu0 %v1576
    %1691 = vmatprep.subr.bf16.mxu0 %v1581
    %1692 = vmatpush1.bf16.msra.mxu0 %v1580
    %1693 = vmatprep.subr.bf16.mxu0 %v1585
    %1694 = vmatpush1.bf16.msra.mxu0 %v1584
    %1695 = vmatprep.subr.bf16.mxu0 %v1589
    %1696 = vmatpush1.bf16.msra.mxu0 %v1588
    %1697 = vmatprep.subr.bf16.mxu0 %v1593
    %1698 = vmatpush1.bf16.msra.mxu0 %v1592
    %1699 = vmatprep.subr.bf16.mxu0 %v1597
    %1700 = vmatpush1.bf16.msra.mxu0 %v1596
    %1701 = vmatprep.subr.bf16.mxu0 %v1601
    %1702 = vmatpush1.bf16.msra.mxu0 %v1600
    %1703 = vmatprep.subr.bf16.mxu0 0
    %1704 = vmatpush1.bf16.msra.mxu0 0
    %1705 = vmatprep.subr.bf16.mxu0 0
    %1706 = vmatpush1.bf16.msra.mxu0 0
    %1707 = vmatprep.subr.bf16.mxu0 0
    %1708 = vmatpush1.bf16.msra.mxu0 0
    %1709 = vmatprep.subr.bf16.mxu0 0
    %1710 = vmatpush1.bf16.msra.mxu0 0
    %1711 = vmatprep.subr.bf16.mxu0 0
    %1712 = vmatpush1.bf16.msra.mxu0 0
    %1713 = vmatprep.subr.bf16.mxu0 0
    %1714 = vmatpush1.bf16.msra.mxu0 0
    %1715 = vmatprep.subr.bf16.mxu0 0
    %1716 = vmatpush1.bf16.msra.mxu0 0
    %1717 = vmatprep.subr.bf16.mxu0 0
    %1718 = vmatpush1.bf16.msra.mxu0 0
    %1719 = vmatprep.mubr.bf16.mxu0 0
    %1720 = vmatmul.mubr.bf16.gmra.mrb[0].mxu0 %v1418
    %v1721 = vpop.f32.mrb[0].mxu0
    %v1722 = vadd.f32 %v1465, %v1721
    %v1723 = vpop.f32.mrb[0].mxu0
    %v1724 = vadd.f32 %v1469, %v1723
    %v1725 = vpop.f32.mrb[0].mxu0
    %v1726 = vadd.f32 %v1465, %v1725
    %v1727 = vpop.f32.mrb[0].mxu0
    %v1728 = vadd.f32 %v1469, %v1727
    %1729 = vmatprep.mubr.bf16.mxu0 0
    %1730 = vmatmul.mubr.bf16.gmra.mrb[0].mxu0 %v1419
    %v1731 = vpop.f32.mrb[0].mxu0
    %v1732 = vadd.f32 %v1465, %v1731
    %v1733 = vpop.f32.mrb[0].mxu0
    %v1734 = vadd.f32 %v1469, %v1733
    %v1735 = vpop.f32.mrb[0].mxu0
    %v1736 = vadd.f32 %v1465, %v1735
    %v1737 = vpop.f32.mrb[0].mxu0
    %v1738 = vadd.f32 %v1469, %v1737
    %1739 = vdwg.mxu0
    %v1740 = vmul.f32 %v1669, %v1669
    %v1741 = vmul.f32 %v1671, %v1671
    %v1742 = vmul.f32 %v1722, %v1722
    %v1743 = vmul.f32 %v1724, %v1724
    %v1744 = vmul.f32 %v1673, %v1673
    %v1745 = vmul.f32 %v1675, %v1675
    %v1746 = vmul.f32 %v1726, %v1726
    %v1747 = vmul.f32 %v1728, %v1728
    %v1748 = vmul.f32 %v1679, %v1679
    %v1749 = vmul.f32 %v1681, %v1681
    %v1750 = vmul.f32 %v1732, %v1732
    %v1751 = vmul.f32 %v1734, %v1734
    %v1752 = vmul.f32 %v1683, %v1683
    %v1753 = vmul.f32 %v1685, %v1685
    %v1754 = vmul.f32 %v1736, %v1736
    %v1755 = vmul.f32 %v1738, %v1738
    %v1756 = vmul.f32 %v1669, %v1740
    %v1757 = vmul.f32 %v1671, %v1741
    %v1758 = vmul.f32 %v1722, %v1742
    %v1759 = vmul.f32 %v1724, %v1743
    %v1760 = vmul.f32 %v1673, %v1744
    %v1761 = vmul.f32 %v1675, %v1745
    %v1762 = vmul.f32 %v1726, %v1746
    %v1763 = vmul.f32 %v1728, %v1747
    %v1764 = vmul.f32 %v1679, %v1748
    %v1765 = vmul.f32 %v1681, %v1749
    %v1766 = vmul.f32 %v1732, %v1750
    %v1767 = vmul.f32 %v1734, %v1751
    %v1768 = vmul.f32 %v1683, %v1752
    %v1769 = vmul.f32 %v1685, %v1753
    %v1770 = vmul.f32 %v1736, %v1754
    %v1771 = vmul.f32 %v1738, %v1755
    %v1772 = vmul.f32 %v1756, 0.044715
    %v1773 = vmul.f32 %v1757, 0.044715
    %v1774 = vmul.f32 %v1758, 0.044715
    %v1775 = vmul.f32 %v1759, 0.044715
    %v1776 = vmul.f32 %v1760, 0.044715
    %v1777 = vmul.f32 %v1761, 0.044715
    %v1778 = vmul.f32 %v1762, 0.044715
    %v1779 = vmul.f32 %v1763, 0.044715
    %v1780 = vmul.f32 %v1764, 0.044715
    %v1781 = vmul.f32 %v1765, 0.044715
    %v1782 = vmul.f32 %v1766, 0.044715
    %v1783 = vmul.f32 %v1767, 0.044715
    %v1784 = vmul.f32 %v1768, 0.044715
    %v1785 = vmul.f32 %v1769, 0.044715
    %v1786 = vmul.f32 %v1770, 0.044715
    %v1787 = vmul.f32 %v1771, 0.044715
    %v1788 = vadd.f32 %v1669, %v1772
    %v1789 = vadd.f32 %v1671, %v1773
    %v1790 = vadd.f32 %v1722, %v1774
    %v1791 = vadd.f32 %v1724, %v1775
    %v1792 = vadd.f32 %v1673, %v1776
    %v1793 = vadd.f32 %v1675, %v1777
    %v1794 = vadd.f32 %v1726, %v1778
    %v1795 = vadd.f32 %v1728, %v1779
    %v1796 = vadd.f32 %v1679, %v1780
    %v1797 = vadd.f32 %v1681, %v1781
    %v1798 = vadd.f32 %v1732, %v1782
    %v1799 = vadd.f32 %v1734, %v1783
    %v1800 = vadd.f32 %v1683, %v1784
    %v1801 = vadd.f32 %v1685, %v1785
    %v1802 = vadd.f32 %v1736, %v1786
    %v1803 = vadd.f32 %v1738, %v1787
    %v1804 = vmul.f32 %v1788, 0.7978846
    %v1805 = vmul.f32 %v1789, 0.7978846
    %v1806 = vmul.f32 %v1790, 0.7978846
    %v1807 = vmul.f32 %v1791, 0.7978846
    %v1808 = vmul.f32 %v1792, 0.7978846
    %v1809 = vmul.f32 %v1793, 0.7978846
    %v1810 = vmul.f32 %v1794, 0.7978846
    %v1811 = vmul.f32 %v1795, 0.7978846
    %v1812 = vmul.f32 %v1796, 0.7978846
    %v1813 = vmul.f32 %v1797, 0.7978846
    %v1814 = vmul.f32 %v1798, 0.7978846
    %v1815 = vmul.f32 %v1799, 0.7978846
    %v1816 = vmul.f32 %v1800, 0.7978846
    %v1817 = vmul.f32 %v1801, 0.7978846
    %v1818 = vmul.f32 %v1802, 0.7978846
    %v1819 = vmul.f32 %v1803, 0.7978846
    %v1820 = vtanh.pop %v1804
    %v1821 = vtanh.pop %v1805
    %v1822 = vtanh.pop %v1806
    %v1823 = vtanh.pop %v1807
    %v1824 = vtanh.pop %v1808
    %v1825 = vtanh.pop %v1809
    %v1826 = vtanh.pop %v1810
    %v1827 = vtanh.pop %v1811
    %v1828 = vtanh.pop %v1812
    %v1829 = vtanh.pop %v1813
    %v1830 = vtanh.pop %v1814
    %v1831 = vtanh.pop %v1815
    %v1832 = vtanh.pop %v1816
    %v1833 = vtanh.pop %v1817
    %v1834 = vtanh.pop %v1818
    %v1835 = vtanh.pop %v1819
    %v1836 = vadd.f32 %v1820, 1.0
    %v1837 = vadd.f32 %v1821, 1.0
    %v1838 = vadd.f32 %v1822, 1.0
    %v1839 = vadd.f32 %v1823, 1.0
    %v1840 = vadd.f32 %v1824, 1.0
    %v1841 = vadd.f32 %v1825, 1.0
    %v1842 = vadd.f32 %v1826, 1.0
    %v1843 = vadd.f32 %v1827, 1.0
    %v1844 = vadd.f32 %v1828, 1.0
    %v1845 = vadd.f32 %v1829, 1.0
    %v1846 = vadd.f32 %v1830, 1.0
    %v1847 = vadd.f32 %v1831, 1.0
    %v1848 = vadd.f32 %v1832, 1.0
    %v1849 = vadd.f32 %v1833, 1.0
    %v1850 = vadd.f32 %v1834, 1.0
    %v1851 = vadd.f32 %v1835, 1.0
    %v1852 = vmul.f32 %v1836, 0.5
    %v1853 = vmul.f32 %v1837, 0.5
    %v1854 = vmul.f32 %v1838, 0.5
    %v1855 = vmul.f32 %v1839, 0.5
    %v1856 = vmul.f32 %v1840, 0.5
    %v1857 = vmul.f32 %v1841, 0.5
    %v1858 = vmul.f32 %v1842, 0.5
    %v1859 = vmul.f32 %v1843, 0.5
    %v1860 = vmul.f32 %v1844, 0.5
    %v1861 = vmul.f32 %v1845, 0.5
    %v1862 = vmul.f32 %v1846, 0.5
    %v1863 = vmul.f32 %v1847, 0.5
    %v1864 = vmul.f32 %v1848, 0.5
    %v1865 = vmul.f32 %v1849, 0.5
    %v1866 = vmul.f32 %v1850, 0.5
    %v1867 = vmul.f32 %v1851, 0.5
    %v1868 = vmul.f32 %v1669, %v1852
    %v1869 = vmul.f32 %v1671, %v1853
    %v1870 = vmul.f32 %v1722, %v1854
    %v1871 = vmul.f32 %v1724, %v1855
    %v1872 = vmul.f32 %v1673, %v1856
    %v1873 = vmul.f32 %v1675, %v1857
    %v1874 = vmul.f32 %v1726, %v1858
    %v1875 = vmul.f32 %v1728, %v1859
    %v1876 = vmul.f32 %v1679, %v1860
    %v1877 = vmul.f32 %v1681, %v1861
    %v1878 = vmul.f32 %v1732, %v1862
    %v1879 = vmul.f32 %v1734, %v1863
    %v1880 = vmul.f32 %v1683, %v1864
    %v1881 = vmul.f32 %v1685, %v1865
    %v1882 = vmul.f32 %v1736, %v1866
    %v1883 = vmul.f32 %v1738, %v1867
    %v1884 = vpack.c.bf16 %v1872, %v1868
    %v1885 = vpack.c.bf16 %v1873, %v1869
    %v1886 = vpack.c.bf16 %v1874, %v1870
    %v1887 = vpack.c.bf16 %v1875, %v1871
    %v1888 = vpack.c.bf16 %v1880, %v1876
    %v1889 = vpack.c.bf16 %v1881, %v1877
    %v1890 = vpack.c.bf16 %v1882, %v1878
    %v1891 = vpack.c.bf16 %v1883, %v1879
    %v1892 = vld [vmem:[#allocation6] sm:$0xf]
    %v1893 = vld [vmem:[#allocation6 + $0x4] sm:$0xf]
    %v1894 = vld [vmem:[#allocation6 + $0x8] sm:$0xf]
    %v1895 = vld [vmem:[#allocation6 + $0xc] sm:$0xf]
    %v1896 = vld [vmem:[#allocation6 + $0x10] sm:$0xf]
    %v1897 = vld [vmem:[#allocation6 + $0x14] sm:$0xf]
    %v1898 = vld [vmem:[#allocation6 + $0x18] sm:$0xf]
    %v1899 = vld [vmem:[#allocation6 + $0x1c] sm:$0xf]
    %v1900 = vld [vmem:[#allocation6 + $0x20] sm:$0xf]
    %v1901 = vld [vmem:[#allocation6 + $0x24] sm:$0xf]
    %v1902 = vld [vmem:[#allocation6 + $0x28] sm:$0xf]
    %v1903 = vld [vmem:[#allocation6 + $0x2c] sm:$0xf]
    %v1904 = vld [vmem:[#allocation6 + $0x30] sm:$0xf]
    %v1905 = vld [vmem:[#allocation6 + $0x34] sm:$0xf]
    %v1906 = vld [vmem:[#allocation6 + $0x38] sm:$0xf]
    %v1907 = vld [vmem:[#allocation6 + $0x3c] sm:$0xf]
    %v1908 = vld [vmem:[#allocation6 + $0x40] sm:$0xf]
    %v1909 = vld [vmem:[#allocation6 + $0x44] sm:$0xf]
    %v1910 = vld [vmem:[#allocation6 + $0x48] sm:$0xf]
    %v1911 = vld [vmem:[#allocation6 + $0x4c] sm:$0xf]
    %v1912 = vld [vmem:[#allocation6 + $0x50] sm:$0xf]
    %v1913 = vld [vmem:[#allocation6 + $0x54] sm:$0xf]
    %v1914 = vld [vmem:[#allocation6 + $0x58] sm:$0xf]
    %v1915 = vld [vmem:[#allocation6 + $0x5c] sm:$0xf]
    %v1916 = vld [vmem:[#allocation6 + $0x60] sm:$0xf]
    %v1917 = vld [vmem:[#allocation6 + $0x64] sm:$0xf]
    %v1918 = vld [vmem:[#allocation6 + $0x68] sm:$0xf]
    %v1919 = vld [vmem:[#allocation6 + $0x6c] sm:$0xf]
    %v1920 = vld [vmem:[#allocation6 + $0x70] sm:$0xf]
    %v1921 = vld [vmem:[#allocation6 + $0x74] sm:$0xf]
    %v1922 = vld [vmem:[#allocation6 + $0x78] sm:$0xf]
    %v1923 = vld [vmem:[#allocation6 + $0x7c] sm:$0xf]
    %v1924 = vld [vmem:[#allocation6 + $0x80] sm:$0xf]
    %v1925 = vld [vmem:[#allocation6 + $0x84] sm:$0xf]
    %v1926 = vld [vmem:[#allocation6 + $0x88] sm:$0xf]
    %v1927 = vld [vmem:[#allocation6 + $0x8c] sm:$0xf]
    %v1928 = vld [vmem:[#allocation6 + $0x90] sm:$0xf]
    %v1929 = vld [vmem:[#allocation6 + $0x94] sm:$0xf]
    %v1930 = vld [vmem:[#allocation6 + $0x98] sm:$0xf]
    %v1931 = vld [vmem:[#allocation6 + $0x9c] sm:$0xf]
    %v1932 = vld [vmem:[#allocation6 + $0xa0] sm:$0xf]
    %v1933 = vld [vmem:[#allocation6 + $0xa4] sm:$0xf]
    %v1934 = vld [vmem:[#allocation6 + $0xa8] sm:$0xf]
    %v1935 = vld [vmem:[#allocation6 + $0xac] sm:$0xf]
    %v1936 = vld [vmem:[#allocation6 + $0xb0] sm:$0xf]
    %v1937 = vld [vmem:[#allocation6 + $0xb4] sm:$0xf]
    %v1938 = vld [vmem:[#allocation6 + $0xb8] sm:$0xf]
    %v1939 = vld [vmem:[#allocation6 + $0xbc] sm:$0xf]
    %v1940 = vld [vmem:[#allocation6 + $0xc0] sm:$0xf]
    %v1941 = vld [vmem:[#allocation6 + $0xc4] sm:$0xf]
    %v1942 = vld [vmem:[#allocation6 + $0xc8] sm:$0xf]
    %v1943 = vld [vmem:[#allocation6 + $0xcc] sm:$0xf]
    %v1944 = vld [vmem:[#allocation6 + $0xd0] sm:$0xf]
    %v1945 = vld [vmem:[#allocation6 + $0xd4] sm:$0xf]
    %v1946 = vld [vmem:[#allocation6 + $0xd8] sm:$0xf]
    %v1947 = vld [vmem:[#allocation6 + $0xdc] sm:$0xf]
    %v1948 = vld [vmem:[#allocation6 + $0xe0] sm:$0xf]
    %v1949 = vld [vmem:[#allocation6 + $0xe4] sm:$0xf]
    %v1950 = vld [vmem:[#allocation6 + $0xe8] sm:$0xf]
    %v1951 = vld [vmem:[#allocation6 + $0xec] sm:$0xf]
    %v1952 = vld [vmem:[#allocation6 + $0xf0] sm:$0xf]
    %v1953 = vld [vmem:[#allocation6 + $0xf4] sm:$0xf]
    %v1954 = vld [vmem:[#allocation6 + $0xf8] sm:$0xf]
    %v1955 = vld [vmem:[#allocation6 + $0xfc] sm:$0xf]
    %v1956 = vld [vmem:[%s13] sm:$0x1]
    %v1958 = vlaneseq
    %v1959 = vshrl.u32 %v1958, 7
    %v1960 = vsub.s32 0, %v1959
    %v1961 = vrot.slane %v1956, %v1960
    %v2027 = vunpack.c.l.b16 %v1892
    %v2028 = vunpack.c.l.b16 %v1893
    %v2029 = vunpack.c.l.b16 %v1894
    %v2030 = vunpack.c.l.b16 %v1895
    %v2031 = vunpack.c.l.b16 %v1896
    %v2032 = vunpack.c.l.b16 %v1897
    %v2033 = vunpack.c.l.b16 %v1898
    %v2034 = vunpack.c.l.b16 %v1899
    %v2035 = vunpack.c.l.b16 %v1900
    %v2036 = vunpack.c.l.b16 %v1901
    %v2037 = vunpack.c.l.b16 %v1902
    %v2038 = vunpack.c.l.b16 %v1903
    %v2039 = vunpack.c.l.b16 %v1904
    %v2040 = vunpack.c.l.b16 %v1905
    %v2041 = vunpack.c.l.b16 %v1906
    %v2042 = vunpack.c.l.b16 %v1907
    %v2043 = vunpack.c.l.b16 %v1908
    %v2044 = vunpack.c.l.b16 %v1909
    %v2045 = vunpack.c.l.b16 %v1910
    %v2046 = vunpack.c.l.b16 %v1911
    %v2047 = vunpack.c.l.b16 %v1912
    %v2048 = vunpack.c.l.b16 %v1913
    %v2049 = vunpack.c.l.b16 %v1914
    %v2050 = vunpack.c.l.b16 %v1915
    %v2051 = vunpack.c.l.b16 %v1916
    %v2052 = vunpack.c.l.b16 %v1917
    %v2053 = vunpack.c.l.b16 %v1918
    %v2054 = vunpack.c.l.b16 %v1919
    %v2055 = vunpack.c.l.b16 %v1920
    %v2056 = vunpack.c.l.b16 %v1921
    %v2057 = vunpack.c.l.b16 %v1922
    %v2058 = vunpack.c.l.b16 %v1923
    %v2059 = vunpack.c.l.b16 %v1924
    %v2060 = vunpack.c.l.b16 %v1925
    %v2061 = vunpack.c.l.b16 %v1926
    %v2062 = vunpack.c.l.b16 %v1927
    %v2063 = vunpack.c.l.b16 %v1928
    %v2064 = vunpack.c.l.b16 %v1929
    %v2065 = vunpack.c.l.b16 %v1930
    %v2066 = vunpack.c.l.b16 %v1931
    %v2067 = vunpack.c.l.b16 %v1932
    %v2068 = vunpack.c.l.b16 %v1933
    %v2069 = vunpack.c.l.b16 %v1934
    %v2070 = vunpack.c.l.b16 %v1935
    %v2071 = vunpack.c.l.b16 %v1936
    %v2072 = vunpack.c.l.b16 %v1937
    %v2073 = vunpack.c.l.b16 %v1938
    %v2074 = vunpack.c.l.b16 %v1939
    %v2075 = vunpack.c.l.b16 %v1940
    %v2076 = vunpack.c.l.b16 %v1941
    %v2077 = vunpack.c.l.b16 %v1942
    %v2078 = vunpack.c.l.b16 %v1943
    %v2079 = vunpack.c.l.b16 %v1944
    %v2080 = vunpack.c.l.b16 %v1945
    %v2081 = vunpack.c.l.b16 %v1946
    %v2082 = vunpack.c.l.b16 %v1947
    %v2083 = vunpack.c.l.b16 %v1948
    %v2084 = vunpack.c.l.b16 %v1949
    %v2085 = vunpack.c.l.b16 %v1950
    %v2086 = vunpack.c.l.b16 %v1951
    %v2087 = vunpack.c.l.b16 %v1952
    %v2088 = vunpack.c.l.b16 %v1953
    %v2089 = vunpack.c.l.b16 %v1954
    %v2090 = vunpack.c.l.b16 %v1955
    %v2091 = vpack.c.b16 %v2028, %v2027
    %v2092 = vpack.c.b16 %v2030, %v2029
    %v2093 = vpack.c.b16 %v2032, %v2031
    %v2094 = vpack.c.b16 %v2034, %v2033
    %v2095 = vpack.c.b16 %v2036, %v2035
    %v2096 = vpack.c.b16 %v2038, %v2037
    %v2097 = vpack.c.b16 %v2040, %v2039
    %v2098 = vpack.c.b16 %v2042, %v2041
    %v2099 = vpack.c.b16 %v2044, %v2043
    %v2100 = vpack.c.b16 %v2046, %v2045
    %v2101 = vpack.c.b16 %v2048, %v2047
    %v2102 = vpack.c.b16 %v2050, %v2049
    %v2103 = vpack.c.b16 %v2052, %v2051
    %v2104 = vpack.c.b16 %v2054, %v2053
    %v2105 = vpack.c.b16 %v2056, %v2055
    %v2106 = vpack.c.b16 %v2058, %v2057
    %v2107 = vpack.c.b16 %v2060, %v2059
    %v2108 = vpack.c.b16 %v2062, %v2061
    %v2109 = vpack.c.b16 %v2064, %v2063
    %v2110 = vpack.c.b16 %v2066, %v2065
    %v2111 = vpack.c.b16 %v2068, %v2067
    %v2112 = vpack.c.b16 %v2070, %v2069
    %v2113 = vpack.c.b16 %v2072, %v2071
    %v2114 = vpack.c.b16 %v2074, %v2073
    %v2115 = vpack.c.b16 %v2076, %v2075
    %v2116 = vpack.c.b16 %v2078, %v2077
    %v2117 = vpack.c.b16 %v2080, %v2079
    %v2118 = vpack.c.b16 %v2082, %v2081
    %v2119 = vpack.c.b16 %v2084, %v2083
    %v2120 = vpack.c.b16 %v2086, %v2085
    %v2121 = vpack.c.b16 %v2088, %v2087
    %v2122 = vpack.c.b16 %v2090, %v2089
    %2155 = vmatprep.subr.bf16.mxu0 0
    %2156 = vmatpush1.bf16.msra.mxu0 %v2091
    %2157 = vmatprep.subr.bf16.mxu0 0
    %2158 = vmatpush1.bf16.msra.mxu0 %v2092
    %2159 = vmatprep.subr.bf16.mxu0 0
    %2160 = vmatpush1.bf16.msra.mxu0 %v2093
    %2161 = vmatprep.subr.bf16.mxu0 0
    %2162 = vmatpush1.bf16.msra.mxu0 %v2094
    %2163 = vmatprep.subr.bf16.mxu0 0
    %2164 = vmatpush1.bf16.msra.mxu0 %v2095
    %2165 = vmatprep.subr.bf16.mxu0 0
    %2166 = vmatpush1.bf16.msra.mxu0 %v2096
    %2167 = vmatprep.subr.bf16.mxu0 0
    %2168 = vmatpush1.bf16.msra.mxu0 %v2097
    %2169 = vmatprep.subr.bf16.mxu0 0
    %2170 = vmatpush1.bf16.msra.mxu0 %v2098
    %2171 = vmatprep.subr.bf16.mxu0 0
    %2172 = vmatpush1.bf16.msra.mxu0 %v2099
    %2173 = vmatprep.subr.bf16.mxu0 0
    %2174 = vmatpush1.bf16.msra.mxu0 %v2100
    %2175 = vmatprep.subr.bf16.mxu0 0
    %2176 = vmatpush1.bf16.msra.mxu0 %v2101
    %2177 = vmatprep.subr.bf16.mxu0 0
    %2178 = vmatpush1.bf16.msra.mxu0 %v2102
    %2179 = vmatprep.subr.bf16.mxu0 0
    %2180 = vmatpush1.bf16.msra.mxu0 %v2103
    %2181 = vmatprep.subr.bf16.mxu0 0
    %2182 = vmatpush1.bf16.msra.mxu0 %v2104
    %2183 = vmatprep.subr.bf16.mxu0 0
    %2184 = vmatpush1.bf16.msra.mxu0 %v2105
    %2185 = vmatprep.subr.bf16.mxu0 0
    %2186 = vmatpush1.bf16.msra.mxu0 %v2106
    %2187 = vmatprep.mubr.bf16.mxu0 %v1885
    %2188 = vmatmul.mubr.bf16.gmra.mrb[0].mxu0 %v1884
    %v2189 = vpop.f32.mrb[0].mxu0
    %v2190 = vadd.f32 %v1961, %v2189
    %v2191 = vpop.f32.mrb[0].mxu0
    %v2192 = vpop.f32.mrb[0].mxu0
    %v2193 = vadd.f32 %v1961, %v2192
    %v2194 = vpop.f32.mrb[0].mxu0
    %2195 = vmatprep.mubr.bf16.mxu0 %v1889
    %2196 = vmatmul.mubr.bf16.gmra.mrb[0].mxu0 %v1888
    %v2197 = vpop.f32.mrb[0].mxu0
    %v2198 = vadd.f32 %v1961, %v2197
    %v2199 = vpop.f32.mrb[0].mxu0
    %v2200 = vpop.f32.mrb[0].mxu0
    %v2201 = vadd.f32 %v1961, %v2200
    %v2202 = vpop.f32.mrb[0].mxu0
    %2203 = vdwg.mxu0
    %2204 = vmatprep.subr.bf16.mxu0 0
    %2205 = vmatpush1.bf16.msra.mxu0 %v2107
    %2206 = vmatprep.subr.bf16.mxu0 0
    %2207 = vmatpush1.bf16.msra.mxu0 %v2108
    %2208 = vmatprep.subr.bf16.mxu0 0
    %2209 = vmatpush1.bf16.msra.mxu0 %v2109
    %2210 = vmatprep.subr.bf16.mxu0 0
    %2211 = vmatpush1.bf16.msra.mxu0 %v2110
    %2212 = vmatprep.subr.bf16.mxu0 0
    %2213 = vmatpush1.bf16.msra.mxu0 %v2111
    %2214 = vmatprep.subr.bf16.mxu0 0
    %2215 = vmatpush1.bf16.msra.mxu0 %v2112
    %2216 = vmatprep.subr.bf16.mxu0 0
    %2217 = vmatpush1.bf16.msra.mxu0 %v2113
    %2218 = vmatprep.subr.bf16.mxu0 0
    %2219 = vmatpush1.bf16.msra.mxu0 %v2114
    %2220 = vmatprep.subr.bf16.mxu0 0
    %2221 = vmatpush1.bf16.msra.mxu0 %v2115
    %2222 = vmatprep.subr.bf16.mxu0 0
    %2223 = vmatpush1.bf16.msra.mxu0 %v2116
    %2224 = vmatprep.subr.bf16.mxu0 0
    %2225 = vmatpush1.bf16.msra.mxu0 %v2117
    %2226 = vmatprep.subr.bf16.mxu0 0
    %2227 = vmatpush1.bf16.msra.mxu0 %v2118
    %2228 = vmatprep.subr.bf16.mxu0 0
    %2229 = vmatpush1.bf16.msra.mxu0 %v2119
    %2230 = vmatprep.subr.bf16.mxu0 0
    %2231 = vmatpush1.bf16.msra.mxu0 %v2120
    %2232 = vmatprep.subr.bf16.mxu0 0
    %2233 = vmatpush1.bf16.msra.mxu0 %v2121
    %2234 = vmatprep.subr.bf16.mxu0 0
    %2235 = vmatpush1.bf16.msra.mxu0 %v2122
    %2236 = vmatprep.mubr.bf16.mxu0 %v1887
    %2237 = vmatmul.mubr.bf16.gmra.mrb[0].mxu0 %v1886
    %v2238 = vpop.f32.mrb[0].mxu0
    %v2239 = vadd.f32 %v2190, %v2238
    %v2240 = vpop.f32.mrb[0].mxu0
    %v2241 = vpop.f32.mrb[0].mxu0
    %v2242 = vadd.f32 %v2193, %v2241
    %v2243 = vpop.f32.mrb[0].mxu0
    %2244 = vmatprep.mubr.bf16.mxu0 %v1891
    %2245 = vmatmul.mubr.bf16.gmra.mrb[0].mxu0 %v1890
    %v2246 = vpop.f32.mrb[0].mxu0
    %v2247 = vadd.f32 %v2198, %v2246
    %v2248 = vpop.f32.mrb[0].mxu0
    %v2249 = vpop.f32.mrb[0].mxu0
    %v2250 = vadd.f32 %v2201, %v2249
    %v2251 = vpop.f32.mrb[0].mxu0
    %2252 = vdwg.mxu0
    %v2253 = vadd.f32 %v2239, %v1414
    %v2254 = vadd.f32 %v2242, %v1415
    %v2255 = vadd.f32 %v2247, %v1416
    %v2256 = vadd.f32 %v2250, %v1417
    %v2257 = vld [vmem:[%s14] sm:$0x1]
    %v2258 = vld [vmem:[%s15] sm:$0x1]
    %2259 = vadd.xlane.f32.xlu0 %v2253
    %v2260 = vpop.xlane.xlu0 %2259
    %2261 = vadd.xlane.f32.xlu0 %v2254
    %v2262 = vpop.xlane.xlu0 %2261
    %2263 = vadd.xlane.f32.xlu0 %v2255
    %v2264 = vpop.xlane.xlu0 %2263
    %2265 = vadd.xlane.f32.xlu0 %v2256
    %v2266 = vpop.xlane.xlu0 %2265
    %v2267 = vmul.f32 %v2260, %v114
    %v2268 = vmul.f32 %v2262, %v114
    %v2269 = vmul.f32 %v2264, %v114
    %v2270 = vmul.f32 %v2266, %v114
    %v2271 = vsub.f32 %v2253, %v2267
    %v2272 = vsub.f32 %v2254, %v2268
    %v2273 = vsub.f32 %v2255, %v2269
    %v2274 = vsub.f32 %v2256, %v2270
    %v2275 = vmul.f32 %v2271, %v2271
    %v2276 = vmul.f32 %v2272, %v2272
    %v2277 = vmul.f32 %v2273, %v2273
    %v2278 = vmul.f32 %v2274, %v2274
    %2279 = vadd.xlane.f32.xlu0 %v2275
    %v2280 = vpop.xlane.xlu0 %2279
    %2281 = vadd.xlane.f32.xlu0 %v2276
    %v2282 = vpop.xlane.xlu0 %2281
    %2283 = vadd.xlane.f32.xlu0 %v2277
    %v2284 = vpop.xlane.xlu0 %2283
    %2285 = vadd.xlane.f32.xlu0 %v2278
    %v2286 = vpop.xlane.xlu0 %2285
    %v2287 = vmul.f32 %v2280, %v114
    %v2288 = vmul.f32 %v2282, %v114
    %v2289 = vmul.f32 %v2284, %v114
    %v2290 = vmul.f32 %v2286, %v114
    %v2291 = vadd.f32 %v2287, 1e-12
    %v2292 = vadd.f32 %v2288, 1e-12
    %v2293 = vadd.f32 %v2289, 1e-12
    %v2294 = vadd.f32 %v2290, 1e-12
    %v2295 = vrsqrt.pop %v2291
    %v2296 = vrsqrt.pop %v2292
    %v2297 = vrsqrt.pop %v2293
    %v2298 = vrsqrt.pop %v2294
    %v2300 = vlaneseq
    %v2301 = vshrl.u32 %v2300, 7
    %v2302 = vsub.s32 0, %v2301
    %v2303 = vrot.slane %v2257, %v2302
    %v2305 = vmul.f32 %v2295, %v2303
    %v2306 = vmul.f32 %v2296, %v2303
    %v2307 = vmul.f32 %v2297, %v2303
    %v2308 = vmul.f32 %v2298, %v2303
    %v2309 = vmul.f32 %v2271, %v2305
    %v2310 = vmul.f32 %v2272, %v2306
    %v2311 = vmul.f32 %v2273, %v2307
    %v2312 = vmul.f32 %v2274, %v2308
    %v2314 = vlaneseq
    %v2315 = vshrl.u32 %v2314, 7
    %v2316 = vsub.s32 0, %v2315
    %v2317 = vrot.slane %v2258, %v2316
    %v2319 = vadd.f32 %v2309, %v2317
    %v2320 = vadd.f32 %v2310, %v2317
    %v2321 = vadd.f32 %v2311, %v2317
    %v2322 = vadd.f32 %v2312, %v2317
    %v2323 = vpack.c.bf16 %v2320, %v2319
    %v2324 = vpack.c.bf16 %v2322, %v2321
    %s2325 = scalar_lea.vmem %s4, 192
    %v2326 = vld [vmem:[%s2325] sm:$0xff]
    %v2327 = vld [vmem:[%s2325 + $0x8] sm:$0xf]
    %v2328 = vld [vmem:[%s2325 + $0xc] sm:$0xff]
    %v2329 = vld [vmem:[%s2325 + $0x14] sm:$0xf]
    %v2330 = vld [vmem:[%s2325 + $0x18] sm:$0xff]
    %v2331 = vld [vmem:[%s2325 + $0x20] sm:$0xf]
    %v2332 = vld [vmem:[%s2325 + $0x24] sm:$0xff]
    %v2333 = vld [vmem:[%s2325 + $0x2c] sm:$0xf]
    %v2334 = vld [vmem:[%s2325 + $0x30] sm:$0xff]
    %v2335 = vld [vmem:[%s2325 + $0x38] sm:$0xf]
    %v2336 = vld [vmem:[%s2325 + $0x3c] sm:$0xff]
    %v2337 = vld [vmem:[%s2325 + $0x44] sm:$0xf]
    %v2338 = vld [vmem:[%s2325 + $0x48] sm:$0xff]
    %v2339 = vld [vmem:[%s2325 + $0x50] sm:$0xf]
    %v2340 = vld [vmem:[%s2325 + $0x54] sm:$0xff]
    %v2341 = vld [vmem:[%s2325 + $0x5c] sm:$0xf]
    %v2342 = vld [vmem:[%s2325 + $0x60] sm:$0xff]
    %v2343 = vld [vmem:[%s2325 + $0x68] sm:$0xf]
    %v2344 = vld [vmem:[%s2325 + $0x6c] sm:$0xff]
    %v2345 = vld [vmem:[%s2325 + $0x74] sm:$0xf]
    %v2346 = vld [vmem:[%s2325 + $0x78] sm:$0xff]
    %v2347 = vld [vmem:[%s2325 + $0x80] sm:$0xf]
    %v2348 = vld [vmem:[%s2325 + $0x84] sm:$0xff]
    %v2349 = vld [vmem:[%s2325 + $0x8c] sm:$0xf]
    %v2350 = vld [vmem:[%s2325 + $0x90] sm:$0xff]
    %v2351 = vld [vmem:[%s2325 + $0x98] sm:$0xf]
    %v2352 = vld [vmem:[%s2325 + $0x9c] sm:$0xff]
    %v2353 = vld [vmem:[%s2325 + $0xa4] sm:$0xf]
    %v2354 = vld [vmem:[%s2325 + $0xa8] sm:$0xff]
    %v2355 = vld [vmem:[%s2325 + $0xb0] sm:$0xf]
    %v2356 = vld [vmem:[%s2325 + $0xb4] sm:$0xff]
    %v2357 = vld [vmem:[%s2325 + $0xbc] sm:$0xf]
    %s2358 = scalar_lea.vmem %s5, 3
    %v2359 = vld [vmem:[%s2358] sm:$0x7]
    %v2361 = vlaneseq
    %v2362 = vshrl.u32 %v2361, 7
    %v2363 = vsub.s32 0, %v2362
    %v2364 = vrot.slane %v2359, %v2363
    %v2365 = vlaneseq
    %v2366 = vshrl.u32 %v2365, 7
    %v2367 = vsub.s32 1, %v2366
    %v2368 = vrot.slane %v2359, %v2367
    %v2369 = vlaneseq
    %v2370 = vshrl.u32 %v2369, 7
    %v2371 = vsub.s32 2, %v2370
    %v2372 = vrot.slane %v2359, %v2371
    %v2408 = vunpack.c.l.b16 %v2326
    %v2409 = vunpack.c.h.b16 %v2326
    %v2410 = vunpack.c.l.b16 %v2327
    %v2411 = vunpack.c.l.b16 %v2328
    %v2412 = vunpack.c.h.b16 %v2328
    %v2413 = vunpack.c.l.b16 %v2329
    %v2414 = vunpack.c.l.b16 %v2330
    %v2415 = vunpack.c.h.b16 %v2330
    %v2416 = vunpack.c.l.b16 %v2331
    %v2417 = vunpack.c.l.b16 %v2332
    %v2418 = vunpack.c.h.b16 %v2332
    %v2419 = vunpack.c.l.b16 %v2333
    %v2420 = vunpack.c.l.b16 %v2334
    %v2421 = vunpack.c.h.b16 %v2334
    %v2422 = vunpack.c.l.b16 %v2335
    %v2423 = vunpack.c.l.b16 %v2336
    %v2424 = vunpack.c.h.b16 %v2336
    %v2425 = vunpack.c.l.b16 %v2337
    %v2426 = vunpack.c.l.b16 %v2338
    %v2427 = vunpack.c.h.b16 %v2338
    %v2428 = vunpack.c.l.b16 %v2339
    %v2429 = vunpack.c.l.b16 %v2340
    %v2430 = vunpack.c.h.b16 %v2340
    %v2431 = vunpack.c.l.b16 %v2341
    %v2432 = vunpack.c.l.b16 %v2342
    %v2433 = vunpack.c.h.b16 %v2342
    %v2434 = vunpack.c.l.b16 %v2343
    %v2435 = vunpack.c.l.b16 %v2344
    %v2436 = vunpack.c.h.b16 %v2344
    %v2437 = vunpack.c.l.b16 %v2345
    %v2438 = vunpack.c.l.b16 %v2346
    %v2439 = vunpack.c.h.b16 %v2346
    %v2440 = vunpack.c.l.b16 %v2347
    %v2441 = vunpack.c.l.b16 %v2348
    %v2442 = vunpack.c.h.b16 %v2348
    %v2443 = vunpack.c.l.b16 %v2349
    %v2444 = vunpack.c.l.b16 %v2350
    %v2445 = vunpack.c.h.b16 %v2350
    %v2446 = vunpack.c.l.b16 %v2351
    %v2447 = vunpack.c.l.b16 %v2352
    %v2448 = vunpack.c.h.b16 %v2352
    %v2449 = vunpack.c.l.b16 %v2353
    %v2450 = vunpack.c.l.b16 %v2354
    %v2451 = vunpack.c.h.b16 %v2354
    %v2452 = vunpack.c.l.b16 %v2355
    %v2453 = vunpack.c.l.b16 %v2356
    %v2454 = vunpack.c.h.b16 %v2356
    %v2455 = vunpack.c.l.b16 %v2357
    %v2456 = vpack.c.b16 %v2411, %v2408
    %v2457 = vpack.c.b16 %v2412, %v2409
    %v2458 = vpack.c.b16 %v2413, %v2410
    %v2459 = vpack.c.b16 %v2417, %v2414
    %v2460 = vpack.c.b16 %v2418, %v2415
    %v2461 = vpack.c.b16 %v2419, %v2416
    %v2462 = vpack.c.b16 %v2423, %v2420
    %v2463 = vpack.c.b16 %v2424, %v2421
    %v2464 = vpack.c.b16 %v2425, %v2422
    %v2465 = vpack.c.b16 %v2429, %v2426
    %v2466 = vpack.c.b16 %v2430, %v2427
    %v2467 = vpack.c.b16 %v2431, %v2428
    %v2468 = vpack.c.b16 %v2435, %v2432
    %v2469 = vpack.c.b16 %v2436, %v2433
    %v2470 = vpack.c.b16 %v2437, %v2434
    %v2471 = vpack.c.b16 %v2441, %v2438
    %v2472 = vpack.c.b16 %v2442, %v2439
    %v2473 = vpack.c.b16 %v2443, %v2440
    %v2474 = vpack.c.b16 %v2447, %v2444
    %v2475 = vpack.c.b16 %v2448, %v2445
    %v2476 = vpack.c.b16 %v2449, %v2446
    %v2477 = vpack.c.b16 %v2453, %v2450
    %v2478 = vpack.c.b16 %v2454, %v2451
    %v2479 = vpack.c.b16 %v2455, %v2452
    %2504 = vmatprep.subr.bf16.mxu0 %v2457
    %2505 = vmatpush1.bf16.msra.mxu0 %v2456
    %2506 = vmatprep.subr.bf16.mxu0 %v2460
    %2507 = vmatpush1.bf16.msra.mxu0 %v2459
    %2508 = vmatprep.subr.bf16.mxu0 %v2463
    %2509 = vmatpush1.bf16.msra.mxu0 %v2462
    %2510 = vmatprep.subr.bf16.mxu0 %v2466
    %2511 = vmatpush1.bf16.msra.mxu0 %v2465
    %2512 = vmatprep.subr.bf16.mxu0 %v2469
    %2513 = vmatpush1.bf16.msra.mxu0 %v2468
    %2514 = vmatprep.subr.bf16.mxu0 %v2472
    %2515 = vmatpush1.bf16.msra.mxu0 %v2471
    %2516 = vmatprep.subr.bf16.mxu0 %v2475
    %2517 = vmatpush1.bf16.msra.mxu0 %v2474
    %2518 = vmatprep.subr.bf16.mxu0 %v2478
    %2519 = vmatpush1.bf16.msra.mxu0 %v2477
    %2520 = vmatprep.subr.bf16.mxu0 0
    %2521 = vmatpush1.bf16.msra.mxu0 0
    %2522 = vmatprep.subr.bf16.mxu0 0
    %2523 = vmatpush1.bf16.msra.mxu0 0
    %2524 = vmatprep.subr.bf16.mxu0 0
    %2525 = vmatpush1.bf16.msra.mxu0 0
    %2526 = vmatprep.subr.bf16.mxu0 0
    %2527 = vmatpush1.bf16.msra.mxu0 0
    %2528 = vmatprep.subr.bf16.mxu0 0
    %2529 = vmatpush1.bf16.msra.mxu0 0
    %2530 = vmatprep.subr.bf16.mxu0 0
    %2531 = vmatpush1.bf16.msra.mxu0 0
    %2532 = vmatprep.subr.bf16.mxu0 0
    %2533 = vmatpush1.bf16.msra.mxu0 0
    %2534 = vmatprep.subr.bf16.mxu0 0
    %2535 = vmatpush1.bf16.msra.mxu0 0
    %2536 = vmatprep.mubr.bf16.mxu0 0
    %2537 = vmatmul.mubr.bf16.gmra.mrb[0].mxu0 %v2323
    %v2538 = vpop.f32.mrb[0].mxu0
    %v2539 = vadd.f32 %v2364, %v2538
    %v2540 = vpop.f32.mrb[0].mxu0
    %v2541 = vadd.f32 %v2368, %v2540
    %v2542 = vpop.f32.mrb[0].mxu0
    %v2543 = vadd.f32 %v2364, %v2542
    %v2544 = vpop.f32.mrb[0].mxu0
    %v2545 = vadd.f32 %v2368, %v2544
    %2546 = vmatprep.mubr.bf16.mxu0 0
    %2547 = vmatmul.mubr.bf16.gmra.mrb[0].mxu0 %v2324
    %v2548 = vpop.f32.mrb[0].mxu0
    %v2549 = vadd.f32 %v2364, %v2548
    %v2550 = vpop.f32.mrb[0].mxu0
    %v2551 = vadd.f32 %v2368, %v2550
    %v2552 = vpop.f32.mrb[0].mxu0
    %v2553 = vadd.f32 %v2364, %v2552
    %v2554 = vpop.f32.mrb[0].mxu0
    %v2555 = vadd.f32 %v2368, %v2554
    %2556 = vdwg.mxu0
    %2557 = vmatprep.subr.bf16.mxu0 0
    %2558 = vmatpush1.bf16.msra.mxu0 %v2458
    %2559 = vmatprep.subr.bf16.mxu0 0
    %2560 = vmatpush1.bf16.msra.mxu0 %v2461
    %2561 = vmatprep.subr.bf16.mxu0 0
    %2562 = vmatpush1.bf16.msra.mxu0 %v2464
    %2563 = vmatprep.subr.bf16.mxu0 0
    %2564 = vmatpush1.bf16.msra.mxu0 %v2467
    %2565 = vmatprep.subr.bf16.mxu0 0
    %2566 = vmatpush1.bf16.msra.mxu0 %v2470
    %2567 = vmatprep.subr.bf16.mxu0 0
    %2568 = vmatpush1.bf16.msra.mxu0 %v2473
    %2569 = vmatprep.subr.bf16.mxu0 0
    %2570 = vmatpush1.bf16.msra.mxu0 %v2476
    %2571 = vmatprep.subr.bf16.mxu0 0
    %2572 = vmatpush1.bf16.msra.mxu0 %v2479
    %2573 = vmatprep.subr.bf16.mxu0 0
    %2574 = vmatpush1.bf16.msra.mxu0 0
    %2575 = vmatprep.subr.bf16.mxu0 0
    %2576 = vmatpush1.bf16.msra.mxu0 0
    %2577 = vmatprep.subr.bf16.mxu0 0
    %2578 = vmatpush1.bf16.msra.mxu0 0
    %2579 = vmatprep.subr.bf16.mxu0 0
    %2580 = vmatpush1.bf16.msra.mxu0 0
    %2581 = vmatprep.subr.bf16.mxu0 0
    %2582 = vmatpush1.bf16.msra.mxu0 0
    %2583 = vmatprep.subr.bf16.mxu0 0
    %2584 = vmatpush1.bf16.msra.mxu0 0
    %2585 = vmatprep.subr.bf16.mxu0 0
    %2586 = vmatpush1.bf16.msra.mxu0 0
    %2587 = vmatprep.subr.bf16.mxu0 0
    %2588 = vmatpush1.bf16.msra.mxu0 0
    %2589 = vmatprep.mubr.bf16.mxu0 0
    %2590 = vmatmul.mubr.bf16.gmra.mrb[0].mxu0 %v2323
    %v2591 = vpop.f32.mrb[0].mxu0
    %v2592 = vadd.f32 %v2372, %v2591
    %v2593 = vpop.f32.mrb[0].mxu0
    %v2594 = vpop.f32.mrb[0].mxu0
    %v2595 = vadd.f32 %v2372, %v2594
    %v2596 = vpop.f32.mrb[0].mxu0
    %2597 = vmatprep.mubr.bf16.mxu0 0
    %2598 = vmatmul.mubr.bf16.gmra.mrb[0].mxu0 %v2324
    %v2599 = vpop.f32.mrb[0].mxu0
    %v2600 = vadd.f32 %v2372, %v2599
    %v2601 = vpop.f32.mrb[0].mxu0
    %v2602 = vpop.f32.mrb[0].mxu0
    %v2603 = vadd.f32 %v2372, %v2602
    %v2604 = vpop.f32.mrb[0].mxu0
    %2605 = vdwg.mxu0
    %v2606 = vpack.c.bf16 %v2543, %v2539
    %v2607 = vpack.c.bf16 %v2545, %v2541
    %v2608 = vpack.c.bf16 %v2595, %v2592
    %v2609 = vpack.c.bf16 %v2553, %v2549
    %v2610 = vpack.c.bf16 %v2555, %v2551
    %v2611 = vpack.c.bf16 %v2603, %v2600
    %v2613 = vsel %vm458, %v2606, 0
    %v2616 = vsel %vm458, %v2609, 0
    %v2619 = vsel %vm458, %v2607, 0
    %v2622 = vsel %vm458, %v2610, 0
    %2624 = vmatprep.subr.bf16.mxu0 0
    %2625 = vmatpush1.bf16.xpose.msra.mxu0 %v2619
    %2626 = vmatprep.subr.bf16.mxu0 0
    %2627 = vmatpush1.bf16.xpose.msra.mxu0 %v2622
    %2628 = vmatprep.subr.bf16.mxu0 0
    %2629 = vmatpush1.bf16.xpose.msra.mxu0 0
    %2630 = vmatprep.subr.bf16.mxu0 0
    %2631 = vmatpush1.bf16.xpose.msra.mxu0 0
    %2632 = vmatprep.subr.bf16.mxu0 0
    %2633 = vmatpush1.bf16.xpose.msra.mxu0 0
    %2634 = vmatprep.subr.bf16.mxu0 0
    %2635 = vmatpush1.bf16.xpose.msra.mxu0 0
    %2636 = vmatprep.subr.bf16.mxu0 0
    %2637 = vmatpush1.bf16.xpose.msra.mxu0 0
    %2638 = vmatprep.subr.bf16.mxu0 0
    %2639 = vmatpush1.bf16.xpose.msra.mxu0 0
    %2640 = vmatprep.subr.bf16.mxu0 0
    %2641 = vmatpush1.bf16.xpose.msra.mxu0 0
    %2642 = vmatprep.subr.bf16.mxu0 0
    %2643 = vmatpush1.bf16.xpose.msra.mxu0 0
    %2644 = vmatprep.subr.bf16.mxu0 0
    %2645 = vmatpush1.bf16.xpose.msra.mxu0 0
    %2646 = vmatprep.subr.bf16.mxu0 0
    %2647 = vmatpush1.bf16.xpose.msra.mxu0 0
    %2648 = vmatprep.subr.bf16.mxu0 0
    %2649 = vmatpush1.bf16.xpose.msra.mxu0 0
    %2650 = vmatprep.subr.bf16.mxu0 0
    %2651 = vmatpush1.bf16.xpose.msra.mxu0 0
    %2652 = vmatprep.subr.bf16.mxu0 0
    %2653 = vmatpush1.bf16.xpose.msra.mxu0 0
    %2654 = vmatprep.subr.bf16.mxu0 0
    %2655 = vmatpush1.bf16.xpose.msra.mxu0 0
    %2656 = vmatprep.mubr.bf16.mxu0 0
    %2657 = vmatmul.mubr.bf16.gmra.mrb[0].mxu0 %v2613
    %v2658 = vpop.f32.mrb[0].mxu0
    %v2659 = vadd.f32 %v96, %v2658
    %v2660 = vpop.f32.mrb[0].mxu0
    %v2661 = vpop.f32.mrb[0].mxu0
    %v2662 = vadd.f32 %v97, %v2661
    %v2663 = vpop.f32.mrb[0].mxu0
    %2664 = vmatprep.mubr.bf16.mxu0 0
    %2665 = vmatmul.mubr.bf16.gmra.mrb[0].mxu0 %v2616
    %v2666 = vpop.f32.mrb[0].mxu0
    %v2667 = vadd.f32 %v98, %v2666
    %v2668 = vpop.f32.mrb[0].mxu0
    %v2669 = vpop.f32.mrb[0].mxu0
    %v2670 = vadd.f32 %v99, %v2669
    %v2671 = vpop.f32.mrb[0].mxu0
    %2672 = vdwg.mxu0
    %v2673 = vsel %vm458, %v2659, -inf
    %2674 = vmax.xlane.f32.xlu0 %v2673
    %v2675 = vpop.xlane.xlu0 %2674
    %v2676 = vsel %vm458, %v2662, -inf
    %2677 = vmax.xlane.f32.xlu0 %v2676
    %v2678 = vpop.xlane.xlu0 %2677
    %v2679 = vsel %vm458, %v2667, -inf
    %2680 = vmax.xlane.f32.xlu0 %v2679
    %v2681 = vpop.xlane.xlu0 %2680
    %v2682 = vsel %vm458, %v2670, -inf
    %2683 = vmax.xlane.f32.xlu0 %v2682
    %v2684 = vpop.xlane.xlu0 %2683
    %v2685 = vsub.f32 %v2659, %v2675
    %v2686 = vsub.f32 %v2662, %v2678
    %v2687 = vsub.f32 %v2667, %v2681
    %v2688 = vsub.f32 %v2670, %v2684
    %v2689 = vmul.f32 %v2685, 1.442695
    %v2690 = vpow.pop %v2689
    %v2691 = vmul.f32 %v2686, 1.442695
    %v2692 = vpow.pop %v2691
    %v2693 = vmul.f32 %v2687, 1.442695
    %v2694 = vpow.pop %v2693
    %v2695 = vmul.f32 %v2688, 1.442695
    %v2696 = vpow.pop %v2695
    %v2697 = vsel %vm458, %v2690, 0.0
    %2698 = vadd.xlane.f32.xlu0 %v2697
    %v2699 = vpop.xlane.xlu0 %2698
    %v2700 = vsel %vm458, %v2692, 0.0
    %2701 = vadd.xlane.f32.xlu0 %v2700
    %v2702 = vpop.xlane.xlu0 %2701
    %v2703 = vsel %vm458, %v2694, 0.0
    %2704 = vadd.xlane.f32.xlu0 %v2703
    %v2705 = vpop.xlane.xlu0 %2704
    %v2706 = vsel %vm458, %v2696, 0.0
    %2707 = vadd.xlane.f32.xlu0 %v2706
    %v2708 = vpop.xlane.xlu0 %2707
    %v2709 = vrcp.pop %v2699
    %v2710 = vrcp.pop %v2702
    %v2711 = vrcp.pop %v2705
    %v2712 = vrcp.pop %v2708
    %v2713 = vmul.f32 %v2690, %v2709
    %v2714 = vmul.f32 %v2692, %v2710
    %v2715 = vmul.f32 %v2694, %v2711
    %v2716 = vmul.f32 %v2696, %v2712
    %v2717 = vpack.c.bf16 %v2714, %v2713
    %v2718 = vpack.c.bf16 %v2716, %v2715
    %v2720 = vsel %vm458, %v2717, 0
    %v2723 = vsel %vm458, %v2718, 0
    %2725 = vmatprep.subr.bf16.mxu0 0
    %2726 = vmatpush1.bf16.msra.mxu0 %v2608
    %2727 = vmatprep.subr.bf16.mxu0 0
    %2728 = vmatpush1.bf16.msra.mxu0 %v2611
    %2729 = vmatprep.subr.bf16.mxu0 0
    %2730 = vmatpush1.bf16.msra.mxu0 0
    %2731 = vmatprep.subr.bf16.mxu0 0
    %2732 = vmatpush1.bf16.msra.mxu0 0
    %2733 = vmatprep.subr.bf16.mxu0 0
    %2734 = vmatpush1.bf16.msra.mxu0 0
    %2735 = vmatprep.subr.bf16.mxu0 0
    %2736 = vmatpush1.bf16.msra.mxu0 0
    %2737 = vmatprep.subr.bf16.mxu0 0
    %2738 = vmatpush1.bf16.msra.mxu0 0
    %2739 = vmatprep.subr.bf16.mxu0 0
    %2740 = vmatpush1.bf16.msra.mxu0 0
    %2741 = vmatprep.subr.bf16.mxu0 0
    %2742 = vmatpush1.bf16.msra.mxu0 0
    %2743 = vmatprep.subr.bf16.mxu0 0
    %2744 = vmatpush1.bf16.msra.mxu0 0
    %2745 = vmatprep.subr.bf16.mxu0 0
    %2746 = vmatpush1.bf16.msra.mxu0 0
    %2747 = vmatprep.subr.bf16.mxu0 0
    %2748 = vmatpush1.bf16.msra.mxu0 0
    %2749 = vmatprep.subr.bf16.mxu0 0
    %2750 = vmatpush1.bf16.msra.mxu0 0
    %2751 = vmatprep.subr.bf16.mxu0 0
    %2752 = vmatpush1.bf16.msra.mxu0 0
    %2753 = vmatprep.subr.bf16.mxu0 0
    %2754 = vmatpush1.bf16.msra.mxu0 0
    %2755 = vmatprep.subr.bf16.mxu0 0
    %2756 = vmatpush1.bf16.msra.mxu0 0
    %2757 = vmatprep.mubr.bf16.mxu0 0
    %2758 = vmatmul.mubr.bf16.gmra.mrb[0].mxu0 %v2720
    %v2759 = vpop.f32.mrb[0].mxu0
    %v2760 = vadd.f32 0.0, %v2759
    %v2761 = vpop.f32.mrb[0].mxu0
    %v2762 = vpop.f32.mrb[0].mxu0
    %v2763 = vadd.f32 0.0, %v2762
    %v2764 = vpop.f32.mrb[0].mxu0
    %2765 = vmatprep.mubr.bf16.mxu0 0
    %2766 = vmatmul.mubr.bf16.gmra.mrb[0].mxu0 %v2723
    %v2767 = vpop.f32.mrb[0].mxu0
    %v2768 = vadd.f32 0.0, %v2767
    %v2769 = vpop.f32.mrb[0].mxu0
    %v2770 = vpop.f32.mrb[0].mxu0
    %v2771 = vadd.f32 0.0, %v2770
    %v2772 = vpop.f32.mrb[0].mxu0
    %2773 = vdwg.mxu0
    %2774 = vst.msk [vmem:[#allocation2] sm:$0xff] %vm458, %v2760
    %2775 = vst.msk [vmem:[#allocation2 + $0x8] sm:$0xff] %vm458, %v2763
    %2776 = vst.msk [vmem:[#allocation2 + $0x10] sm:$0xff] %vm458, %v2768
    %2777 = vst.msk [vmem:[#allocation2 + $0x18] sm:$0xff] %vm458, %v2771
    %2780 = vrot.lane.b32.xlu0 %v2606, 96
    %v2781 = vpop.permute.xlu0 %2780
    %2782 = vrot.lane.b32.xlu0 %v2609, 96
    %v2783 = vpop.permute.xlu0 %2782
    %2786 = vrot.lane.b32.xlu0 %v2607, 96
    %v2787 = vpop.permute.xlu0 %2786
    %2788 = vrot.lane.b32.xlu0 %v2610, 96
    %v2789 = vpop.permute.xlu0 %2788
    %v2791 = vsel %vm458, %v2781, 0
    %v2794 = vsel %vm458, %v2783, 0
    %v2797 = vsel %vm458, %v2787, 0
    %v2800 = vsel %vm458, %v2789, 0
    %2802 = vmatprep.subr.bf16.mxu0 0
    %2803 = vmatpush1.bf16.xpose.msra.mxu0 %v2797
    %2804 = vmatprep.subr.bf16.mxu0 0
    %2805 = vmatpush1.bf16.xpose.msra.mxu0 %v2800
    %2806 = vmatprep.subr.bf16.mxu0 0
    %2807 = vmatpush1.bf16.xpose.msra.mxu0 0
    %2808 = vmatprep.subr.bf16.mxu0 0
    %2809 = vmatpush1.bf16.xpose.msra.mxu0 0
    %2810 = vmatprep.subr.bf16.mxu0 0
    %2811 = vmatpush1.bf16.xpose.msra.mxu0 0
    %2812 = vmatprep.subr.bf16.mxu0 0
    %2813 = vmatpush1.bf16.xpose.msra.mxu0 0
    %2814 = vmatprep.subr.bf16.mxu0 0
    %2815 = vmatpush1.bf16.xpose.msra.mxu0 0
    %2816 = vmatprep.subr.bf16.mxu0 0
    %2817 = vmatpush1.bf16.xpose.msra.mxu0 0
    %2818 = vmatprep.subr.bf16.mxu0 0
    %2819 = vmatpush1.bf16.xpose.msra.mxu0 0
    %2820 = vmatprep.subr.bf16.mxu0 0
    %2821 = vmatpush1.bf16.xpose.msra.mxu0 0
    %2822 = vmatprep.subr.bf16.mxu0 0
    %2823 = vmatpush1.bf16.xpose.msra.mxu0 0
    %2824 = vmatprep.subr.bf16.mxu0 0
    %2825 = vmatpush1.bf16.xpose.msra.mxu0 0
    %2826 = vmatprep.subr.bf16.mxu0 0
    %2827 = vmatpush1.bf16.xpose.msra.mxu0 0
    %2828 = vmatprep.subr.bf16.mxu0 0
    %2829 = vmatpush1.bf16.xpose.msra.mxu0 0
    %2830 = vmatprep.subr.bf16.mxu0 0
    %2831 = vmatpush1.bf16.xpose.msra.mxu0 0
    %2832 = vmatprep.subr.bf16.mxu0 0
    %2833 = vmatpush1.bf16.xpose.msra.mxu0 0
    %2834 = vmatprep.mubr.bf16.mxu0 0
    %2835 = vmatmul.mubr.bf16.gmra.mrb[0].mxu0 %v2791
    %v2836 = vpop.f32.mrb[0].mxu0
    %v2837 = vadd.f32 %v96, %v2836
    %v2838 = vpop.f32.mrb[0].mxu0
    %v2839 = vpop.f32.mrb[0].mxu0
    %v2840 = vadd.f32 %v97, %v2839
    %v2841 = vpop.f32.mrb[0].mxu0
    %2842 = vmatprep.mubr.bf16.mxu0 0
    %2843 = vmatmul.mubr.bf16.gmra.mrb[0].mxu0 %v2794
    %v2844 = vpop.f32.mrb[0].mxu0
    %v2845 = vadd.f32 %v98, %v2844
    %v2846 = vpop.f32.mrb[0].mxu0
    %v2847 = vpop.f32.mrb[0].mxu0
    %v2848 = vadd.f32 %v99, %v2847
    %v2849 = vpop.f32.mrb[0].mxu0
    %2850 = vdwg.mxu0
    %v2851 = vsel %vm458, %v2837, -inf
    %2852 = vmax.xlane.f32.xlu0 %v2851
    %v2853 = vpop.xlane.xlu0 %2852
    %v2854 = vsel %vm458, %v2840, -inf
    %2855 = vmax.xlane.f32.xlu0 %v2854
    %v2856 = vpop.xlane.xlu0 %2855
    %v2857 = vsel %vm458, %v2845, -inf
    %2858 = vmax.xlane.f32.xlu0 %v2857
    %v2859 = vpop.xlane.xlu0 %2858
    %v2860 = vsel %vm458, %v2848, -inf
    %2861 = vmax.xlane.f32.xlu0 %v2860
    %v2862 = vpop.xlane.xlu0 %2861
    %v2863 = vsub.f32 %v2837, %v2853
    %v2864 = vsub.f32 %v2840, %v2856
    %v2865 = vsub.f32 %v2845, %v2859
    %v2866 = vsub.f32 %v2848, %v2862
    %v2867 = vmul.f32 %v2863, 1.442695
    %v2868 = vpow.pop %v2867
    %v2869 = vmul.f32 %v2864, 1.442695
    %v2870 = vpow.pop %v2869
    %v2871 = vmul.f32 %v2865, 1.442695
    %v2872 = vpow.pop %v2871
    %v2873 = vmul.f32 %v2866, 1.442695
    %v2874 = vpow.pop %v2873
    %v2875 = vsel %vm458, %v2868, 0.0
    %2876 = vadd.xlane.f32.xlu0 %v2875
    %v2877 = vpop.xlane.xlu0 %2876
    %v2878 = vsel %vm458, %v2870, 0.0
    %2879 = vadd.xlane.f32.xlu0 %v2878
    %v2880 = vpop.xlane.xlu0 %2879
    %v2881 = vsel %vm458, %v2872, 0.0
    %2882 = vadd.xlane.f32.xlu0 %v2881
    %v2883 = vpop.xlane.xlu0 %2882
    %v2884 = vsel %vm458, %v2874, 0.0
    %2885 = vadd.xlane.f32.xlu0 %v2884
    %v2886 = vpop.xlane.xlu0 %2885
    %v2887 = vrcp.pop %v2877
    %v2888 = vrcp.pop %v2880
    %v2889 = vrcp.pop %v2883
    %v2890 = vrcp.pop %v2886
    %v2891 = vmul.f32 %v2868, %v2887
    %v2892 = vmul.f32 %v2870, %v2888
    %v2893 = vmul.f32 %v2872, %v2889
    %v2894 = vmul.f32 %v2874, %v2890
    %v2895 = vpack.c.bf16 %v2892, %v2891
    %v2896 = vpack.c.bf16 %v2894, %v2893
    %2899 = vrot.lane.b32.xlu0 %v2608, 96
    %v2900 = vpop.permute.xlu0 %2899
    %2901 = vrot.lane.b32.xlu0 %v2611, 96
    %v2902 = vpop.permute.xlu0 %2901
    %v2906 = vsel %vm458, %v2895, 0
    %v2909 = vsel %vm458, %v2896, 0
    %2911 = vmatprep.subr.bf16.mxu0 0
    %2912 = vmatpush1.bf16.msra.mxu0 %v2900
    %2913 = vmatprep.subr.bf16.mxu0 0
    %2914 = vmatpush1.bf16.msra.mxu0 %v2902
    %2915 = vmatprep.subr.bf16.mxu0 0
    %2916 = vmatpush1.bf16.msra.mxu0 0
    %2917 = vmatprep.subr.bf16.mxu0 0
    %2918 = vmatpush1.bf16.msra.mxu0 0
    %2919 = vmatprep.subr.bf16.mxu0 0
    %2920 = vmatpush1.bf16.msra.mxu0 0
    %2921 = vmatprep.subr.bf16.mxu0 0
    %2922 = vmatpush1.bf16.msra.mxu0 0
    %2923 = vmatprep.subr.bf16.mxu0 0
    %2924 = vmatpush1.bf16.msra.mxu0 0
    %2925 = vmatprep.subr.bf16.mxu0 0
    %2926 = vmatpush1.bf16.msra.mxu0 0
    %2927 = vmatprep.subr.bf16.mxu0 0
    %2928 = vmatpush1.bf16.msra.mxu0 0
    %2929 = vmatprep.subr.bf16.mxu0 0
    %2930 = vmatpush1.bf16.msra.mxu0 0
    %2931 = vmatprep.subr.bf16.mxu0 0
    %2932 = vmatpush1.bf16.msra.mxu0 0
    %2933 = vmatprep.subr.bf16.mxu0 0
    %2934 = vmatpush1.bf16.msra.mxu0 0
    %2935 = vmatprep.subr.bf16.mxu0 0
    %2936 = vmatpush1.bf16.msra.mxu0 0
    %2937 = vmatprep.subr.bf16.mxu0 0
    %2938 = vmatpush1.bf16.msra.mxu0 0
    %2939 = vmatprep.subr.bf16.mxu0 0
    %2940 = vmatpush1.bf16.msra.mxu0 0
    %2941 = vmatprep.subr.bf16.mxu0 0
    %2942 = vmatpush1.bf16.msra.mxu0 0
    %2943 = vmatprep.mubr.bf16.mxu0 0
    %2944 = vmatmul.mubr.bf16.gmra.mrb[0].mxu0 %v2906
    %v2945 = vpop.f32.mrb[0].mxu0
    %v2946 = vadd.f32 0.0, %v2945
    %v2947 = vpop.f32.mrb[0].mxu0
    %v2948 = vpop.f32.mrb[0].mxu0
    %v2949 = vadd.f32 0.0, %v2948
    %v2950 = vpop.f32.mrb[0].mxu0
    %2951 = vmatprep.mubr.bf16.mxu0 0
    %2952 = vmatmul.mubr.bf16.gmra.mrb[0].mxu0 %v2909
    %v2953 = vpop.f32.mrb[0].mxu0
    %v2954 = vadd.f32 0.0, %v2953
    %v2955 = vpop.f32.mrb[0].mxu0
    %v2956 = vpop.f32.mrb[0].mxu0
    %v2957 = vadd.f32 0.0, %v2956
    %v2958 = vpop.f32.mrb[0].mxu0
    %2959 = vdwg.mxu0
    %2964 = vrot.lane.b32.xlu0 %v2946, 32
    %v2965 = vpop.permute.xlu0 %2964
    %2966 = vrot.lane.b32.xlu0 %v2949, 32
    %v2967 = vpop.permute.xlu0 %2966
    %2968 = vrot.lane.b32.xlu0 %v2954, 32
    %v2969 = vpop.permute.xlu0 %2968
    %2970 = vrot.lane.b32.xlu0 %v2957, 32
    %v2971 = vpop.permute.xlu0 %2970
    %2976 = vst.msk [vmem:[#allocation2] sm:$0xff] %vm823, %v2965
    %2977 = vst.msk [vmem:[#allocation2 + $0x8] sm:$0xff] %vm823, %v2967
    %2978 = vst.msk [vmem:[#allocation2 + $0x10] sm:$0xff] %vm823, %v2969
    %2979 = vst.msk [vmem:[#allocation2 + $0x18] sm:$0xff] %vm823, %v2971
    %2980 = vrot.lane.b32.xlu0 %v2606, 64
    %v2981 = vpop.permute.xlu0 %2980
    %2982 = vrot.lane.b32.xlu0 %v2609, 64
    %v2983 = vpop.permute.xlu0 %2982
    %2984 = vrot.lane.b32.xlu0 %v2607, 64
    %v2985 = vpop.permute.xlu0 %2984
    %2986 = vrot.lane.b32.xlu0 %v2610, 64
    %v2987 = vpop.permute.xlu0 %2986
    %v2989 = vsel %vm458, %v2981, 0
    %v2992 = vsel %vm458, %v2983, 0
    %v2995 = vsel %vm458, %v2985, 0
    %v2998 = vsel %vm458, %v2987, 0
    %3000 = vmatprep.subr.bf16.mxu0 0
    %3001 = vmatpush1.bf16.xpose.msra.mxu0 %v2995
    %3002 = vmatprep.subr.bf16.mxu0 0
    %3003 = vmatpush1.bf16.xpose.msra.mxu0 %v2998
    %3004 = vmatprep.subr.bf16.mxu0 0
    %3005 = vmatpush1.bf16.xpose.msra.mxu0 0
    %3006 = vmatprep.subr.bf16.mxu0 0
    %3007 = vmatpush1.bf16.xpose.msra.mxu0 0
    %3008 = vmatprep.subr.bf16.mxu0 0
    %3009 = vmatpush1.bf16.xpose.msra.mxu0 0
    %3010 = vmatprep.subr.bf16.mxu0 0
    %3011 = vmatpush1.bf16.xpose.msra.mxu0 0
    %3012 = vmatprep.subr.bf16.mxu0 0
    %3013 = vmatpush1.bf16.xpose.msra.mxu0 0
    %3014 = vmatprep.subr.bf16.mxu0 0
    %3015 = vmatpush1.bf16.xpose.msra.mxu0 0
    %3016 = vmatprep.subr.bf16.mxu0 0
    %3017 = vmatpush1.bf16.xpose.msra.mxu0 0
    %3018 = vmatprep.subr.bf16.mxu0 0
    %3019 = vmatpush1.bf16.xpose.msra.mxu0 0
    %3020 = vmatprep.subr.bf16.mxu0 0
    %3021 = vmatpush1.bf16.xpose.msra.mxu0 0
    %3022 = vmatprep.subr.bf16.mxu0 0
    %3023 = vmatpush1.bf16.xpose.msra.mxu0 0
    %3024 = vmatprep.subr.bf16.mxu0 0
    %3025 = vmatpush1.bf16.xpose.msra.mxu0 0
    %3026 = vmatprep.subr.bf16.mxu0 0
    %3027 = vmatpush1.bf16.xpose.msra.mxu0 0
    %3028 = vmatprep.subr.bf16.mxu0 0
    %3029 = vmatpush1.bf16.xpose.msra.mxu0 0
    %3030 = vmatprep.subr.bf16.mxu0 0
    %3031 = vmatpush1.bf16.xpose.msra.mxu0 0
    %3032 = vmatprep.mubr.bf16.mxu0 0
    %3033 = vmatmul.mubr.bf16.gmra.mrb[0].mxu0 %v2989
    %v3034 = vpop.f32.mrb[0].mxu0
    %v3035 = vadd.f32 %v96, %v3034
    %v3036 = vpop.f32.mrb[0].mxu0
    %v3037 = vpop.f32.mrb[0].mxu0
    %v3038 = vadd.f32 %v97, %v3037
    %v3039 = vpop.f32.mrb[0].mxu0
    %3040 = vmatprep.mubr.bf16.mxu0 0
    %3041 = vmatmul.mubr.bf16.gmra.mrb[0].mxu0 %v2992
    %v3042 = vpop.f32.mrb[0].mxu0
    %v3043 = vadd.f32 %v98, %v3042
    %v3044 = vpop.f32.mrb[0].mxu0
    %v3045 = vpop.f32.mrb[0].mxu0
    %v3046 = vadd.f32 %v99, %v3045
    %v3047 = vpop.f32.mrb[0].mxu0
    %3048 = vdwg.mxu0
    %v3049 = vsel %vm458, %v3035, -inf
    %3050 = vmax.xlane.f32.xlu0 %v3049
    %v3051 = vpop.xlane.xlu0 %3050
    %v3052 = vsel %vm458, %v3038, -inf
    %3053 = vmax.xlane.f32.xlu0 %v3052
    %v3054 = vpop.xlane.xlu0 %3053
    %v3055 = vsel %vm458, %v3043, -inf
    %3056 = vmax.xlane.f32.xlu0 %v3055
    %v3057 = vpop.xlane.xlu0 %3056
    %v3058 = vsel %vm458, %v3046, -inf
    %3059 = vmax.xlane.f32.xlu0 %v3058
    %v3060 = vpop.xlane.xlu0 %3059
    %v3061 = vsub.f32 %v3035, %v3051
    %v3062 = vsub.f32 %v3038, %v3054
    %v3063 = vsub.f32 %v3043, %v3057
    %v3064 = vsub.f32 %v3046, %v3060
    %v3065 = vmul.f32 %v3061, 1.442695
    %v3066 = vpow.pop %v3065
    %v3067 = vmul.f32 %v3062, 1.442695
    %v3068 = vpow.pop %v3067
    %v3069 = vmul.f32 %v3063, 1.442695
    %v3070 = vpow.pop %v3069
    %v3071 = vmul.f32 %v3064, 1.442695
    %v3072 = vpow.pop %v3071
    %v3073 = vsel %vm458, %v3066, 0.0
    %3074 = vadd.xlane.f32.xlu0 %v3073
    %v3075 = vpop.xlane.xlu0 %3074
    %v3076 = vsel %vm458, %v3068, 0.0
    %3077 = vadd.xlane.f32.xlu0 %v3076
    %v3078 = vpop.xlane.xlu0 %3077
    %v3079 = vsel %vm458, %v3070, 0.0
    %3080 = vadd.xlane.f32.xlu0 %v3079
    %v3081 = vpop.xlane.xlu0 %3080
    %v3082 = vsel %vm458, %v3072, 0.0
    %3083 = vadd.xlane.f32.xlu0 %v3082
    %v3084 = vpop.xlane.xlu0 %3083
    %v3085 = vrcp.pop %v3075
    %v3086 = vrcp.pop %v3078
    %v3087 = vrcp.pop %v3081
    %v3088 = vrcp.pop %v3084
    %v3089 = vmul.f32 %v3066, %v3085
    %v3090 = vmul.f32 %v3068, %v3086
    %v3091 = vmul.f32 %v3070, %v3087
    %v3092 = vmul.f32 %v3072, %v3088
    %v3093 = vpack.c.bf16 %v3090, %v3089
    %v3094 = vpack.c.bf16 %v3092, %v3091
    %3095 = vrot.lane.b32.xlu0 %v2608, 64
    %v3096 = vpop.permute.xlu0 %3095
    %3097 = vrot.lane.b32.xlu0 %v2611, 64
    %v3098 = vpop.permute.xlu0 %3097
    %v3102 = vsel %vm458, %v3093, 0
    %v3105 = vsel %vm458, %v3094, 0
    %3107 = vmatprep.subr.bf16.mxu0 0
    %3108 = vmatpush1.bf16.msra.mxu0 %v3096
    %3109 = vmatprep.subr.bf16.mxu0 0
    %3110 = vmatpush1.bf16.msra.mxu0 %v3098
    %3111 = vmatprep.subr.bf16.mxu0 0
    %3112 = vmatpush1.bf16.msra.mxu0 0
    %3113 = vmatprep.subr.bf16.mxu0 0
    %3114 = vmatpush1.bf16.msra.mxu0 0
    %3115 = vmatprep.subr.bf16.mxu0 0
    %3116 = vmatpush1.bf16.msra.mxu0 0
    %3117 = vmatprep.subr.bf16.mxu0 0
    %3118 = vmatpush1.bf16.msra.mxu0 0
    %3119 = vmatprep.subr.bf16.mxu0 0
    %3120 = vmatpush1.bf16.msra.mxu0 0
    %3121 = vmatprep.subr.bf16.mxu0 0
    %3122 = vmatpush1.bf16.msra.mxu0 0
    %3123 = vmatprep.subr.bf16.mxu0 0
    %3124 = vmatpush1.bf16.msra.mxu0 0
    %3125 = vmatprep.subr.bf16.mxu0 0
    %3126 = vmatpush1.bf16.msra.mxu0 0
    %3127 = vmatprep.subr.bf16.mxu0 0
    %3128 = vmatpush1.bf16.msra.mxu0 0
    %3129 = vmatprep.subr.bf16.mxu0 0
    %3130 = vmatpush1.bf16.msra.mxu0 0
    %3131 = vmatprep.subr.bf16.mxu0 0
    %3132 = vmatpush1.bf16.msra.mxu0 0
    %3133 = vmatprep.subr.bf16.mxu0 0
    %3134 = vmatpush1.bf16.msra.mxu0 0
    %3135 = vmatprep.subr.bf16.mxu0 0
    %3136 = vmatpush1.bf16.msra.mxu0 0
    %3137 = vmatprep.subr.bf16.mxu0 0
    %3138 = vmatpush1.bf16.msra.mxu0 0
    %3139 = vmatprep.mubr.bf16.mxu0 0
    %3140 = vmatmul.mubr.bf16.gmra.mrb[0].mxu0 %v3102
    %v3141 = vpop.f32.mrb[0].mxu0
    %v3142 = vadd.f32 0.0, %v3141
    %v3143 = vpop.f32.mrb[0].mxu0
    %v3144 = vpop.f32.mrb[0].mxu0
    %v3145 = vadd.f32 0.0, %v3144
    %v3146 = vpop.f32.mrb[0].mxu0
    %3147 = vmatprep.mubr.bf16.mxu0 0
    %3148 = vmatmul.mubr.bf16.gmra.mrb[0].mxu0 %v3105
    %v3149 = vpop.f32.mrb[0].mxu0
    %v3150 = vadd.f32 0.0, %v3149
    %v3151 = vpop.f32.mrb[0].mxu0
    %v3152 = vpop.f32.mrb[0].mxu0
    %v3153 = vadd.f32 0.0, %v3152
    %v3154 = vpop.f32.mrb[0].mxu0
    %3155 = vdwg.mxu0
    %3160 = vrot.lane.b32.xlu0 %v3142, 64
    %v3161 = vpop.permute.xlu0 %3160
    %3162 = vrot.lane.b32.xlu0 %v3145, 64
    %v3163 = vpop.permute.xlu0 %3162
    %3164 = vrot.lane.b32.xlu0 %v3150, 64
    %v3165 = vpop.permute.xlu0 %3164
    %3166 = vrot.lane.b32.xlu0 %v3153, 64
    %v3167 = vpop.permute.xlu0 %3166
    %3172 = vst.msk [vmem:[#allocation2] sm:$0xff] %vm1020, %v3161
    %3173 = vst.msk [vmem:[#allocation2 + $0x8] sm:$0xff] %vm1020, %v3163
    %3174 = vst.msk [vmem:[#allocation2 + $0x10] sm:$0xff] %vm1020, %v3165
    %3175 = vst.msk [vmem:[#allocation2 + $0x18] sm:$0xff] %vm1020, %v3167
    %3176 = vrot.lane.b32.xlu0 %v2606, 32
    %v3177 = vpop.permute.xlu0 %3176
    %3178 = vrot.lane.b32.xlu0 %v2609, 32
    %v3179 = vpop.permute.xlu0 %3178
    %3180 = vrot.lane.b32.xlu0 %v2607, 32
    %v3181 = vpop.permute.xlu0 %3180
    %3182 = vrot.lane.b32.xlu0 %v2610, 32
    %v3183 = vpop.permute.xlu0 %3182
    %v3185 = vsel %vm458, %v3177, 0
    %v3188 = vsel %vm458, %v3179, 0
    %v3191 = vsel %vm458, %v3181, 0
    %v3194 = vsel %vm458, %v3183, 0
    %3196 = vmatprep.subr.bf16.mxu0 0
    %3197 = vmatpush1.bf16.xpose.msra.mxu0 %v3191
    %3198 = vmatprep.subr.bf16.mxu0 0
    %3199 = vmatpush1.bf16.xpose.msra.mxu0 %v3194
    %3200 = vmatprep.subr.bf16.mxu0 0
    %3201 = vmatpush1.bf16.xpose.msra.mxu0 0
    %3202 = vmatprep.subr.bf16.mxu0 0
    %3203 = vmatpush1.bf16.xpose.msra.mxu0 0
    %3204 = vmatprep.subr.bf16.mxu0 0
    %3205 = vmatpush1.bf16.xpose.msra.mxu0 0
    %3206 = vmatprep.subr.bf16.mxu0 0
    %3207 = vmatpush1.bf16.xpose.msra.mxu0 0
    %3208 = vmatprep.subr.bf16.mxu0 0
    %3209 = vmatpush1.bf16.xpose.msra.mxu0 0
    %3210 = vmatprep.subr.bf16.mxu0 0
    %3211 = vmatpush1.bf16.xpose.msra.mxu0 0
    %3212 = vmatprep.subr.bf16.mxu0 0
    %3213 = vmatpush1.bf16.xpose.msra.mxu0 0
    %3214 = vmatprep.subr.bf16.mxu0 0
    %3215 = vmatpush1.bf16.xpose.msra.mxu0 0
    %3216 = vmatprep.subr.bf16.mxu0 0
    %3217 = vmatpush1.bf16.xpose.msra.mxu0 0
    %3218 = vmatprep.subr.bf16.mxu0 0
    %3219 = vmatpush1.bf16.xpose.msra.mxu0 0
    %3220 = vmatprep.subr.bf16.mxu0 0
    %3221 = vmatpush1.bf16.xpose.msra.mxu0 0
    %3222 = vmatprep.subr.bf16.mxu0 0
    %3223 = vmatpush1.bf16.xpose.msra.mxu0 0
    %3224 = vmatprep.subr.bf16.mxu0 0
    %3225 = vmatpush1.bf16.xpose.msra.mxu0 0
    %3226 = vmatprep.subr.bf16.mxu0 0
    %3227 = vmatpush1.bf16.xpose.msra.mxu0 0
    %3228 = vmatprep.mubr.bf16.mxu0 0
    %3229 = vmatmul.mubr.bf16.gmra.mrb[0].mxu0 %v3185
    %v3230 = vpop.f32.mrb[0].mxu0
    %v3231 = vadd.f32 %v96, %v3230
    %v3232 = vpop.f32.mrb[0].mxu0
    %v3233 = vpop.f32.mrb[0].mxu0
    %v3234 = vadd.f32 %v97, %v3233
    %v3235 = vpop.f32.mrb[0].mxu0
    %3236 = vmatprep.mubr.bf16.mxu0 0
    %3237 = vmatmul.mubr.bf16.gmra.mrb[0].mxu0 %v3188
    %v3238 = vpop.f32.mrb[0].mxu0
    %v3239 = vadd.f32 %v98, %v3238
    %v3240 = vpop.f32.mrb[0].mxu0
    %v3241 = vpop.f32.mrb[0].mxu0
    %v3242 = vadd.f32 %v99, %v3241
    %v3243 = vpop.f32.mrb[0].mxu0
    %3244 = vdwg.mxu0
    %v3245 = vsel %vm458, %v3231, -inf
    %3246 = vmax.xlane.f32.xlu0 %v3245
    %v3247 = vpop.xlane.xlu0 %3246
    %v3248 = vsel %vm458, %v3234, -inf
    %3249 = vmax.xlane.f32.xlu0 %v3248
    %v3250 = vpop.xlane.xlu0 %3249
    %v3251 = vsel %vm458, %v3239, -inf
    %3252 = vmax.xlane.f32.xlu0 %v3251
    %v3253 = vpop.xlane.xlu0 %3252
    %v3254 = vsel %vm458, %v3242, -inf
    %3255 = vmax.xlane.f32.xlu0 %v3254
    %v3256 = vpop.xlane.xlu0 %3255
    %v3257 = vsub.f32 %v3231, %v3247
    %v3258 = vsub.f32 %v3234, %v3250
    %v3259 = vsub.f32 %v3239, %v3253
    %v3260 = vsub.f32 %v3242, %v3256
    %v3261 = vmul.f32 %v3257, 1.442695
    %v3262 = vpow.pop %v3261
    %v3263 = vmul.f32 %v3258, 1.442695
    %v3264 = vpow.pop %v3263
    %v3265 = vmul.f32 %v3259, 1.442695
    %v3266 = vpow.pop %v3265
    %v3267 = vmul.f32 %v3260, 1.442695
    %v3268 = vpow.pop %v3267
    %v3269 = vsel %vm458, %v3262, 0.0
    %3270 = vadd.xlane.f32.xlu0 %v3269
    %v3271 = vpop.xlane.xlu0 %3270
    %v3272 = vsel %vm458, %v3264, 0.0
    %3273 = vadd.xlane.f32.xlu0 %v3272
    %v3274 = vpop.xlane.xlu0 %3273
    %v3275 = vsel %vm458, %v3266, 0.0
    %3276 = vadd.xlane.f32.xlu0 %v3275
    %v3277 = vpop.xlane.xlu0 %3276
    %v3278 = vsel %vm458, %v3268, 0.0
    %3279 = vadd.xlane.f32.xlu0 %v3278
    %v3280 = vpop.xlane.xlu0 %3279
    %v3281 = vrcp.pop %v3271
    %v3282 = vrcp.pop %v3274
    %v3283 = vrcp.pop %v3277
    %v3284 = vrcp.pop %v3280
    %v3285 = vmul.f32 %v3262, %v3281
    %v3286 = vmul.f32 %v3264, %v3282
    %v3287 = vmul.f32 %v3266, %v3283
    %v3288 = vmul.f32 %v3268, %v3284
    %v3289 = vpack.c.bf16 %v3286, %v3285
    %v3290 = vpack.c.bf16 %v3288, %v3287
    %3291 = vrot.lane.b32.xlu0 %v2608, 32
    %v3292 = vpop.permute.xlu0 %3291
    %3293 = vrot.lane.b32.xlu0 %v2611, 32
    %v3294 = vpop.permute.xlu0 %3293
    %v3298 = vsel %vm458, %v3289, 0
    %v3301 = vsel %vm458, %v3290, 0
    %3303 = vmatprep.subr.bf16.mxu0 0
    %3304 = vmatpush1.bf16.msra.mxu0 %v3292
    %3305 = vmatprep.subr.bf16.mxu0 0
    %3306 = vmatpush1.bf16.msra.mxu0 %v3294
    %3307 = vmatprep.subr.bf16.mxu0 0
    %3308 = vmatpush1.bf16.msra.mxu0 0
    %3309 = vmatprep.subr.bf16.mxu0 0
    %3310 = vmatpush1.bf16.msra.mxu0 0
    %3311 = vmatprep.subr.bf16.mxu0 0
    %3312 = vmatpush1.bf16.msra.mxu0 0
    %3313 = vmatprep.subr.bf16.mxu0 0
    %3314 = vmatpush1.bf16.msra.mxu0 0
    %3315 = vmatprep.subr.bf16.mxu0 0
    %3316 = vmatpush1.bf16.msra.mxu0 0
    %3317 = vmatprep.subr.bf16.mxu0 0
    %3318 = vmatpush1.bf16.msra.mxu0 0
    %3319 = vmatprep.subr.bf16.mxu0 0
    %3320 = vmatpush1.bf16.msra.mxu0 0
    %3321 = vmatprep.subr.bf16.mxu0 0
    %3322 = vmatpush1.bf16.msra.mxu0 0
    %3323 = vmatprep.subr.bf16.mxu0 0
    %3324 = vmatpush1.bf16.msra.mxu0 0
    %3325 = vmatprep.subr.bf16.mxu0 0
    %3326 = vmatpush1.bf16.msra.mxu0 0
    %3327 = vmatprep.subr.bf16.mxu0 0
    %3328 = vmatpush1.bf16.msra.mxu0 0
    %3329 = vmatprep.subr.bf16.mxu0 0
    %3330 = vmatpush1.bf16.msra.mxu0 0
    %3331 = vmatprep.subr.bf16.mxu0 0
    %3332 = vmatpush1.bf16.msra.mxu0 0
    %3333 = vmatprep.subr.bf16.mxu0 0
    %3334 = vmatpush1.bf16.msra.mxu0 0
    %3335 = vmatprep.mubr.bf16.mxu0 0
    %3336 = vmatmul.mubr.bf16.gmra.mrb[0].mxu0 %v3298
    %v3337 = vpop.f32.mrb[0].mxu0
    %v3338 = vadd.f32 0.0, %v3337
    %v3339 = vpop.f32.mrb[0].mxu0
    %v3340 = vpop.f32.mrb[0].mxu0
    %v3341 = vadd.f32 0.0, %v3340
    %v3342 = vpop.f32.mrb[0].mxu0
    %3343 = vmatprep.mubr.bf16.mxu0 0
    %3344 = vmatmul.mubr.bf16.gmra.mrb[0].mxu0 %v3301
    %v3345 = vpop.f32.mrb[0].mxu0
    %v3346 = vadd.f32 0.0, %v3345
    %v3347 = vpop.f32.mrb[0].mxu0
    %v3348 = vpop.f32.mrb[0].mxu0
    %v3349 = vadd.f32 0.0, %v3348
    %v3350 = vpop.f32.mrb[0].mxu0
    %3351 = vdwg.mxu0
    %3356 = vrot.lane.b32.xlu0 %v3338, 96
    %v3357 = vpop.permute.xlu0 %3356
    %3358 = vrot.lane.b32.xlu0 %v3341, 96
    %v3359 = vpop.permute.xlu0 %3358
    %3360 = vrot.lane.b32.xlu0 %v3346, 96
    %v3361 = vpop.permute.xlu0 %3360
    %3362 = vrot.lane.b32.xlu0 %v3349, 96
    %v3363 = vpop.permute.xlu0 %3362
    %3368 = vst.msk [vmem:[#allocation2] sm:$0xff] %vm1217, %v3357
    %3369 = vst.msk [vmem:[#allocation2 + $0x8] sm:$0xff] %vm1217, %v3359
    %3370 = vst.msk [vmem:[#allocation2 + $0x10] sm:$0xff] %vm1217, %v3361
    %3371 = vst.msk [vmem:[#allocation2 + $0x18] sm:$0xff] %vm1217, %v3363
    %v3372 = vld [vmem:[#allocation2] sm:$0xff]
    %v3373 = vld [vmem:[#allocation2 + $0x8] sm:$0xff]
    %v3374 = vld [vmem:[#allocation2 + $0x10] sm:$0xff]
    %v3375 = vld [vmem:[#allocation2 + $0x18] sm:$0xff]
    %v3376 = vpack.c.bf16 %v3373, %v3372
    %v3377 = vpack.c.bf16 %v3375, %v3374
    %s3378 = scalar_lea.vmem %s6, 64
    %v3379 = vld [vmem:[%s3378] sm:$0xf]
    %v3380 = vld [vmem:[%s3378 + $0x4] sm:$0xf]
    %v3381 = vld [vmem:[%s3378 + $0x8] sm:$0xf]
    %v3382 = vld [vmem:[%s3378 + $0xc] sm:$0xf]
    %v3383 = vld [vmem:[%s3378 + $0x10] sm:$0xf]
    %v3384 = vld [vmem:[%s3378 + $0x14] sm:$0xf]
    %v3385 = vld [vmem:[%s3378 + $0x18] sm:$0xf]
    %v3386 = vld [vmem:[%s3378 + $0x1c] sm:$0xf]
    %v3387 = vld [vmem:[%s3378 + $0x20] sm:$0xf]
    %v3388 = vld [vmem:[%s3378 + $0x24] sm:$0xf]
    %v3389 = vld [vmem:[%s3378 + $0x28] sm:$0xf]
    %v3390 = vld [vmem:[%s3378 + $0x2c] sm:$0xf]
    %v3391 = vld [vmem:[%s3378 + $0x30] sm:$0xf]
    %v3392 = vld [vmem:[%s3378 + $0x34] sm:$0xf]
    %v3393 = vld [vmem:[%s3378 + $0x38] sm:$0xf]
    %v3394 = vld [vmem:[%s3378 + $0x3c] sm:$0xf]
    %s3395 = scalar_lea.vmem %s7, 1
    %v3396 = vld [vmem:[%s3395] sm:$0x1]
    %v3398 = vlaneseq
    %v3399 = vshrl.u32 %v3398, 7
    %v3400 = vsub.s32 0, %v3399
    %v3401 = vrot.slane %v3396, %v3400
    %v3419 = vunpack.c.l.b16 %v3379
    %v3420 = vunpack.c.l.b16 %v3380
    %v3421 = vunpack.c.l.b16 %v3381
    %v3422 = vunpack.c.l.b16 %v3382
    %v3423 = vunpack.c.l.b16 %v3383
    %v3424 = vunpack.c.l.b16 %v3384
    %v3425 = vunpack.c.l.b16 %v3385
    %v3426 = vunpack.c.l.b16 %v3386
    %v3427 = vunpack.c.l.b16 %v3387
    %v3428 = vunpack.c.l.b16 %v3388
    %v3429 = vunpack.c.l.b16 %v3389
    %v3430 = vunpack.c.l.b16 %v3390
    %v3431 = vunpack.c.l.b16 %v3391
    %v3432 = vunpack.c.l.b16 %v3392
    %v3433 = vunpack.c.l.b16 %v3393
    %v3434 = vunpack.c.l.b16 %v3394
    %v3435 = vpack.c.b16 %v3420, %v3419
    %v3436 = vpack.c.b16 %v3422, %v3421
    %v3437 = vpack.c.b16 %v3424, %v3423
    %v3438 = vpack.c.b16 %v3426, %v3425
    %v3439 = vpack.c.b16 %v3428, %v3427
    %v3440 = vpack.c.b16 %v3430, %v3429
    %v3441 = vpack.c.b16 %v3432, %v3431
    %v3442 = vpack.c.b16 %v3434, %v3433
    %3451 = vmatprep.subr.bf16.mxu0 0
    %3452 = vmatpush1.bf16.msra.mxu0 %v3435
    %3453 = vmatprep.subr.bf16.mxu0 0
    %3454 = vmatpush1.bf16.msra.mxu0 %v3436
    %3455 = vmatprep.subr.bf16.mxu0 0
    %3456 = vmatpush1.bf16.msra.mxu0 %v3437
    %3457 = vmatprep.subr.bf16.mxu0 0
    %3458 = vmatpush1.bf16.msra.mxu0 %v3438
    %3459 = vmatprep.subr.bf16.mxu0 0
    %3460 = vmatpush1.bf16.msra.mxu0 %v3439
    %3461 = vmatprep.subr.bf16.mxu0 0
    %3462 = vmatpush1.bf16.msra.mxu0 %v3440
    %3463 = vmatprep.subr.bf16.mxu0 0
    %3464 = vmatpush1.bf16.msra.mxu0 %v3441
    %3465 = vmatprep.subr.bf16.mxu0 0
    %3466 = vmatpush1.bf16.msra.mxu0 %v3442
    %3467 = vmatprep.subr.bf16.mxu0 0
    %3468 = vmatpush1.bf16.msra.mxu0 0
    %3469 = vmatprep.subr.bf16.mxu0 0
    %3470 = vmatpush1.bf16.msra.mxu0 0
    %3471 = vmatprep.subr.bf16.mxu0 0
    %3472 = vmatpush1.bf16.msra.mxu0 0
    %3473 = vmatprep.subr.bf16.mxu0 0
    %3474 = vmatpush1.bf16.msra.mxu0 0
    %3475 = vmatprep.subr.bf16.mxu0 0
    %3476 = vmatpush1.bf16.msra.mxu0 0
    %3477 = vmatprep.subr.bf16.mxu0 0
    %3478 = vmatpush1.bf16.msra.mxu0 0
    %3479 = vmatprep.subr.bf16.mxu0 0
    %3480 = vmatpush1.bf16.msra.mxu0 0
    %3481 = vmatprep.subr.bf16.mxu0 0
    %3482 = vmatpush1.bf16.msra.mxu0 0
    %3483 = vmatprep.mubr.bf16.mxu0 0
    %3484 = vmatmul.mubr.bf16.gmra.mrb[0].mxu0 %v3376
    %v3485 = vpop.f32.mrb[0].mxu0
    %v3486 = vadd.f32 %v3401, %v3485
    %v3487 = vpop.f32.mrb[0].mxu0
    %v3488 = vpop.f32.mrb[0].mxu0
    %v3489 = vadd.f32 %v3401, %v3488
    %v3490 = vpop.f32.mrb[0].mxu0
    %3491 = vmatprep.mubr.bf16.mxu0 0
    %3492 = vmatmul.mubr.bf16.gmra.mrb[0].mxu0 %v3377
    %v3493 = vpop.f32.mrb[0].mxu0
    %v3494 = vadd.f32 %v3401, %v3493
    %v3495 = vpop.f32.mrb[0].mxu0
    %v3496 = vpop.f32.mrb[0].mxu0
    %v3497 = vadd.f32 %v3401, %v3496
    %v3498 = vpop.f32.mrb[0].mxu0
    %3499 = vdwg.mxu0
    %v3500 = vadd.f32 %v3486, %v2319
    %v3501 = vadd.f32 %v3489, %v2320
    %v3502 = vadd.f32 %v3494, %v2321
    %v3503 = vadd.f32 %v3497, %v2322
    %s3504 = scalar_lea.vmem %s8, 1
    %v3505 = vld [vmem:[%s3504] sm:$0x1]
    %s3506 = scalar_lea.vmem %s9, 1
    %v3507 = vld [vmem:[%s3506] sm:$0x1]
    %3508 = vadd.xlane.f32.xlu0 %v3500
    %v3509 = vpop.xlane.xlu0 %3508
    %3510 = vadd.xlane.f32.xlu0 %v3501
    %v3511 = vpop.xlane.xlu0 %3510
    %3512 = vadd.xlane.f32.xlu0 %v3502
    %v3513 = vpop.xlane.xlu0 %3512
    %3514 = vadd.xlane.f32.xlu0 %v3503
    %v3515 = vpop.xlane.xlu0 %3514
    %v3516 = vmul.f32 %v3509, %v114
    %v3517 = vmul.f32 %v3511, %v114
    %v3518 = vmul.f32 %v3513, %v114
    %v3519 = vmul.f32 %v3515, %v114
    %v3520 = vsub.f32 %v3500, %v3516
    %v3521 = vsub.f32 %v3501, %v3517
    %v3522 = vsub.f32 %v3502, %v3518
    %v3523 = vsub.f32 %v3503, %v3519
    %v3524 = vmul.f32 %v3520, %v3520
    %v3525 = vmul.f32 %v3521, %v3521
    %v3526 = vmul.f32 %v3522, %v3522
    %v3527 = vmul.f32 %v3523, %v3523
    %3528 = vadd.xlane.f32.xlu0 %v3524
    %v3529 = vpop.xlane.xlu0 %3528
    %3530 = vadd.xlane.f32.xlu0 %v3525
    %v3531 = vpop.xlane.xlu0 %3530
    %3532 = vadd.xlane.f32.xlu0 %v3526
    %v3533 = vpop.xlane.xlu0 %3532
    %3534 = vadd.xlane.f32.xlu0 %v3527
    %v3535 = vpop.xlane.xlu0 %3534
    %v3536 = vmul.f32 %v3529, %v114
    %v3537 = vmul.f32 %v3531, %v114
    %v3538 = vmul.f32 %v3533, %v114
    %v3539 = vmul.f32 %v3535, %v114
    %v3540 = vadd.f32 %v3536, 1e-12
    %v3541 = vadd.f32 %v3537, 1e-12
    %v3542 = vadd.f32 %v3538, 1e-12
    %v3543 = vadd.f32 %v3539, 1e-12
    %v3544 = vrsqrt.pop %v3540
    %v3545 = vrsqrt.pop %v3541
    %v3546 = vrsqrt.pop %v3542
    %v3547 = vrsqrt.pop %v3543
    %v3549 = vlaneseq
    %v3550 = vshrl.u32 %v3549, 7
    %v3551 = vsub.s32 0, %v3550
    %v3552 = vrot.slane %v3505, %v3551
    %v3554 = vmul.f32 %v3544, %v3552
    %v3555 = vmul.f32 %v3545, %v3552
    %v3556 = vmul.f32 %v3546, %v3552
    %v3557 = vmul.f32 %v3547, %v3552
    %v3558 = vmul.f32 %v3520, %v3554
    %v3559 = vmul.f32 %v3521, %v3555
    %v3560 = vmul.f32 %v3522, %v3556
    %v3561 = vmul.f32 %v3523, %v3557
    %v3563 = vlaneseq
    %v3564 = vshrl.u32 %v3563, 7
    %v3565 = vsub.s32 0, %v3564
    %v3566 = vrot.slane %v3507, %v3565
    %v3568 = vadd.f32 %v3558, %v3566
    %v3569 = vadd.f32 %v3559, %v3566
    %v3570 = vadd.f32 %v3560, %v3566
    %v3571 = vadd.f32 %v3561, %v3566
    %v3572 = vpack.c.bf16 %v3569, %v3568
    %v3573 = vpack.c.bf16 %v3571, %v3570
    %s3574 = scalar_lea.vmem [#allocation4], 256
    %v3575 = vld [vmem:[%s3574] sm:$0xff]
    %v3576 = vld [vmem:[%s3574 + $0x8] sm:$0xff]
    %v3577 = vld [vmem:[%s3574 + $0x10] sm:$0xff]
    %v3578 = vld [vmem:[%s3574 + $0x18] sm:$0xff]
    %v3579 = vld [vmem:[%s3574 + $0x20] sm:$0xff]
    %v3580 = vld [vmem:[%s3574 + $0x28] sm:$0xff]
    %v3581 = vld [vmem:[%s3574 + $0x30] sm:$0xff]
    %v3582 = vld [vmem:[%s3574 + $0x38] sm:$0xff]
    %v3583 = vld [vmem:[%s3574 + $0x40] sm:$0xff]
    %v3584 = vld [vmem:[%s3574 + $0x48] sm:$0xff]
    %v3585 = vld [vmem:[%s3574 + $0x50] sm:$0xff]
    %v3586 = vld [vmem:[%s3574 + $0x58] sm:$0xff]
    %v3587 = vld [vmem:[%s3574 + $0x60] sm:$0xff]
    %v3588 = vld [vmem:[%s3574 + $0x68] sm:$0xff]
    %v3589 = vld [vmem:[%s3574 + $0x70] sm:$0xff]
    %v3590 = vld [vmem:[%s3574 + $0x78] sm:$0xff]
    %v3591 = vld [vmem:[%s3574 + $0x80] sm:$0xff]
    %v3592 = vld [vmem:[%s3574 + $0x88] sm:$0xff]
    %v3593 = vld [vmem:[%s3574 + $0x90] sm:$0xff]
    %v3594 = vld [vmem:[%s3574 + $0x98] sm:$0xff]
    %v3595 = vld [vmem:[%s3574 + $0xa0] sm:$0xff]
    %v3596 = vld [vmem:[%s3574 + $0xa8] sm:$0xff]
    %v3597 = vld [vmem:[%s3574 + $0xb0] sm:$0xff]
    %v3598 = vld [vmem:[%s3574 + $0xb8] sm:$0xff]
    %v3599 = vld [vmem:[%s3574 + $0xc0] sm:$0xff]
    %v3600 = vld [vmem:[%s3574 + $0xc8] sm:$0xff]
    %v3601 = vld [vmem:[%s3574 + $0xd0] sm:$0xff]
    %v3602 = vld [vmem:[%s3574 + $0xd8] sm:$0xff]
    %v3603 = vld [vmem:[%s3574 + $0xe0] sm:$0xff]
    %v3604 = vld [vmem:[%s3574 + $0xe8] sm:$0xff]
    %v3605 = vld [vmem:[%s3574 + $0xf0] sm:$0xff]
    %v3606 = vld [vmem:[%s3574 + $0xf8] sm:$0xff]
    %s3607 = scalar_lea.vmem %s11, 4
    %v3608 = vld [vmem:[%s3607] sm:$0xf]
    %v3610 = vlaneseq
    %v3611 = vshrl.u32 %v3610, 7
    %v3612 = vsub.s32 0, %v3611
    %v3613 = vrot.slane %v3608, %v3612
    %v3614 = vlaneseq
    %v3615 = vshrl.u32 %v3614, 7
    %v3616 = vsub.s32 1, %v3615
    %v3617 = vrot.slane %v3608, %v3616
    %v3618 = vlaneseq
    %v3619 = vshrl.u32 %v3618, 7
    %v3620 = vsub.s32 2, %v3619
    %v3621 = vrot.slane %v3608, %v3620
    %v3622 = vlaneseq
    %v3623 = vshrl.u32 %v3622, 7
    %v3624 = vsub.s32 3, %v3623
    %v3625 = vrot.slane %v3608, %v3624
    %v3662 = vunpack.c.l.b16 %v3575
    %v3663 = vunpack.c.h.b16 %v3575
    %v3664 = vunpack.c.l.b16 %v3576
    %v3665 = vunpack.c.h.b16 %v3576
    %v3666 = vunpack.c.l.b16 %v3577
    %v3667 = vunpack.c.h.b16 %v3577
    %v3668 = vunpack.c.l.b16 %v3578
    %v3669 = vunpack.c.h.b16 %v3578
    %v3670 = vunpack.c.l.b16 %v3579
    %v3671 = vunpack.c.h.b16 %v3579
    %v3672 = vunpack.c.l.b16 %v3580
    %v3673 = vunpack.c.h.b16 %v3580
    %v3674 = vunpack.c.l.b16 %v3581
    %v3675 = vunpack.c.h.b16 %v3581
    %v3676 = vunpack.c.l.b16 %v3582
    %v3677 = vunpack.c.h.b16 %v3582
    %v3678 = vunpack.c.l.b16 %v3583
    %v3679 = vunpack.c.h.b16 %v3583
    %v3680 = vunpack.c.l.b16 %v3584
    %v3681 = vunpack.c.h.b16 %v3584
    %v3682 = vunpack.c.l.b16 %v3585
    %v3683 = vunpack.c.h.b16 %v3585
    %v3684 = vunpack.c.l.b16 %v3586
    %v3685 = vunpack.c.h.b16 %v3586
    %v3686 = vunpack.c.l.b16 %v3587
    %v3687 = vunpack.c.h.b16 %v3587
    %v3688 = vunpack.c.l.b16 %v3588
    %v3689 = vunpack.c.h.b16 %v3588
    %v3690 = vunpack.c.l.b16 %v3589
    %v3691 = vunpack.c.h.b16 %v3589
    %v3692 = vunpack.c.l.b16 %v3590
    %v3693 = vunpack.c.h.b16 %v3590
    %v3694 = vunpack.c.l.b16 %v3591
    %v3695 = vunpack.c.h.b16 %v3591
    %v3696 = vunpack.c.l.b16 %v3592
    %v3697 = vunpack.c.h.b16 %v3592
    %v3698 = vunpack.c.l.b16 %v3593
    %v3699 = vunpack.c.h.b16 %v3593
    %v3700 = vunpack.c.l.b16 %v3594
    %v3701 = vunpack.c.h.b16 %v3594
    %v3702 = vunpack.c.l.b16 %v3595
    %v3703 = vunpack.c.h.b16 %v3595
    %v3704 = vunpack.c.l.b16 %v3596
    %v3705 = vunpack.c.h.b16 %v3596
    %v3706 = vunpack.c.l.b16 %v3597
    %v3707 = vunpack.c.h.b16 %v3597
    %v3708 = vunpack.c.l.b16 %v3598
    %v3709 = vunpack.c.h.b16 %v3598
    %v3710 = vunpack.c.l.b16 %v3599
    %v3711 = vunpack.c.h.b16 %v3599
    %v3712 = vunpack.c.l.b16 %v3600
    %v3713 = vunpack.c.h.b16 %v3600
    %v3714 = vunpack.c.l.b16 %v3601
    %v3715 = vunpack.c.h.b16 %v3601
    %v3716 = vunpack.c.l.b16 %v3602
    %v3717 = vunpack.c.h.b16 %v3602
    %v3718 = vunpack.c.l.b16 %v3603
    %v3719 = vunpack.c.h.b16 %v3603
    %v3720 = vunpack.c.l.b16 %v3604
    %v3721 = vunpack.c.h.b16 %v3604
    %v3722 = vunpack.c.l.b16 %v3605
    %v3723 = vunpack.c.h.b16 %v3605
    %v3724 = vunpack.c.l.b16 %v3606
    %v3725 = vunpack.c.h.b16 %v3606
    %v3726 = vpack.c.b16 %v3666, %v3662
    %v3727 = vpack.c.b16 %v3667, %v3663
    %v3728 = vpack.c.b16 %v3668, %v3664
    %v3729 = vpack.c.b16 %v3669, %v3665
    %v3730 = vpack.c.b16 %v3674, %v3670
    %v3731 = vpack.c.b16 %v3675, %v3671
    %v3732 = vpack.c.b16 %v3676, %v3672
    %v3733 = vpack.c.b16 %v3677, %v3673
    %v3734 = vpack.c.b16 %v3682, %v3678
    %v3735 = vpack.c.b16 %v3683, %v3679
    %v3736 = vpack.c.b16 %v3684, %v3680
    %v3737 = vpack.c.b16 %v3685, %v3681
    %v3738 = vpack.c.b16 %v3690, %v3686
    %v3739 = vpack.c.b16 %v3691, %v3687
    %v3740 = vpack.c.b16 %v3692, %v3688
    %v3741 = vpack.c.b16 %v3693, %v3689
    %v3742 = vpack.c.b16 %v3698, %v3694
    %v3743 = vpack.c.b16 %v3699, %v3695
    %v3744 = vpack.c.b16 %v3700, %v3696
    %v3745 = vpack.c.b16 %v3701, %v3697
    %v3746 = vpack.c.b16 %v3706, %v3702
    %v3747 = vpack.c.b16 %v3707, %v3703
    %v3748 = vpack.c.b16 %v3708, %v3704
    %v3749 = vpack.c.b16 %v3709, %v3705
    %v3750 = vpack.c.b16 %v3714, %v3710
    %v3751 = vpack.c.b16 %v3715, %v3711
    %v3752 = vpack.c.b16 %v3716, %v3712
    %v3753 = vpack.c.b16 %v3717, %v3713
    %v3754 = vpack.c.b16 %v3722, %v3718
    %v3755 = vpack.c.b16 %v3723, %v3719
    %v3756 = vpack.c.b16 %v3724, %v3720
    %v3757 = vpack.c.b16 %v3725, %v3721
    %3790 = vmatprep.subr.bf16.mxu0 %v3727
    %3791 = vmatpush1.bf16.msra.mxu0 %v3726
    %3792 = vmatprep.subr.bf16.mxu0 %v3731
    %3793 = vmatpush1.bf16.msra.mxu0 %v3730
    %3794 = vmatprep.subr.bf16.mxu0 %v3735
    %3795 = vmatpush1.bf16.msra.mxu0 %v3734
    %3796 = vmatprep.subr.bf16.mxu0 %v3739
    %3797 = vmatpush1.bf16.msra.mxu0 %v3738
    %3798 = vmatprep.subr.bf16.mxu0 %v3743
    %3799 = vmatpush1.bf16.msra.mxu0 %v3742
    %3800 = vmatprep.subr.bf16.mxu0 %v3747
    %3801 = vmatpush1.bf16.msra.mxu0 %v3746
    %3802 = vmatprep.subr.bf16.mxu0 %v3751
    %3803 = vmatpush1.bf16.msra.mxu0 %v3750
    %3804 = vmatprep.subr.bf16.mxu0 %v3755
    %3805 = vmatpush1.bf16.msra.mxu0 %v3754
    %3806 = vmatprep.subr.bf16.mxu0 0
    %3807 = vmatpush1.bf16.msra.mxu0 0
    %3808 = vmatprep.subr.bf16.mxu0 0
    %3809 = vmatpush1.bf16.msra.mxu0 0
    %3810 = vmatprep.subr.bf16.mxu0 0
    %3811 = vmatpush1.bf16.msra.mxu0 0
    %3812 = vmatprep.subr.bf16.mxu0 0
    %3813 = vmatpush1.bf16.msra.mxu0 0
    %3814 = vmatprep.subr.bf16.mxu0 0
    %3815 = vmatpush1.bf16.msra.mxu0 0
    %3816 = vmatprep.subr.bf16.mxu0 0
    %3817 = vmatpush1.bf16.msra.mxu0 0
    %3818 = vmatprep.subr.bf16.mxu0 0
    %3819 = vmatpush1.bf16.msra.mxu0 0
    %3820 = vmatprep.subr.bf16.mxu0 0
    %3821 = vmatpush1.bf16.msra.mxu0 0
    %3822 = vmatprep.mubr.bf16.mxu0 0
    %3823 = vmatmul.mubr.bf16.gmra.mrb[0].mxu0 %v3572
    %v3824 = vpop.f32.mrb[0].mxu0
    %v3825 = vadd.f32 %v3613, %v3824
    %v3826 = vpop.f32.mrb[0].mxu0
    %v3827 = vadd.f32 %v3617, %v3826
    %v3828 = vpop.f32.mrb[0].mxu0
    %v3829 = vadd.f32 %v3613, %v3828
    %v3830 = vpop.f32.mrb[0].mxu0
    %v3831 = vadd.f32 %v3617, %v3830
    %3832 = vmatprep.mubr.bf16.mxu0 0
    %3833 = vmatmul.mubr.bf16.gmra.mrb[0].mxu0 %v3573
    %v3834 = vpop.f32.mrb[0].mxu0
    %v3835 = vadd.f32 %v3613, %v3834
    %v3836 = vpop.f32.mrb[0].mxu0
    %v3837 = vadd.f32 %v3617, %v3836
    %v3838 = vpop.f32.mrb[0].mxu0
    %v3839 = vadd.f32 %v3613, %v3838
    %v3840 = vpop.f32.mrb[0].mxu0
    %v3841 = vadd.f32 %v3617, %v3840
    %3842 = vdwg.mxu0
    %3843 = vmatprep.subr.bf16.mxu0 %v3729
    %3844 = vmatpush1.bf16.msra.mxu0 %v3728
    %3845 = vmatprep.subr.bf16.mxu0 %v3733
    %3846 = vmatpush1.bf16.msra.mxu0 %v3732
    %3847 = vmatprep.subr.bf16.mxu0 %v3737
    %3848 = vmatpush1.bf16.msra.mxu0 %v3736
    %3849 = vmatprep.subr.bf16.mxu0 %v3741
    %3850 = vmatpush1.bf16.msra.mxu0 %v3740
    %3851 = vmatprep.subr.bf16.mxu0 %v3745
    %3852 = vmatpush1.bf16.msra.mxu0 %v3744
    %3853 = vmatprep.subr.bf16.mxu0 %v3749
    %3854 = vmatpush1.bf16.msra.mxu0 %v3748
    %3855 = vmatprep.subr.bf16.mxu0 %v3753
    %3856 = vmatpush1.bf16.msra.mxu0 %v3752
    %3857 = vmatprep.subr.bf16.mxu0 %v3757
    %3858 = vmatpush1.bf16.msra.mxu0 %v3756
    %3859 = vmatprep.subr.bf16.mxu0 0
    %3860 = vmatpush1.bf16.msra.mxu0 0
    %3861 = vmatprep.subr.bf16.mxu0 0
    %3862 = vmatpush1.bf16.msra.mxu0 0
    %3863 = vmatprep.subr.bf16.mxu0 0
    %3864 = vmatpush1.bf16.msra.mxu0 0
    %3865 = vmatprep.subr.bf16.mxu0 0
    %3866 = vmatpush1.bf16.msra.mxu0 0
    %3867 = vmatprep.subr.bf16.mxu0 0
    %3868 = vmatpush1.bf16.msra.mxu0 0
    %3869 = vmatprep.subr.bf16.mxu0 0
    %3870 = vmatpush1.bf16.msra.mxu0 0
    %3871 = vmatprep.subr.bf16.mxu0 0
    %3872 = vmatpush1.bf16.msra.mxu0 0
    %3873 = vmatprep.subr.bf16.mxu0 0
    %3874 = vmatpush1.bf16.msra.mxu0 0
    %3875 = vmatprep.mubr.bf16.mxu0 0
    %3876 = vmatmul.mubr.bf16.gmra.mrb[0].mxu0 %v3572
    %v3877 = vpop.f32.mrb[0].mxu0
    %v3878 = vadd.f32 %v3621, %v3877
    %v3879 = vpop.f32.mrb[0].mxu0
    %v3880 = vadd.f32 %v3625, %v3879
    %v3881 = vpop.f32.mrb[0].mxu0
    %v3882 = vadd.f32 %v3621, %v3881
    %v3883 = vpop.f32.mrb[0].mxu0
    %v3884 = vadd.f32 %v3625, %v3883
    %3885 = vmatprep.mubr.bf16.mxu0 0
    %3886 = vmatmul.mubr.bf16.gmra.mrb[0].mxu0 %v3573
    %v3887 = vpop.f32.mrb[0].mxu0
    %v3888 = vadd.f32 %v3621, %v3887
    %v3889 = vpop.f32.mrb[0].mxu0
    %v3890 = vadd.f32 %v3625, %v3889
    %v3891 = vpop.f32.mrb[0].mxu0
    %v3892 = vadd.f32 %v3621, %v3891
    %v3893 = vpop.f32.mrb[0].mxu0
    %v3894 = vadd.f32 %v3625, %v3893
    %3895 = vdwg.mxu0
    %v3896 = vmul.f32 %v3825, %v3825
    %v3897 = vmul.f32 %v3827, %v3827
    %v3898 = vmul.f32 %v3878, %v3878
    %v3899 = vmul.f32 %v3880, %v3880
    %v3900 = vmul.f32 %v3829, %v3829
    %v3901 = vmul.f32 %v3831, %v3831
    %v3902 = vmul.f32 %v3882, %v3882
    %v3903 = vmul.f32 %v3884, %v3884
    %v3904 = vmul.f32 %v3835, %v3835
    %v3905 = vmul.f32 %v3837, %v3837
    %v3906 = vmul.f32 %v3888, %v3888
    %v3907 = vmul.f32 %v3890, %v3890
    %v3908 = vmul.f32 %v3839, %v3839
    %v3909 = vmul.f32 %v3841, %v3841
    %v3910 = vmul.f32 %v3892, %v3892
    %v3911 = vmul.f32 %v3894, %v3894
    %v3912 = vmul.f32 %v3825, %v3896
    %v3913 = vmul.f32 %v3827, %v3897
    %v3914 = vmul.f32 %v3878, %v3898
    %v3915 = vmul.f32 %v3880, %v3899
    %v3916 = vmul.f32 %v3829, %v3900
    %v3917 = vmul.f32 %v3831, %v3901
    %v3918 = vmul.f32 %v3882, %v3902
    %v3919 = vmul.f32 %v3884, %v3903
    %v3920 = vmul.f32 %v3835, %v3904
    %v3921 = vmul.f32 %v3837, %v3905
    %v3922 = vmul.f32 %v3888, %v3906
    %v3923 = vmul.f32 %v3890, %v3907
    %v3924 = vmul.f32 %v3839, %v3908
    %v3925 = vmul.f32 %v3841, %v3909
    %v3926 = vmul.f32 %v3892, %v3910
    %v3927 = vmul.f32 %v3894, %v3911
    %v3928 = vmul.f32 %v3912, 0.044715
    %v3929 = vmul.f32 %v3913, 0.044715
    %v3930 = vmul.f32 %v3914, 0.044715
    %v3931 = vmul.f32 %v3915, 0.044715
    %v3932 = vmul.f32 %v3916, 0.044715
    %v3933 = vmul.f32 %v3917, 0.044715
    %v3934 = vmul.f32 %v3918, 0.044715
    %v3935 = vmul.f32 %v3919, 0.044715
    %v3936 = vmul.f32 %v3920, 0.044715
    %v3937 = vmul.f32 %v3921, 0.044715
    %v3938 = vmul.f32 %v3922, 0.044715
    %v3939 = vmul.f32 %v3923, 0.044715
    %v3940 = vmul.f32 %v3924, 0.044715
    %v3941 = vmul.f32 %v3925, 0.044715
    %v3942 = vmul.f32 %v3926, 0.044715
    %v3943 = vmul.f32 %v3927, 0.044715
    %v3944 = vadd.f32 %v3825, %v3928
    %v3945 = vadd.f32 %v3827, %v3929
    %v3946 = vadd.f32 %v3878, %v3930
    %v3947 = vadd.f32 %v3880, %v3931
    %v3948 = vadd.f32 %v3829, %v3932
    %v3949 = vadd.f32 %v3831, %v3933
    %v3950 = vadd.f32 %v3882, %v3934
    %v3951 = vadd.f32 %v3884, %v3935
    %v3952 = vadd.f32 %v3835, %v3936
    %v3953 = vadd.f32 %v3837, %v3937
    %v3954 = vadd.f32 %v3888, %v3938
    %v3955 = vadd.f32 %v3890, %v3939
    %v3956 = vadd.f32 %v3839, %v3940
    %v3957 = vadd.f32 %v3841, %v3941
    %v3958 = vadd.f32 %v3892, %v3942
    %v3959 = vadd.f32 %v3894, %v3943
    %v3960 = vmul.f32 %v3944, 0.7978846
    %v3961 = vmul.f32 %v3945, 0.7978846
    %v3962 = vmul.f32 %v3946, 0.7978846
    %v3963 = vmul.f32 %v3947, 0.7978846
    %v3964 = vmul.f32 %v3948, 0.7978846
    %v3965 = vmul.f32 %v3949, 0.7978846
    %v3966 = vmul.f32 %v3950, 0.7978846
    %v3967 = vmul.f32 %v3951, 0.7978846
    %v3968 = vmul.f32 %v3952, 0.7978846
    %v3969 = vmul.f32 %v3953, 0.7978846
    %v3970 = vmul.f32 %v3954, 0.7978846
    %v3971 = vmul.f32 %v3955, 0.7978846
    %v3972 = vmul.f32 %v3956, 0.7978846
    %v3973 = vmul.f32 %v3957, 0.7978846
    %v3974 = vmul.f32 %v3958, 0.7978846
    %v3975 = vmul.f32 %v3959, 0.7978846
    %v3976 = vtanh.pop %v3960
    %v3977 = vtanh.pop %v3961
    %v3978 = vtanh.pop %v3962
    %v3979 = vtanh.pop %v3963
    %v3980 = vtanh.pop %v3964
    %v3981 = vtanh.pop %v3965
    %v3982 = vtanh.pop %v3966
    %v3983 = vtanh.pop %v3967
    %v3984 = vtanh.pop %v3968
    %v3985 = vtanh.pop %v3969
    %v3986 = vtanh.pop %v3970
    %v3987 = vtanh.pop %v3971
    %v3988 = vtanh.pop %v3972
    %v3989 = vtanh.pop %v3973
    %v3990 = vtanh.pop %v3974
    %v3991 = vtanh.pop %v3975
    %v3992 = vadd.f32 %v3976, 1.0
    %v3993 = vadd.f32 %v3977, 1.0
    %v3994 = vadd.f32 %v3978, 1.0
    %v3995 = vadd.f32 %v3979, 1.0
    %v3996 = vadd.f32 %v3980, 1.0
    %v3997 = vadd.f32 %v3981, 1.0
    %v3998 = vadd.f32 %v3982, 1.0
    %v3999 = vadd.f32 %v3983, 1.0
    %v4000 = vadd.f32 %v3984, 1.0
    %v4001 = vadd.f32 %v3985, 1.0
    %v4002 = vadd.f32 %v3986, 1.0
    %v4003 = vadd.f32 %v3987, 1.0
    %v4004 = vadd.f32 %v3988, 1.0
    %v4005 = vadd.f32 %v3989, 1.0
    %v4006 = vadd.f32 %v3990, 1.0
    %v4007 = vadd.f32 %v3991, 1.0
    %v4008 = vmul.f32 %v3992, 0.5
    %v4009 = vmul.f32 %v3993, 0.5
    %v4010 = vmul.f32 %v3994, 0.5
    %v4011 = vmul.f32 %v3995, 0.5
    %v4012 = vmul.f32 %v3996, 0.5
    %v4013 = vmul.f32 %v3997, 0.5
    %v4014 = vmul.f32 %v3998, 0.5
    %v4015 = vmul.f32 %v3999, 0.5
    %v4016 = vmul.f32 %v4000, 0.5
    %v4017 = vmul.f32 %v4001, 0.5
    %v4018 = vmul.f32 %v4002, 0.5
    %v4019 = vmul.f32 %v4003, 0.5
    %v4020 = vmul.f32 %v4004, 0.5
    %v4021 = vmul.f32 %v4005, 0.5
    %v4022 = vmul.f32 %v4006, 0.5
    %v4023 = vmul.f32 %v4007, 0.5
    %v4024 = vmul.f32 %v3825, %v4008
    %v4025 = vmul.f32 %v3827, %v4009
    %v4026 = vmul.f32 %v3878, %v4010
    %v4027 = vmul.f32 %v3880, %v4011
    %v4028 = vmul.f32 %v3829, %v4012
    %v4029 = vmul.f32 %v3831, %v4013
    %v4030 = vmul.f32 %v3882, %v4014
    %v4031 = vmul.f32 %v3884, %v4015
    %v4032 = vmul.f32 %v3835, %v4016
    %v4033 = vmul.f32 %v3837, %v4017
    %v4034 = vmul.f32 %v3888, %v4018
    %v4035 = vmul.f32 %v3890, %v4019
    %v4036 = vmul.f32 %v3839, %v4020
    %v4037 = vmul.f32 %v3841, %v4021
    %v4038 = vmul.f32 %v3892, %v4022
    %v4039 = vmul.f32 %v3894, %v4023
    %v4040 = vpack.c.bf16 %v4028, %v4024
    %v4041 = vpack.c.bf16 %v4029, %v4025
    %v4042 = vpack.c.bf16 %v4030, %v4026
    %v4043 = vpack.c.bf16 %v4031, %v4027
    %v4044 = vpack.c.bf16 %v4036, %v4032
    %v4045 = vpack.c.bf16 %v4037, %v4033
    %v4046 = vpack.c.bf16 %v4038, %v4034
    %v4047 = vpack.c.bf16 %v4039, %v4035
    %s4048 = scalar_lea.vmem [#allocation6], 256
    %v4049 = vld [vmem:[%s4048] sm:$0xf]
    %v4050 = vld [vmem:[%s4048 + $0x4] sm:$0xf]
    %v4051 = vld [vmem:[%s4048 + $0x8] sm:$0xf]
    %v4052 = vld [vmem:[%s4048 + $0xc] sm:$0xf]
    %v4053 = vld [vmem:[%s4048 + $0x10] sm:$0xf]
    %v4054 = vld [vmem:[%s4048 + $0x14] sm:$0xf]
    %v4055 = vld [vmem:[%s4048 + $0x18] sm:$0xf]
    %v4056 = vld [vmem:[%s4048 + $0x1c] sm:$0xf]
    %v4057 = vld [vmem:[%s4048 + $0x20] sm:$0xf]
    %v4058 = vld [vmem:[%s4048 + $0x24] sm:$0xf]
    %v4059 = vld [vmem:[%s4048 + $0x28] sm:$0xf]
    %v4060 = vld [vmem:[%s4048 + $0x2c] sm:$0xf]
    %v4061 = vld [vmem:[%s4048 + $0x30] sm:$0xf]
    %v4062 = vld [vmem:[%s4048 + $0x34] sm:$0xf]
    %v4063 = vld [vmem:[%s4048 + $0x38] sm:$0xf]
    %v4064 = vld [vmem:[%s4048 + $0x3c] sm:$0xf]
    %v4065 = vld [vmem:[%s4048 + $0x40] sm:$0xf]
    %v4066 = vld [vmem:[%s4048 + $0x44] sm:$0xf]
    %v4067 = vld [vmem:[%s4048 + $0x48] sm:$0xf]
    %v4068 = vld [vmem:[%s4048 + $0x4c] sm:$0xf]
    %v4069 = vld [vmem:[%s4048 + $0x50] sm:$0xf]
    %v4070 = vld [vmem:[%s4048 + $0x54] sm:$0xf]
    %v4071 = vld [vmem:[%s4048 + $0x58] sm:$0xf]
    %v4072 = vld [vmem:[%s4048 + $0x5c] sm:$0xf]
    %v4073 = vld [vmem:[%s4048 + $0x60] sm:$0xf]
    %v4074 = vld [vmem:[%s4048 + $0x64] sm:$0xf]
    %v4075 = vld [vmem:[%s4048 + $0x68] sm:$0xf]
    %v4076 = vld [vmem:[%s4048 + $0x6c] sm:$0xf]
    %v4077 = vld [vmem:[%s4048 + $0x70] sm:$0xf]
    %v4078 = vld [vmem:[%s4048 + $0x74] sm:$0xf]
    %v4079 = vld [vmem:[%s4048 + $0x78] sm:$0xf]
    %v4080 = vld [vmem:[%s4048 + $0x7c] sm:$0xf]
    %v4081 = vld [vmem:[%s4048 + $0x80] sm:$0xf]
    %v4082 = vld [vmem:[%s4048 + $0x84] sm:$0xf]
    %v4083 = vld [vmem:[%s4048 + $0x88] sm:$0xf]
    %v4084 = vld [vmem:[%s4048 + $0x8c] sm:$0xf]
    %v4085 = vld [vmem:[%s4048 + $0x90] sm:$0xf]
    %v4086 = vld [vmem:[%s4048 + $0x94] sm:$0xf]
    %v4087 = vld [vmem:[%s4048 + $0x98] sm:$0xf]
    %v4088 = vld [vmem:[%s4048 + $0x9c] sm:$0xf]
    %v4089 = vld [vmem:[%s4048 + $0xa0] sm:$0xf]
    %v4090 = vld [vmem:[%s4048 + $0xa4] sm:$0xf]
    %v4091 = vld [vmem:[%s4048 + $0xa8] sm:$0xf]
    %v4092 = vld [vmem:[%s4048 + $0xac] sm:$0xf]
    %v4093 = vld [vmem:[%s4048 + $0xb0] sm:$0xf]
    %v4094 = vld [vmem:[%s4048 + $0xb4] sm:$0xf]
    %v4095 = vld [vmem:[%s4048 + $0xb8] sm:$0xf]
    %v4096 = vld [vmem:[%s4048 + $0xbc] sm:$0xf]
    %v4097 = vld [vmem:[%s4048 + $0xc0] sm:$0xf]
    %v4098 = vld [vmem:[%s4048 + $0xc4] sm:$0xf]
    %v4099 = vld [vmem:[%s4048 + $0xc8] sm:$0xf]
    %v4100 = vld [vmem:[%s4048 + $0xcc] sm:$0xf]
    %v4101 = vld [vmem:[%s4048 + $0xd0] sm:$0xf]
    %v4102 = vld [vmem:[%s4048 + $0xd4] sm:$0xf]
    %v4103 = vld [vmem:[%s4048 + $0xd8] sm:$0xf]
    %v4104 = vld [vmem:[%s4048 + $0xdc] sm:$0xf]
    %v4105 = vld [vmem:[%s4048 + $0xe0] sm:$0xf]
    %v4106 = vld [vmem:[%s4048 + $0xe4] sm:$0xf]
    %v4107 = vld [vmem:[%s4048 + $0xe8] sm:$0xf]
    %v4108 = vld [vmem:[%s4048 + $0xec] sm:$0xf]
    %v4109 = vld [vmem:[%s4048 + $0xf0] sm:$0xf]
    %v4110 = vld [vmem:[%s4048 + $0xf4] sm:$0xf]
    %v4111 = vld [vmem:[%s4048 + $0xf8] sm:$0xf]
    %v4112 = vld [vmem:[%s4048 + $0xfc] sm:$0xf]
    %s4113 = scalar_lea.vmem %s13, 1
    %v4114 = vld [vmem:[%s4113] sm:$0x1]
    %v4116 = vlaneseq
    %v4117 = vshrl.u32 %v4116, 7
    %v4118 = vsub.s32 0, %v4117
    %v4119 = vrot.slane %v4114, %v4118
    %v4185 = vunpack.c.l.b16 %v4049
    %v4186 = vunpack.c.l.b16 %v4050
    %v4187 = vunpack.c.l.b16 %v4051
    %v4188 = vunpack.c.l.b16 %v4052
    %v4189 = vunpack.c.l.b16 %v4053
    %v4190 = vunpack.c.l.b16 %v4054
    %v4191 = vunpack.c.l.b16 %v4055
    %v4192 = vunpack.c.l.b16 %v4056
    %v4193 = vunpack.c.l.b16 %v4057
    %v4194 = vunpack.c.l.b16 %v4058
    %v4195 = vunpack.c.l.b16 %v4059
    %v4196 = vunpack.c.l.b16 %v4060
    %v4197 = vunpack.c.l.b16 %v4061
    %v4198 = vunpack.c.l.b16 %v4062
    %v4199 = vunpack.c.l.b16 %v4063
    %v4200 = vunpack.c.l.b16 %v4064
    %v4201 = vunpack.c.l.b16 %v4065
    %v4202 = vunpack.c.l.b16 %v4066
    %v4203 = vunpack.c.l.b16 %v4067
    %v4204 = vunpack.c.l.b16 %v4068
    %v4205 = vunpack.c.l.b16 %v4069
    %v4206 = vunpack.c.l.b16 %v4070
    %v4207 = vunpack.c.l.b16 %v4071
    %v4208 = vunpack.c.l.b16 %v4072
    %v4209 = vunpack.c.l.b16 %v4073
    %v4210 = vunpack.c.l.b16 %v4074
    %v4211 = vunpack.c.l.b16 %v4075
    %v4212 = vunpack.c.l.b16 %v4076
    %v4213 = vunpack.c.l.b16 %v4077
    %v4214 = vunpack.c.l.b16 %v4078
    %v4215 = vunpack.c.l.b16 %v4079
    %v4216 = vunpack.c.l.b16 %v4080
    %v4217 = vunpack.c.l.b16 %v4081
    %v4218 = vunpack.c.l.b16 %v4082
    %v4219 = vunpack.c.l.b16 %v4083
    %v4220 = vunpack.c.l.b16 %v4084
    %v4221 = vunpack.c.l.b16 %v4085
    %v4222 = vunpack.c.l.b16 %v4086
    %v4223 = vunpack.c.l.b16 %v4087
    %v4224 = vunpack.c.l.b16 %v4088
    %v4225 = vunpack.c.l.b16 %v4089
    %v4226 = vunpack.c.l.b16 %v4090
    %v4227 = vunpack.c.l.b16 %v4091
    %v4228 = vunpack.c.l.b16 %v4092
    %v4229 = vunpack.c.l.b16 %v4093
    %v4230 = vunpack.c.l.b16 %v4094
    %v4231 = vunpack.c.l.b16 %v4095
    %v4232 = vunpack.c.l.b16 %v4096
    %v4233 = vunpack.c.l.b16 %v4097
    %v4234 = vunpack.c.l.b16 %v4098
    %v4235 = vunpack.c.l.b16 %v4099
    %v4236 = vunpack.c.l.b16 %v4100
    %v4237 = vunpack.c.l.b16 %v4101
    %v4238 = vunpack.c.l.b16 %v4102
    %v4239 = vunpack.c.l.b16 %v4103
    %v4240 = vunpack.c.l.b16 %v4104
    %v4241 = vunpack.c.l.b16 %v4105
    %v4242 = vunpack.c.l.b16 %v4106
    %v4243 = vunpack.c.l.b16 %v4107
    %v4244 = vunpack.c.l.b16 %v4108
    %v4245 = vunpack.c.l.b16 %v4109
    %v4246 = vunpack.c.l.b16 %v4110
    %v4247 = vunpack.c.l.b16 %v4111
    %v4248 = vunpack.c.l.b16 %v4112
    %v4249 = vpack.c.b16 %v4186, %v4185
    %v4250 = vpack.c.b16 %v4188, %v4187
    %v4251 = vpack.c.b16 %v4190, %v4189
    %v4252 = vpack.c.b16 %v4192, %v4191
    %v4253 = vpack.c.b16 %v4194, %v4193
    %v4254 = vpack.c.b16 %v4196, %v4195
    %v4255 = vpack.c.b16 %v4198, %v4197
    %v4256 = vpack.c.b16 %v4200, %v4199
    %v4257 = vpack.c.b16 %v4202, %v4201
    %v4258 = vpack.c.b16 %v4204, %v4203
    %v4259 = vpack.c.b16 %v4206, %v4205
    %v4260 = vpack.c.b16 %v4208, %v4207
    %v4261 = vpack.c.b16 %v4210, %v4209
    %v4262 = vpack.c.b16 %v4212, %v4211
    %v4263 = vpack.c.b16 %v4214, %v4213
    %v4264 = vpack.c.b16 %v4216, %v4215
    %v4265 = vpack.c.b16 %v4218, %v4217
    %v4266 = vpack.c.b16 %v4220, %v4219
    %v4267 = vpack.c.b16 %v4222, %v4221
    %v4268 = vpack.c.b16 %v4224, %v4223
    %v4269 = vpack.c.b16 %v4226, %v4225
    %v4270 = vpack.c.b16 %v4228, %v4227
    %v4271 = vpack.c.b16 %v4230, %v4229
    %v4272 = vpack.c.b16 %v4232, %v4231
    %v4273 = vpack.c.b16 %v4234, %v4233
    %v4274 = vpack.c.b16 %v4236, %v4235
    %v4275 = vpack.c.b16 %v4238, %v4237
    %v4276 = vpack.c.b16 %v4240, %v4239
    %v4277 = vpack.c.b16 %v4242, %v4241
    %v4278 = vpack.c.b16 %v4244, %v4243
    %v4279 = vpack.c.b16 %v4246, %v4245
    %v4280 = vpack.c.b16 %v4248, %v4247
    %4313 = vmatprep.subr.bf16.mxu0 0
    %4314 = vmatpush1.bf16.msra.mxu0 %v4249
    %4315 = vmatprep.subr.bf16.mxu0 0
    %4316 = vmatpush1.bf16.msra.mxu0 %v4250
    %4317 = vmatprep.subr.bf16.mxu0 0
    %4318 = vmatpush1.bf16.msra.mxu0 %v4251
    %4319 = vmatprep.subr.bf16.mxu0 0
    %4320 = vmatpush1.bf16.msra.mxu0 %v4252
    %4321 = vmatprep.subr.bf16.mxu0 0
    %4322 = vmatpush1.bf16.msra.mxu0 %v4253
    %4323 = vmatprep.subr.bf16.mxu0 0
    %4324 = vmatpush1.bf16.msra.mxu0 %v4254
    %4325 = vmatprep.subr.bf16.mxu0 0
    %4326 = vmatpush1.bf16.msra.mxu0 %v4255
    %4327 = vmatprep.subr.bf16.mxu0 0
    %4328 = vmatpush1.bf16.msra.mxu0 %v4256
    %4329 = vmatprep.subr.bf16.mxu0 0
    %4330 = vmatpush1.bf16.msra.mxu0 %v4257
    %4331 = vmatprep.subr.bf16.mxu0 0
    %4332 = vmatpush1.bf16.msra.mxu0 %v4258
    %4333 = vmatprep.subr.bf16.mxu0 0
    %4334 = vmatpush1.bf16.msra.mxu0 %v4259
    %4335 = vmatprep.subr.bf16.mxu0 0
    %4336 = vmatpush1.bf16.msra.mxu0 %v4260
    %4337 = vmatprep.subr.bf16.mxu0 0
    %4338 = vmatpush1.bf16.msra.mxu0 %v4261
    %4339 = vmatprep.subr.bf16.mxu0 0
    %4340 = vmatpush1.bf16.msra.mxu0 %v4262
    %4341 = vmatprep.subr.bf16.mxu0 0
    %4342 = vmatpush1.bf16.msra.mxu0 %v4263
    %4343 = vmatprep.subr.bf16.mxu0 0
    %4344 = vmatpush1.bf16.msra.mxu0 %v4264
    %4345 = vmatprep.mubr.bf16.mxu0 %v4041
    %4346 = vmatmul.mubr.bf16.gmra.mrb[0].mxu0 %v4040
    %v4347 = vpop.f32.mrb[0].mxu0
    %v4348 = vadd.f32 %v4119, %v4347
    %v4349 = vpop.f32.mrb[0].mxu0
    %v4350 = vpop.f32.mrb[0].mxu0
    %v4351 = vpop.f32.mrb[0].mxu0
    %4352 = vmatprep.mubr.bf16.mxu0 %v4045
    %4353 = vmatmul.mubr.bf16.gmra.mrb[0].mxu0 %v4044
    %v4354 = vpop.f32.mrb[0].mxu0
    %v4355 = vadd.f32 %v4119, %v4354
    %v4356 = vpop.f32.mrb[0].mxu0
    %v4357 = vpop.f32.mrb[0].mxu0
    %v4358 = vpop.f32.mrb[0].mxu0
    %4359 = vdwg.mxu0
    %4360 = vmatprep.subr.bf16.mxu0 0
    %4361 = vmatpush1.bf16.msra.mxu0 %v4265
    %4362 = vmatprep.subr.bf16.mxu0 0
    %4363 = vmatpush1.bf16.msra.mxu0 %v4266
    %4364 = vmatprep.subr.bf16.mxu0 0
    %4365 = vmatpush1.bf16.msra.mxu0 %v4267
    %4366 = vmatprep.subr.bf16.mxu0 0
    %4367 = vmatpush1.bf16.msra.mxu0 %v4268
    %4368 = vmatprep.subr.bf16.mxu0 0
    %4369 = vmatpush1.bf16.msra.mxu0 %v4269
    %4370 = vmatprep.subr.bf16.mxu0 0
    %4371 = vmatpush1.bf16.msra.mxu0 %v4270
    %4372 = vmatprep.subr.bf16.mxu0 0
    %4373 = vmatpush1.bf16.msra.mxu0 %v4271
    %4374 = vmatprep.subr.bf16.mxu0 0
    %4375 = vmatpush1.bf16.msra.mxu0 %v4272
    %4376 = vmatprep.subr.bf16.mxu0 0
    %4377 = vmatpush1.bf16.msra.mxu0 %v4273
    %4378 = vmatprep.subr.bf16.mxu0 0
    %4379 = vmatpush1.bf16.msra.mxu0 %v4274
    %4380 = vmatprep.subr.bf16.mxu0 0
    %4381 = vmatpush1.bf16.msra.mxu0 %v4275
    %4382 = vmatprep.subr.bf16.mxu0 0
    %4383 = vmatpush1.bf16.msra.mxu0 %v4276
    %4384 = vmatprep.subr.bf16.mxu0 0
    %4385 = vmatpush1.bf16.msra.mxu0 %v4277
    %4386 = vmatprep.subr.bf16.mxu0 0
    %4387 = vmatpush1.bf16.msra.mxu0 %v4278
    %4388 = vmatprep.subr.bf16.mxu0 0
    %4389 = vmatpush1.bf16.msra.mxu0 %v4279
    %4390 = vmatprep.subr.bf16.mxu0 0
    %4391 = vmatpush1.bf16.msra.mxu0 %v4280
    %4392 = vmatprep.mubr.bf16.mxu0 %v4043
    %4393 = vmatmul.mubr.bf16.gmra.mrb[0].mxu0 %v4042
    %v4394 = vpop.f32.mrb[0].mxu0
    %v4395 = vadd.f32 %v4348, %v4394
    %v4396 = vpop.f32.mrb[0].mxu0
    %v4397 = vpop.f32.mrb[0].mxu0
    %v4398 = vpop.f32.mrb[0].mxu0
    %4399 = vmatprep.mubr.bf16.mxu0 %v4047
    %4400 = vmatmul.mubr.bf16.gmra.mrb[0].mxu0 %v4046
    %v4401 = vpop.f32.mrb[0].mxu0
    %v4402 = vadd.f32 %v4355, %v4401
    %v4403 = vpop.f32.mrb[0].mxu0
    %v4404 = vpop.f32.mrb[0].mxu0
    %v4405 = vpop.f32.mrb[0].mxu0
    %4406 = vdwg.mxu0
    %v4407 = vadd.f32 %v4395, %v3568
    %v4408 = vadd.f32 %v4402, %v3570
    %s4409 = scalar_lea.vmem %s14, 1
    %v4410 = vld [vmem:[%s4409] sm:$0x1]
    %s4411 = scalar_lea.vmem %s15, 1
    %v4412 = vld [vmem:[%s4411] sm:$0x1]
    %4413 = vadd.xlane.f32.xlu0 %v4407
    %v4414 = vpop.xlane.xlu0 %4413
    %4415 = vadd.xlane.f32.xlu0 %v4408
    %v4416 = vpop.xlane.xlu0 %4415
    %v4417 = vmul.f32 %v4414, %v114
    %v4418 = vmul.f32 %v4416, %v114
    %v4419 = vsub.f32 %v4407, %v4417
    %v4420 = vsub.f32 %v4408, %v4418
    %v4421 = vmul.f32 %v4419, %v4419
    %v4422 = vmul.f32 %v4420, %v4420
    %4423 = vadd.xlane.f32.xlu0 %v4421
    %v4424 = vpop.xlane.xlu0 %4423
    %4425 = vadd.xlane.f32.xlu0 %v4422
    %v4426 = vpop.xlane.xlu0 %4425
    %v4427 = vmul.f32 %v4424, %v114
    %v4428 = vmul.f32 %v4426, %v114
    %v4429 = vadd.f32 %v4427, 1e-12
    %v4430 = vadd.f32 %v4428, 1e-12
    %v4431 = vrsqrt.pop %v4429
    %v4432 = vrsqrt.pop %v4430
    %v4434 = vlaneseq
    %v4435 = vshrl.u32 %v4434, 7
    %v4436 = vsub.s32 0, %v4435
    %v4437 = vrot.slane %v4410, %v4436
    %v4439 = vmul.f32 %v4431, %v4437
    %v4440 = vmul.f32 %v4432, %v4437
    %v4441 = vmul.f32 %v4419, %v4439
    %v4442 = vmul.f32 %v4420, %v4440
    %v4444 = vlaneseq
    %v4445 = vshrl.u32 %v4444, 7
    %v4446 = vsub.s32 0, %v4445
    %v4447 = vrot.slane %v4412, %v4446
    %v4449 = vadd.f32 %v4441, %v4447
    %v4450 = vadd.f32 %v4442, %v4447
    %v4452 = vrot.slane %v4450, 7
    %vm4454 = vcmask 1040384
    %v4455 = vsel %vm4454, %v4449, %v4452
    %v4456 = vpack.c.bf16 %v4455, %v4455
    %v4457 = vld [vmem:[%s16] sm:$0xf]
    %v4458 = vld [vmem:[%s16 + $0x4] sm:$0xf]
    %v4459 = vld [vmem:[%s16 + $0x8] sm:$0xf]
    %v4460 = vld [vmem:[%s16 + $0xc] sm:$0xf]
    %v4461 = vld [vmem:[%s16 + $0x10] sm:$0xf]
    %v4462 = vld [vmem:[%s16 + $0x14] sm:$0xf]
    %v4463 = vld [vmem:[%s16 + $0x18] sm:$0xf]
    %v4464 = vld [vmem:[%s16 + $0x1c] sm:$0xf]
    %v4465 = vld [vmem:[%s16 + $0x20] sm:$0xf]
    %v4466 = vld [vmem:[%s16 + $0x24] sm:$0xf]
    %v4467 = vld [vmem:[%s16 + $0x28] sm:$0xf]
    %v4468 = vld [vmem:[%s16 + $0x2c] sm:$0xf]
    %v4469 = vld [vmem:[%s16 + $0x30] sm:$0xf]
    %v4470 = vld [vmem:[%s16 + $0x34] sm:$0xf]
    %v4471 = vld [vmem:[%s16 + $0x38] sm:$0xf]
    %v4472 = vld [vmem:[%s16 + $0x3c] sm:$0xf]
    %v4473 = vld [vmem:[%s17] sm:$0x1]
    %v4475 = vlaneseq
    %v4476 = vshrl.u32 %v4475, 7
    %v4477 = vsub.s32 0, %v4476
    %v4478 = vrot.slane %v4473, %v4477
    %v4496 = vunpack.c.l.b16 %v4457
    %v4497 = vunpack.c.l.b16 %v4458
    %v4498 = vunpack.c.l.b16 %v4459
    %v4499 = vunpack.c.l.b16 %v4460
    %v4500 = vunpack.c.l.b16 %v4461
    %v4501 = vunpack.c.l.b16 %v4462
    %v4502 = vunpack.c.l.b16 %v4463
    %v4503 = vunpack.c.l.b16 %v4464
    %v4504 = vunpack.c.l.b16 %v4465
    %v4505 = vunpack.c.l.b16 %v4466
    %v4506 = vunpack.c.l.b16 %v4467
    %v4507 = vunpack.c.l.b16 %v4468
    %v4508 = vunpack.c.l.b16 %v4469
    %v4509 = vunpack.c.l.b16 %v4470
    %v4510 = vunpack.c.l.b16 %v4471
    %v4511 = vunpack.c.l.b16 %v4472
    %v4512 = vpack.c.b16 %v4497, %v4496
    %v4513 = vpack.c.b16 %v4499, %v4498
    %v4514 = vpack.c.b16 %v4501, %v4500
    %v4515 = vpack.c.b16 %v4503, %v4502
    %v4516 = vpack.c.b16 %v4505, %v4504
    %v4517 = vpack.c.b16 %v4507, %v4506
    %v4518 = vpack.c.b16 %v4509, %v4508
    %v4519 = vpack.c.b16 %v4511, %v4510
    %4528 = vmatprep.subr.bf16.mxu0 0
    %4529 = vmatpush1.bf16.msra.mxu0 %v4512
    %4530 = vmatprep.subr.bf16.mxu0 0
    %4531 = vmatpush1.bf16.msra.mxu0 %v4513
    %4532 = vmatprep.subr.bf16.mxu0 0
    %4533 = vmatpush1.bf16.msra.mxu0 %v4514
    %4534 = vmatprep.subr.bf16.mxu0 0
    %4535 = vmatpush1.bf16.msra.mxu0 %v4515
    %4536 = vmatprep.subr.bf16.mxu0 0
    %4537 = vmatpush1.bf16.msra.mxu0 %v4516
    %4538 = vmatprep.subr.bf16.mxu0 0
    %4539 = vmatpush1.bf16.msra.mxu0 %v4517
    %4540 = vmatprep.subr.bf16.mxu0 0
    %4541 = vmatpush1.bf16.msra.mxu0 %v4518
    %4542 = vmatprep.subr.bf16.mxu0 0
    %4543 = vmatpush1.bf16.msra.mxu0 %v4519
    %4544 = vmatprep.subr.bf16.mxu0 0
    %4545 = vmatpush1.bf16.msra.mxu0 0
    %4546 = vmatprep.subr.bf16.mxu0 0
    %4547 = vmatpush1.bf16.msra.mxu0 0
    %4548 = vmatprep.subr.bf16.mxu0 0
    %4549 = vmatpush1.bf16.msra.mxu0 0
    %4550 = vmatprep.subr.bf16.mxu0 0
    %4551 = vmatpush1.bf16.msra.mxu0 0
    %4552 = vmatprep.subr.bf16.mxu0 0
    %4553 = vmatpush1.bf16.msra.mxu0 0
    %4554 = vmatprep.subr.bf16.mxu0 0
    %4555 = vmatpush1.bf16.msra.mxu0 0
    %4556 = vmatprep.subr.bf16.mxu0 0
    %4557 = vmatpush1.bf16.msra.mxu0 0
    %4558 = vmatprep.subr.bf16.mxu0 0
    %4559 = vmatpush1.bf16.msra.mxu0 0
    %4560 = vmatprep.mubr.bf16.mxu0 0
    %4561 = vmatmul.mubr.bf16.gmra.mrb[0].mxu0 %v4456
    %v4562 = vpop.f32.mrb[0].mxu0
    %v4563 = vadd.f32 %v4478, %v4562
    %v4564 = vpop.f32.mrb[0].mxu0
    %v4565 = vpop.f32.mrb[0].mxu0
    %v4566 = vpop.f32.mrb[0].mxu0
    %4567 = vdwg.mxu0
    %v4568 = vtanh.pop %v4563
    %v4569 = vld [vmem:[%s18] sm:$0x1]
    %v4571 = vlaneseq
    %v4572 = vshrl.u32 %v4571, 7
    %v4573 = vsub.s32 0, %v4572
    %v4574 = vrot.slane %v4569, %v4573
    %v4576 = vmul.f32 %v4568, %v4574
    %vm4577 = vcmask 1041408
    %v4578 = vsel %vm4577, %v4576, 0.0
    %4579 = vadd.xlane.f32.xlu0 %v4578
    %v4580 = vpop.xlane.xlu0 %4579
    %v4581 = vld [vmem:[#allocation3] sm:$0x1]
    %v4583 = vlaneseq
    %v4584 = vshrl.u32 %v4583, 7
    %v4585 = vsub.s32 0, %v4584
    %v4586 = vrot.slane %v4581, %v4585
    %v4588 = vadd.f32 %v4580, %v4586
    %vm4589 = vcmask 1024
    %4590 = vst.msk [vmem:[%s20] sm:$0x3] %vm4589, %v4588
    // Predicated region
    $region90: #{bert_base_cased_forward.1} parent=1 // pred_check
      _
    $region91: #{bert_base_cased_forward.1} parent=1 // pred_check_branch
      %4592 = sbr.rel (0) target = $region93
    $region92: #{bert_base_cased_forward.1} parent=1 // pred_region
      _
    $region93: #{bert_base_cased_forward.1} parent=1 // pred_fallthru
      _
    // Predicated region
    $region94: #{bert_base_cased_forward.1} parent=1 // pred_check
      _
    $region95: #{bert_base_cased_forward.1} parent=1 // pred_check_branch
      %4594 = sbr.rel (0) target = $region97
    $region96: #{bert_base_cased_forward.1} parent=1 // pred_region
      _
    $region97: #{bert_base_cased_forward.1} parent=1 // pred_fallthru
      _
    %4595 = vsyncpa [#allocation5], 1
    %4596 = vsyncpa [#allocation7], 1

</llo_original>
